<compile_context>
chip_gen: v5e
topology: v5e:2x2
jax: 0.10.0
libtpu: 0.0.40
codegen_flags: <defaults>
</compile_context>

<pallas_src>
import functools

import jax
import jax.numpy as jnp
from jax import lax
from jax.experimental import pallas as pl
from jax.experimental.pallas import tpu as pltpu


def _loss_kernel(use_move_weight,
                 xev_ref, xsq_ref, mlog_ref, lab_ref,
                 wet_ref, wct_ref, bias_ref,
                 packed_ref):
    TB, NSQ, H = xsq_ref.shape
    SL = mlog_ref.shape[1]
    NBINS = wet_ref.shape[0]
    PACKW = packed_ref.shape[1]

    # ---- packed per-sample labels: one lane-dense (TB, 128) block -----------
    lab = lab_ref[...]                       # f32
    ev_lbl = lab[:, 0:1]                     # (TB, 1)
    chk_lbl = lab[:, 1:2]
    ksq_i = lab[:, 2:3].astype(jnp.int32)    # small ints, exact in f32
    tidx_i = lab[:, 3:4].astype(jnp.int32)
    t_tgt = lab[:, 64:64 + NSQ]              # (TB, 64) threat targets (-100 = ignore)

    # ---- token features ------------------------------------------------------
    x_ev = xev_ref[...]                                   # (TB, H)   f32, eval token
    x_sq = xsq_ref[...].astype(jnp.float32)               # (TB, 64, H) bf16 -> f32

    # ---- fused linear heads: VPU broadcast-multiply + lane reduction ---------
    wet = wet_ref[...].reshape(1, NBINS, H)               # eval head W^T
    ev_logits = (jnp.sum(x_ev.reshape(TB, 1, H) * wet, axis=-1)
                 + bias_ref[0:1, 0:NBINS])                # (TB, NBINS)

    wc = wct_ref[0:1, :].reshape(1, 1, H)                 # check head
    wt = wct_ref[1:2, :].reshape(1, 1, H)                 # threat head
    chk_sq = jnp.sum(x_sq * wc, axis=-1) + bias_ref[0:1, NBINS:NBINS + 1]        # (TB, 64)
    thr_sq = jnp.sum(x_sq * wt, axis=-1) + bias_ref[0:1, NBINS + 1:NBINS + 2]    # (TB, 64)

    # ---- ProbEvalLoss: CE vs discretized eval bin ----------------------------
    bin_idx = jnp.clip(jnp.floor((ev_lbl + 1.0) * 0.5 * NBINS),
                       0.0, NBINS - 1.0).astype(jnp.int32)                       # (TB, 1)
    bin_iota = lax.broadcasted_iota(jnp.int32, (TB, NBINS), 1)
    onehot_bin = (bin_iota == bin_idx).astype(jnp.float32)
    m_e = jnp.max(ev_logits, axis=-1, keepdims=True)
    lse_e = m_e + jnp.log(jnp.sum(jnp.exp(ev_logits - m_e), axis=-1, keepdims=True))
    loss_eval = lse_e - jnp.sum(onehot_bin * ev_logits, axis=-1, keepdims=True)  # (TB, 1)

    # ---- InCheckLoss: BCE-with-logits on the king-square logit --------------
    sq_iota = lax.broadcasted_iota(jnp.int32, (TB, NSQ), 1)
    ksq_onehot = (sq_iota == ksq_i).astype(jnp.float32)
    z = jnp.sum(chk_sq * ksq_onehot, axis=-1, keepdims=True)                     # (TB, 1)
    loss_check = (jnp.maximum(z, 0.0) - z * chk_lbl
                  + jnp.log1p(jnp.exp(-jnp.abs(z))))                             # (TB, 1)

    # ---- ThreatLoss: masked BCE (-100 = ignore) ------------------------------
    valid_t = t_tgt >= 0.0
    y_t = jnp.where(valid_t, t_tgt, 0.0)
    bce = (jnp.maximum(thr_sq, 0.0) - thr_sq * y_t
           + jnp.log1p(jnp.exp(-jnp.abs(thr_sq))))
    thr_sum = jnp.sum(jnp.where(valid_t, bce, 0.0), axis=-1, keepdims=True)      # (TB, 1)
    thr_cnt = jnp.sum(valid_t.astype(jnp.float32), axis=-1, keepdims=True)       # (TB, 1)

    # ---- LegalMoveLoss: masked softmax CE on pre-gathered (TB, SL) logits ----
    mlog = mlog_ref[...]                                  # invalid slots already -1e9
    col_iota = lax.broadcasted_iota(jnp.int32, (TB, SL), 1)
    sel = (col_iota == tidx_i).astype(jnp.float32)
    true_logit = jnp.sum(sel * mlog, axis=-1, keepdims=True)                     # (TB, 1)
    m_m = jnp.max(mlog, axis=-1, keepdims=True)
    # exp(-1e9 - m_m) underflows to 0, so masked slots drop out of the sum.
    lse_m = m_m + jnp.log(jnp.sum(jnp.exp(mlog - m_m), axis=-1, keepdims=True))
    loss_move = lse_m - true_logit                                               # (TB, 1)
    if use_move_weight:
        loss_move = loss_move * (0.5 + 0.5 * ev_lbl)      # move_weight = 0.5 + 0.5*eval

    # ---- single lane-dense (TB, 128) store (one concat, one full-width vst) --
    parts = [ev_logits, loss_eval, loss_check, thr_sum, thr_cnt, loss_move]
    pad_w = PACKW - (NBINS + 5)
    if pad_w > 0:
        parts.append(jnp.zeros((TB, pad_w), jnp.float32))
    packed_ref[...] = jnp.concatenate(parts, axis=1)


def build_params(key, H, NBINS):
    ks = jax.random.split(key, 3)
    scale = 1.0 / jnp.sqrt(H).astype(jnp.float32)
    We = jax.random.normal(ks[0], (H, NBINS), jnp.float32) * scale
    be = jnp.zeros((1, NBINS), jnp.float32)
    Wc = jax.random.normal(ks[1], (H, 1), jnp.float32) * scale
    bc = jnp.zeros((1, 1), jnp.float32)
    Wt = jax.random.normal(ks[2], (H, 1), jnp.float32) * scale
    bt = jnp.zeros((1, 1), jnp.float32)
    return We, be, Wc, bc, Wt, bt


def _pick_tb(B, requested, per_sample_bytes, vmem_budget_bytes):
    """Largest multiple-of-8 divisor of B that fits the VMEM budget and the
    requested tile, preferring >=2 grid steps (v7x has two TensorCores)."""
    cap = max(8, int(vmem_budget_bytes // max(per_sample_bytes, 1)))
    limit = min(requested, cap)
    cands = [d for d in range(8, B + 1, 8) if B % d == 0]
    if not cands:
        return B                      # tiny/odd batch: single full block
    pref = [d for d in cands if d <= limit and B // d >= 2]
    if pref:
        return max(pref)
    fit = [d for d in cands if d <= limit]
    if fit:
        return max(fit)
    return min(cands)


def chess_loss_forward(x, move_pred, labels, params, loss_weights,
                       use_move_weight=False, batch_tile=128):
    B, T, H = x.shape
    NSQ, NPLANE = move_pred.shape[1], move_pred.shape[2]
    L = labels['legal_moves'].shape[2]
    SL = NSQ * L
    We, be, Wc, bc, Wt, bt = params
    NBINS = We.shape[1]
    PACKW = 128
    assert T == NSQ + 1
    assert NBINS + 5 <= PACKW and NSQ + 4 <= PACKW

    # rough per-sample VMEM footprint: double-buffered blocks + f32 head temps
    per_sample = 2 * (H * 4 + NSQ * H * 2 + SL * 4 + PACKW * 4 + PACKW * 4) \
        + 2 * NSQ * H * 4
    TB = _pick_tb(B, batch_tile, per_sample, 24 * 1024 * 1024)
    grid = (B // TB,)

    # ----- input layout plumbing (wrapper side, cheap) -----------------------
    x_ev = x[:, 0, :].astype(jnp.float32)                 # (B, H)     eval token
    x_sq = x[:, 1:, :].astype(jnp.bfloat16)               # (B, 64, H) square tokens

    # move-plane gather done wrapper-side (kills the 16x pre-broadcast stream)
    legal = labels['legal_moves'].astype(jnp.int32)       # (B, 64, L), -1 = pad
    gathered = jnp.take_along_axis(move_pred.astype(jnp.float32),
                                   jnp.clip(legal, 0, NPLANE - 1), axis=-1)
    move_logits = jnp.where(legal >= 0, gathered, -1e9)   # (B, 64, L)
    mlog_flat = move_logits.reshape(B, SL)                # lane-dense (B, SL)

    # one lane-dense labels slab: [eval, check, king_sq, true_index, ..., threat(64)]
    lab = jnp.zeros((B, PACKW), jnp.float32)
    lab = lab.at[:, 0].set(labels['eval'].reshape(B).astype(jnp.float32))
    lab = lab.at[:, 1].set(labels['check'].reshape(B).astype(jnp.float32))
    lab = lab.at[:, 2].set(labels['king_square'].reshape(B).astype(jnp.float32))
    lab = lab.at[:, 3].set(labels['true_index'].reshape(B).astype(jnp.float32))
    lab = lab.at[:, 64:64 + NSQ].set(
        labels['threat_target'].reshape(B, NSQ).astype(jnp.float32))

    wet = We.T.astype(jnp.float32)                                   # (NBINS, H)
    wct = jnp.concatenate([Wc.T, Wt.T], axis=0).astype(jnp.float32)  # (2, H)
    bias = jnp.zeros((1, PACKW), jnp.float32)
    bias = bias.at[0, :NBINS].set(be.reshape(NBINS))
    bias = bias.at[0, NBINS].set(bc[0, 0])
    bias = bias.at[0, NBINS + 1].set(bt[0, 0])

    in_specs = [
        pl.BlockSpec((TB, H), lambda i: (i, 0)),            # x_eval (f32)
        pl.BlockSpec((TB, NSQ, H), lambda i: (i, 0, 0)),    # x_squares (bf16)
        pl.BlockSpec((TB, SL), lambda i: (i, 0)),           # masked move logits
        pl.BlockSpec((TB, PACKW), lambda i: (i, 0)),        # packed labels slab
        pl.BlockSpec((NBINS, H), lambda i: (0, 0)),         # eval head W^T
        pl.BlockSpec((2, H), lambda i: (0, 0)),             # [check; threat] W^T
        pl.BlockSpec((1, PACKW), lambda i: (0, 0)),         # packed biases
    ]
    out_shape = jax.ShapeDtypeStruct((B, PACKW), jnp.float32)
    out_specs = pl.BlockSpec((TB, PACKW), lambda i: (i, 0))

    kernel = functools.partial(_loss_kernel, use_move_weight)
    packed = pl.pallas_call(
        kernel,
        out_shape=out_shape,
        grid_spec=pltpu.PrefetchScalarGridSpec(
            num_scalar_prefetch=0,
            grid=grid,
            in_specs=in_specs,
            out_specs=out_specs,
        ),
        compiler_params=pltpu.CompilerParams(
            dimension_semantics=("parallel",),
            vmem_limit_bytes=32 * 1024 * 1024),
    )(x_ev, x_sq, mlog_flat, lab, wet, wct, bias)

    # ----- batch reductions (glue) — mirrors .mean() / ignore-mask averaging --
    eval_logits = packed[:, :NBINS]
    loss_eval = jnp.mean(packed[:, NBINS])
    loss_check = jnp.mean(packed[:, NBINS + 1])
    loss_threat = jnp.sum(packed[:, NBINS + 2]) / jnp.maximum(
        jnp.sum(packed[:, NBINS + 3]), 1.0)
    loss_move = jnp.mean(packed[:, NBINS + 4])

    total = (loss_weights['eval'] * loss_eval
             + loss_weights['incheck'] * loss_check
             + loss_weights['threat'] * loss_threat
             + loss_weights['move'] * loss_move)
    # Device arrays (no .item()) so the whole thing stays jittable / async.
    loss_dict = {'eval': loss_eval, 'incheck': loss_check,
                 'threat': loss_threat, 'move': loss_move}
    logit_dict = {'eval': eval_logits, 'move': move_logits}
    return total, loss_dict, logit_dict


if __name__ == "__main__":
    B, T, H = 16, 65, 32
    NSQ, NPLANE, L, NBINS = 64, 7, 16, 8

    key = jax.random.PRNGKey(0)
    keys = jax.random.split(key, 12)

    x = jax.random.normal(keys[0], (B, T, H), jnp.float32)
    move_pred = jax.random.normal(keys[1], (B, NSQ, NPLANE), jnp.float32)

    eval_lbl = jax.random.uniform(keys[2], (B, 1), jnp.float32, -1.0, 1.0)
    check_lbl = jax.random.bernoulli(keys[3], 0.5, (B, 1)).astype(jnp.float32)
    king_square = jax.random.randint(keys[4], (B, 1), 0, NSQ, jnp.int32)
    threat_bits = jax.random.bernoulli(keys[5], 0.3, (B, NSQ)).astype(jnp.float32)
    threat_mask = jax.random.bernoulli(keys[6], 0.25, (B, NSQ))
    threat_target = jnp.where(threat_mask, -100.0, threat_bits)
    legal = jax.random.randint(keys[7], (B, NSQ, L), 0, NPLANE, jnp.int32)
    pad = jax.random.bernoulli(keys[8], 0.5, (B, NSQ, L))
    legal = jnp.where(pad, -1, legal)
    legal = legal.at[:, :, 0].set(
        jax.random.randint(keys[9], (B, NSQ), 0, NPLANE, jnp.int32))  # col 0 always valid
    true_sq = jax.random.randint(keys[10], (B,), 0, NSQ, jnp.int32)
    true_index = true_sq * L                                          # points at a valid move

    labels = {
        'eval': eval_lbl,
        'check': check_lbl,
        'king_square': king_square,
        'threat_target': threat_target,
        'legal_moves': legal,
        'true_index': true_index,
        'move_target': jnp.zeros((B, NSQ), jnp.float32),   # present but unused by forward
        'terminal_flag': jnp.zeros((B, 1), jnp.float32),   # present but unused by forward
    }

    params = build_params(keys[11], H, NBINS)
    weights = {'eval': 1.0, 'incheck': 1.0, 'threat': 1.0, 'move': 3.0}

    total, loss_dict, logit_dict = chess_loss_forward(
        x, move_pred, labels, params, weights, use_move_weight=False)

    jax.block_until_ready(total)
    jax.block_until_ready(logit_dict['eval'])
    jax.block_until_ready(logit_dict['move'])
    print("KERNEL_OK")
</pallas_src>

<mosaic_0001>
module attributes {stable_mosaic.version = 11 : i64} {
  func.func @_loss_kernel(%arg0: i32, %arg1: memref<8x32xf32, #tpu.memory_space<vmem>>, %arg2: memref<8x64x32xbf16, #tpu.memory_space<vmem>>, %arg3: memref<8x1024xf32, #tpu.memory_space<vmem>>, %arg4: memref<8x128xf32, #tpu.memory_space<vmem>>, %arg5: memref<8x32xf32, #tpu.memory_space<vmem>>, %arg6: memref<2x32xf32, #tpu.memory_space<vmem>>, %arg7: memref<1x128xf32, #tpu.memory_space<vmem>>, %arg8: memref<8x128xf32, #tpu.memory_space<vmem>>) attributes {dimension_semantics = [#tpu.dimension_semantics<parallel>], iteration_bounds = array<i64: 2>, scalar_prefetch = 0 : i64, scratch_operands = 0 : i64, tpu.core_type = #tpu.core_type<tc>, window_params = [{transform_indices = @transform_0, window_bounds = array<i64: 8, 32>}, {transform_indices = @transform_1, window_bounds = array<i64: 8, 64, 32>}, {transform_indices = @transform_2, window_bounds = array<i64: 8, 1024>}, {transform_indices = @transform_3, window_bounds = array<i64: 8, 128>}, {pipeline_mode = #tpu.pipeline_mode<synchronous>, transform_indices = @transform_4, window_bounds = array<i64: 8, 32>}, {pipeline_mode = #tpu.pipeline_mode<synchronous>, transform_indices = @transform_5, window_bounds = array<i64: 2, 32>}, {pipeline_mode = #tpu.pipeline_mode<synchronous>, transform_indices = @transform_6, window_bounds = array<i64: 1, 128>}, {transform_indices = @transform_7, window_bounds = array<i64: 8, 128>}]} {
    %c0 = arith.constant 0 : index
    %c0_0 = arith.constant 0 : index
    %0 = vector.load %arg4[%c0, %c0_0] : memref<8x128xf32, #tpu.memory_space<vmem>>, vector<8x128xf32>
    %1 = vector.extract_strided_slice %0 {offsets = [0, 0], sizes = [8, 1], strides = [1, 1]} : vector<8x128xf32> to vector<8x1xf32>
    %2 = vector.extract_strided_slice %0 {offsets = [0, 1], sizes = [8, 1], strides = [1, 1]} : vector<8x128xf32> to vector<8x1xf32>
    %3 = vector.extract_strided_slice %0 {offsets = [0, 2], sizes = [8, 1], strides = [1, 1]} : vector<8x128xf32> to vector<8x1xf32>
    %4 = arith.fptosi %3 : vector<8x1xf32> to vector<8x1xi32>
    %5 = vector.extract_strided_slice %0 {offsets = [0, 3], sizes = [8, 1], strides = [1, 1]} : vector<8x128xf32> to vector<8x1xf32>
    %6 = arith.fptosi %5 : vector<8x1xf32> to vector<8x1xi32>
    %7 = vector.extract_strided_slice %0 {offsets = [0, 64], sizes = [8, 64], strides = [1, 1]} : vector<8x128xf32> to vector<8x64xf32>
    %c0_1 = arith.constant 0 : index
    %c0_2 = arith.constant 0 : index
    %8 = vector.load %arg1[%c0_1, %c0_2] : memref<8x32xf32, #tpu.memory_space<vmem>>, vector<8x32xf32>
    %c0_3 = arith.constant 0 : index
    %c0_4 = arith.constant 0 : index
    %c0_5 = arith.constant 0 : index
    %9 = vector.load %arg2[%c0_3, %c0_4, %c0_5] : memref<8x64x32xbf16, #tpu.memory_space<vmem>>, vector<8x64x32xbf16>
    %10 = arith.extf %9 : vector<8x64x32xbf16> to vector<8x64x32xf32>
    %c0_6 = arith.constant 0 : index
    %c0_7 = arith.constant 0 : index
    %11 = vector.load %arg5[%c0_6, %c0_7] : memref<8x32xf32, #tpu.memory_space<vmem>>, vector<8x32xf32>
    %12 = vector.shape_cast %11 : vector<8x32xf32> to vector<1x8x32xf32>
    %13 = vector.shape_cast %8 : vector<8x32xf32> to vector<8x1x32xf32>
    %14 = vector.broadcast %13 : vector<8x1x32xf32> to vector<8x8x32xf32>
    %15 = vector.broadcast %12 : vector<1x8x32xf32> to vector<8x8x32xf32>
    %16 = arith.mulf %14, %15 : vector<8x8x32xf32>
    %cst = arith.constant dense<0.000000e+00> : vector<8x8xf32>
    %17 = vector.multi_reduction <add>, %16, %cst [2] : vector<8x8x32xf32> to vector<8x8xf32>
    %c0_8 = arith.constant 0 : index
    %c0_9 = arith.constant 0 : index
    %18 = vector.load %arg7[%c0_8, %c0_9] : memref<1x128xf32, #tpu.memory_space<vmem>>, vector<1x8xf32>
    %19 = vector.broadcast %18 : vector<1x8xf32> to vector<8x8xf32>
    %20 = arith.addf %17, %19 : vector<8x8xf32>
    %c0_10 = arith.constant 0 : index
    %c0_11 = arith.constant 0 : index
    %21 = vector.load %arg6[%c0_10, %c0_11] : memref<2x32xf32, #tpu.memory_space<vmem>>, vector<1x32xf32>
    %22 = vector.shape_cast %21 : vector<1x32xf32> to vector<1x1x32xf32>
    %c1 = arith.constant 1 : index
    %c0_12 = arith.constant 0 : index
    %23 = vector.load %arg6[%c1, %c0_12] : memref<2x32xf32, #tpu.memory_space<vmem>>, vector<1x32xf32>
    %24 = vector.shape_cast %23 : vector<1x32xf32> to vector<1x1x32xf32>
    %25 = vector.broadcast %22 : vector<1x1x32xf32> to vector<8x64x32xf32>
    %26 = arith.mulf %10, %25 : vector<8x64x32xf32>
    %cst_13 = arith.constant dense<0.000000e+00> : vector<8x64xf32>
    %27 = vector.multi_reduction <add>, %26, %cst_13 [2] : vector<8x64x32xf32> to vector<8x64xf32>
    %c0_14 = arith.constant 0 : index
    %c8 = arith.constant 8 : index
    %28 = vector.load %arg7[%c0_14, %c8] : memref<1x128xf32, #tpu.memory_space<vmem>>, vector<1x1xf32>
    %29 = vector.broadcast %28 : vector<1x1xf32> to vector<8x64xf32>
    %30 = arith.addf %27, %29 : vector<8x64xf32>
    %31 = vector.broadcast %24 : vector<1x1x32xf32> to vector<8x64x32xf32>
    %32 = arith.mulf %10, %31 : vector<8x64x32xf32>
    %cst_15 = arith.constant dense<0.000000e+00> : vector<8x64xf32>
    %33 = vector.multi_reduction <add>, %32, %cst_15 [2] : vector<8x64x32xf32> to vector<8x64xf32>
    %c0_16 = arith.constant 0 : index
    %c9 = arith.constant 9 : index
    %34 = vector.load %arg7[%c0_16, %c9] : memref<1x128xf32, #tpu.memory_space<vmem>>, vector<1x1xf32>
    %35 = vector.broadcast %34 : vector<1x1xf32> to vector<8x64xf32>
    %36 = arith.addf %33, %35 : vector<8x64xf32>
    %cst_17 = arith.constant 1.000000e+00 : f32
    %37 = vector.broadcast %cst_17 : f32 to vector<8x1xf32>
    %38 = arith.addf %1, %37 : vector<8x1xf32>
    %cst_18 = arith.constant 5.000000e-01 : f32
    %39 = vector.broadcast %cst_18 : f32 to vector<8x1xf32>
    %40 = arith.mulf %38, %39 : vector<8x1xf32>
    %cst_19 = arith.constant 8.000000e+00 : f32
    %41 = vector.broadcast %cst_19 : f32 to vector<8x1xf32>
    %42 = arith.mulf %40, %41 : vector<8x1xf32>
    %43 = math.floor %42 : vector<8x1xf32>
    %cst_20 = arith.constant 0.000000e+00 : f32
    %cst_21 = arith.constant 7.000000e+00 : f32
    %44 = vector.broadcast %cst_20 : f32 to vector<8x1xf32>
    %45 = arith.maximumf %44, %43 : vector<8x1xf32>
    %46 = vector.broadcast %cst_21 : f32 to vector<8x1xf32>
    %47 = arith.minimumf %46, %45 : vector<8x1xf32>
    %48 = arith.fptosi %47 : vector<8x1xf32> to vector<8x1xi32>
    %49 = tpu.iota {dimensions = array<i32: 1>} : vector<8x8xi32>
    %50 = vector.broadcast %48 : vector<8x1xi32> to vector<8x8xi32>
    %51 = arith.cmpi eq, %49, %50 : vector<8x8xi32>
    %52 = arith.extui %51 : vector<8x8xi1> to vector<8x8xi32>
    %53 = arith.sitofp %52 : vector<8x8xi32> to vector<8x8xf32>
    %cst_22 = arith.constant dense<0xFF800000> : vector<8xf32>
    %54 = vector.multi_reduction <maximumf>, %20, %cst_22 [1] : vector<8x8xf32> to vector<8xf32>
    %55 = vector.shape_cast %54 : vector<8xf32> to vector<8x1xf32>
    %56 = vector.broadcast %55 : vector<8x1xf32> to vector<8x8xf32>
    %57 = arith.subf %20, %56 : vector<8x8xf32>
    %58 = math.exp %57 : vector<8x8xf32>
    %cst_23 = arith.constant dense<0.000000e+00> : vector<8xf32>
    %59 = vector.multi_reduction <add>, %58, %cst_23 [1] : vector<8x8xf32> to vector<8xf32>
    %60 = vector.shape_cast %59 : vector<8xf32> to vector<8x1xf32>
    %61 = math.log %60 : vector<8x1xf32>
    %62 = arith.addf %55, %61 : vector<8x1xf32>
    %63 = arith.mulf %53, %20 : vector<8x8xf32>
    %cst_24 = arith.constant dense<0.000000e+00> : vector<8xf32>
    %64 = vector.multi_reduction <add>, %63, %cst_24 [1] : vector<8x8xf32> to vector<8xf32>
    %65 = vector.shape_cast %64 : vector<8xf32> to vector<8x1xf32>
    %66 = arith.subf %62, %65 : vector<8x1xf32>
    %67 = tpu.iota {dimensions = array<i32: 1>} : vector<8x64xi32>
    %68 = vector.broadcast %4 : vector<8x1xi32> to vector<8x64xi32>
    %69 = arith.cmpi eq, %67, %68 : vector<8x64xi32>
    %70 = arith.extui %69 : vector<8x64xi1> to vector<8x64xi32>
    %71 = arith.sitofp %70 : vector<8x64xi32> to vector<8x64xf32>
    %72 = arith.mulf %30, %71 : vector<8x64xf32>
    %cst_25 = arith.constant dense<0.000000e+00> : vector<8xf32>
    %73 = vector.multi_reduction <add>, %72, %cst_25 [1] : vector<8x64xf32> to vector<8xf32>
    %74 = vector.shape_cast %73 : vector<8xf32> to vector<8x1xf32>
    %cst_26 = arith.constant 0.000000e+00 : f32
    %75 = vector.broadcast %cst_26 : f32 to vector<8x1xf32>
    %76 = arith.maximumf %74, %75 : vector<8x1xf32>
    %77 = arith.mulf %74, %2 : vector<8x1xf32>
    %78 = arith.subf %76, %77 : vector<8x1xf32>
    %79 = math.absf %74 : vector<8x1xf32>
    %cst_27 = arith.constant 0.000000e+00 : f32
    %80 = vector.broadcast %cst_27 : f32 to vector<8x1xf32>
    %81 = arith.subf %80, %79 : vector<8x1xf32>
    %82 = math.exp %81 : vector<8x1xf32>
    %83 = math.log1p %82 : vector<8x1xf32>
    %84 = arith.addf %78, %83 : vector<8x1xf32>
    %cst_28 = arith.constant 0.000000e+00 : f32
    %85 = vector.broadcast %cst_28 : f32 to vector<8x64xf32>
    %86 = arith.cmpf oge, %7, %85 : vector<8x64xf32>
    %cst_29 = arith.constant 0.000000e+00 : f32
    %87 = vector.broadcast %cst_29 : f32 to vector<8x64xf32>
    %88 = arith.select %86, %7, %87 : vector<8x64xi1>, vector<8x64xf32>
    %cst_30 = arith.constant 0.000000e+00 : f32
    %89 = vector.broadcast %cst_30 : f32 to vector<8x64xf32>
    %90 = arith.maximumf %36, %89 : vector<8x64xf32>
    %91 = arith.mulf %36, %88 : vector<8x64xf32>
    %92 = arith.subf %90, %91 : vector<8x64xf32>
    %93 = math.absf %36 : vector<8x64xf32>
    %cst_31 = arith.constant 0.000000e+00 : f32
    %94 = vector.broadcast %cst_31 : f32 to vector<8x64xf32>
    %95 = arith.subf %94, %93 : vector<8x64xf32>
    %96 = math.exp %95 : vector<8x64xf32>
    %97 = math.log1p %96 : vector<8x64xf32>
    %98 = arith.addf %92, %97 : vector<8x64xf32>
    %cst_32 = arith.constant 0.000000e+00 : f32
    %99 = vector.broadcast %cst_32 : f32 to vector<8x64xf32>
    %100 = arith.select %86, %98, %99 : vector<8x64xi1>, vector<8x64xf32>
    %cst_33 = arith.constant dense<0.000000e+00> : vector<8xf32>
    %101 = vector.multi_reduction <add>, %100, %cst_33 [1] : vector<8x64xf32> to vector<8xf32>
    %102 = vector.shape_cast %101 : vector<8xf32> to vector<8x1xf32>
    %103 = arith.extui %86 : vector<8x64xi1> to vector<8x64xi32>
    %104 = arith.sitofp %103 : vector<8x64xi32> to vector<8x64xf32>
    %cst_34 = arith.constant dense<0.000000e+00> : vector<8xf32>
    %105 = vector.multi_reduction <add>, %104, %cst_34 [1] : vector<8x64xf32> to vector<8xf32>
    %106 = vector.shape_cast %105 : vector<8xf32> to vector<8x1xf32>
    %c0_35 = arith.constant 0 : index
    %c0_36 = arith.constant 0 : index
    %107 = vector.load %arg3[%c0_35, %c0_36] : memref<8x1024xf32, #tpu.memory_space<vmem>>, vector<8x1024xf32>
    %108 = tpu.iota {dimensions = array<i32: 1>} : vector<8x1024xi32>
    %109 = vector.broadcast %6 : vector<8x1xi32> to vector<8x1024xi32>
    %110 = arith.cmpi eq, %108, %109 : vector<8x1024xi32>
    %111 = arith.extui %110 : vector<8x1024xi1> to vector<8x1024xi32>
    %112 = arith.sitofp %111 : vector<8x1024xi32> to vector<8x1024xf32>
    %113 = arith.mulf %112, %107 : vector<8x1024xf32>
    %cst_37 = arith.constant dense<0.000000e+00> : vector<8xf32>
    %114 = vector.multi_reduction <add>, %113, %cst_37 [1] : vector<8x1024xf32> to vector<8xf32>
    %115 = vector.shape_cast %114 : vector<8xf32> to vector<8x1xf32>
    %cst_38 = arith.constant dense<0xFF800000> : vector<8xf32>
    %116 = vector.multi_reduction <maximumf>, %107, %cst_38 [1] : vector<8x1024xf32> to vector<8xf32>
    %117 = vector.shape_cast %116 : vector<8xf32> to vector<8x1xf32>
    %118 = vector.broadcast %117 : vector<8x1xf32> to vector<8x1024xf32>
    %119 = arith.subf %107, %118 : vector<8x1024xf32>
    %120 = math.exp %119 : vector<8x1024xf32>
    %cst_39 = arith.constant dense<0.000000e+00> : vector<8xf32>
    %121 = vector.multi_reduction <add>, %120, %cst_39 [1] : vector<8x1024xf32> to vector<8xf32>
    %122 = vector.shape_cast %121 : vector<8xf32> to vector<8x1xf32>
    %123 = math.log %122 : vector<8x1xf32>
    %124 = arith.addf %117, %123 : vector<8x1xf32>
    %125 = arith.subf %124, %115 : vector<8x1xf32>
    %cst_40 = arith.constant 0.000000e+00 : f32
    %126 = vector.broadcast %cst_40 : f32 to vector<8x115xf32>
    %127 = tpu.concatenate %20, %66, %84, %102, %106, %125, %126 in 1 : vector<8x8xf32>, vector<8x1xf32>, vector<8x1xf32>, vector<8x1xf32>, vector<8x1xf32>, vector<8x1xf32>, vector<8x115xf32> -> vector<8x128xf32>
    %c0_41 = arith.constant 0 : index
    %c0_42 = arith.constant 0 : index
    %128 = vector.load %arg8[%c0_41, %c0_42] : memref<8x128xf32, #tpu.memory_space<vmem>>, vector<8x128xf32>
    tpu.vector_store %arg8[%c0_41, %c0_42], %127 {strides = array<i32>} : memref<8x128xf32, #tpu.memory_space<vmem>>, vector<8x128xf32>,
    return
  }
  func.func @transform_0(%arg0: i32) -> (i32, i32) {
    %c0_i32 = arith.constant 0 : i32
    %c0_i32_0 = arith.constant 0 : i32
    return %arg0, %c0_i32 : i32, i32
  }
  func.func @transform_1(%arg0: i32) -> (i32, i32, i32) {
    %c0_i32 = arith.constant 0 : i32
    %c0_i32_0 = arith.constant 0 : i32
    %c0_i32_1 = arith.constant 0 : i32
    return %arg0, %c0_i32, %c0_i32_0 : i32, i32, i32
  }
  func.func @transform_2(%arg0: i32) -> (i32, i32) {
    %c0_i32 = arith.constant 0 : i32
    %c0_i32_0 = arith.constant 0 : i32
    return %arg0, %c0_i32 : i32, i32
  }
  func.func @transform_3(%arg0: i32) -> (i32, i32) {
    %c0_i32 = arith.constant 0 : i32
    %c0_i32_0 = arith.constant 0 : i32
    return %arg0, %c0_i32 : i32, i32
  }
  func.func @transform_4(%arg0: i32) -> (i32, i32) {
    %c0_i32 = arith.constant 0 : i32
    %c0_i32_0 = arith.constant 0 : i32
    %c0_i32_1 = arith.constant 0 : i32
    return %c0_i32, %c0_i32_0 : i32, i32
  }
  func.func @transform_5(%arg0: i32) -> (i32, i32) {
    %c0_i32 = arith.constant 0 : i32
    %c0_i32_0 = arith.constant 0 : i32
    %c0_i32_1 = arith.constant 0 : i32
    return %c0_i32, %c0_i32_0 : i32, i32
  }
  func.func @transform_6(%arg0: i32) -> (i32, i32) {
    %c0_i32 = arith.constant 0 : i32
    %c0_i32_0 = arith.constant 0 : i32
    %c0_i32_1 = arith.constant 0 : i32
    return %c0_i32, %c0_i32_0 : i32, i32
  }
  func.func @transform_7(%arg0: i32) -> (i32, i32) {
    %c0_i32 = arith.constant 0 : i32
    %c0_i32_0 = arith.constant 0 : i32
    return %arg0, %c0_i32 : i32, i32
  }
}

</mosaic_0001>

<llo_original>
// kernel: tpu_custom_call.1
$region0: #{tpu_custom_call.1}
  #allocation0 [shape = 'u32[]', space=smem, size = 0x4, offset = 0x4, fixed_abs, tag = 'smem constant byte address 0x4 - core index']
  #allocation1 [shape = 'u32[72,128]{1,0:T(1,128)}', space=vmem, size = 0x9000, scoped, tag = 'internal scratch']
  %s0 = inlined_call_operand.vmem [shape: f32[16,32], index: 0, kind: input, shape index: {}]
  %s1 = inlined_call_operand.vmem [shape: bf16[16,64,32], index: 1, kind: input, shape index: {}]
  %s2 = inlined_call_operand.vmem [shape: f32[16,1024], index: 2, kind: input, shape index: {}]
  %s3 = inlined_call_operand.vmem [shape: f32[16,128], index: 3, kind: input, shape index: {}]
  %s4 = inlined_call_operand.vmem [shape: f32[8,32], index: 4, kind: input, shape index: {}]
  %s5 = inlined_call_operand.vmem [shape: f32[2,32], index: 5, kind: input, shape index: {}]
  %s6 = inlined_call_operand.vmem [shape: f32[1,128], index: 6, kind: input, shape index: {}]
  %s7 = inlined_call_operand.hbm [shape: f32[16,128], index: 7, kind: output, shape index: {}]
  %s8 = sld [smem:[#allocation0]]
  $region61: #{tpu_custom_call.1} parent=0
    _
  %s10 = ssub.s32 1, %s8
  %s11 = scalar_select 0, %s10, %s8
  $region1: #{tpu_custom_call.1} parent=0
    #allocation2 [shape = 'u8[8192]{0}', space=vmem, size = 0x2000, scoped, tag = 'output window, operand 0']
    #allocation3 [shape = 's32[2]{0}', space=sflag, size = 0x8, scoped, tag = 'scoped memory for tpu_custom_call.1']
    %12 = vsyncpa [#allocation3], 0
    %s13 = scalar_lea.sflag [#allocation3], 1
    %14 = vsyncpa %s13, 0
    loop: start=0, step=1, limit=4
    $region2: #{tpu_custom_call.1} parent=1 // loop_pre_header
      _
    $region3: #{tpu_custom_call.1} parent=1 // loop_header
      %s16 = sphi 0, %s20
      %p17 = scmp.ge.s32.totalorder %s16, 4
      %s26 = sphi 0, %s28
      %s29 = sphi 0, %s26
      %s30 = sphi 0, %s29
      %s46 = sphi 0, %s30
      %s52 = sphi 0, %s54
      %s55 = sphi 0, %s52
      %s56 = sphi 0, %s55
      %s72 = sphi 0, %s56
      %s78 = sphi 0, %s80
      %s81 = sphi 0, %s78
      %s82 = sphi 0, %s81
      %s98 = sphi 0, %s82
      %s104 = sphi 0, %s106
      %s107 = sphi 0, %s104
      %s108 = sphi 0, %s107
      %s124 = sphi 0, %s108
      %s128 = sphi 0, %s128
      %s130 = sphi 0, %s128
      %s131 = sphi 0, %s130
      %s145 = sphi 0, %s131
      %s149 = sphi 0, %s149
      %s151 = sphi 0, %s149
      %s152 = sphi 0, %s151
      %s166 = sphi 0, %s152
      %s170 = sphi 0, %s170
      %s172 = sphi 0, %s170
      %s173 = sphi 0, %s172
      %s187 = sphi 0, %s173
      %s193 = sphi 0, %s195
      %s196 = sphi 0, %s193
      %s197 = sphi 0, %s196
      %s213 = sphi 0, %s197
    $region4: #{tpu_custom_call.1} parent=1 // loop_header_branch
      %19 = sbr.rel (%p17) target = $region8
    $region5: #{tpu_custom_call.1} parent=1 // loop_body
      %s21 = ssub.s32 %s16, 1
      %s22 = ssub.s32 %s16, 2
      %s23 = sadd.s32 %s16, 1
      %s24 = ssub.s32 %s16, %s23
      %p25 = scmp.eq.s32.totalorder %s24, 0
      %s27 = sadd.s32 %s26, 1
      %s28 = scalar_select %p25, %s26, %s27
      %p31 = pneg %p25
      %p32 = scmp.eq.s32.totalorder %s16, 1
      %p33 = por %p31, %p32
      %p34 = scmp.ne.s32.totalorder %s26, %s29
      %p35 = scmp.eq.s32.totalorder %s16, 0
      %p36 = por %p34, %p35
      %p37 = scmp.ne.s32.totalorder %s26, %s29
      %p38 = scmp.eq.s32.totalorder %s21, 1
      %p39 = por %p37, %p38
      %p40 = scmp.ne.s32.totalorder %s29, %s30
      %p41 = scmp.eq.s32.totalorder %s21, 0
      %p42 = por %p40, %p41
      %p43 = scmp.ne.s32.totalorder %s29, %s30
      %p44 = scmp.eq.s32.totalorder %s22, 1
      %p45 = por %p43, %p44
      %p47 = scmp.ne.s32.totalorder %s30, %s46
      %p48 = scmp.eq.s32.totalorder %s22, 0
      %p49 = por %p47, %p48
      %s50 = ssub.s32 %s16, %s23
      %p51 = scmp.eq.s32.totalorder %s50, 0
      %s53 = sadd.s32 %s52, 1
      %s54 = scalar_select %p51, %s52, %s53
      %p57 = pneg %p51
      %p58 = scmp.eq.s32.totalorder %s16, 1
      %p59 = por %p57, %p58
      %p60 = scmp.ne.s32.totalorder %s52, %s55
      %p61 = scmp.eq.s32.totalorder %s16, 0
      %p62 = por %p60, %p61
      %p63 = scmp.ne.s32.totalorder %s52, %s55
      %p64 = scmp.eq.s32.totalorder %s21, 1
      %p65 = por %p63, %p64
      %p66 = scmp.ne.s32.totalorder %s55, %s56
      %p67 = scmp.eq.s32.totalorder %s21, 0
      %p68 = por %p66, %p67
      %p69 = scmp.ne.s32.totalorder %s55, %s56
      %p70 = scmp.eq.s32.totalorder %s22, 1
      %p71 = por %p69, %p70
      %p73 = scmp.ne.s32.totalorder %s56, %s72
      %p74 = scmp.eq.s32.totalorder %s22, 0
      %p75 = por %p73, %p74
      %s76 = ssub.s32 %s16, %s23
      %p77 = scmp.eq.s32.totalorder %s76, 0
      %s79 = sadd.s32 %s78, 1
      %s80 = scalar_select %p77, %s78, %s79
      %p83 = pneg %p77
      %p84 = scmp.eq.s32.totalorder %s16, 1
      %p85 = por %p83, %p84
      %p86 = scmp.ne.s32.totalorder %s78, %s81
      %p87 = scmp.eq.s32.totalorder %s16, 0
      %p88 = por %p86, %p87
      %p89 = scmp.ne.s32.totalorder %s78, %s81
      %p90 = scmp.eq.s32.totalorder %s21, 1
      %p91 = por %p89, %p90
      %p92 = scmp.ne.s32.totalorder %s81, %s82
      %p93 = scmp.eq.s32.totalorder %s21, 0
      %p94 = por %p92, %p93
      %p95 = scmp.ne.s32.totalorder %s81, %s82
      %p96 = scmp.eq.s32.totalorder %s22, 1
      %p97 = por %p95, %p96
      %p99 = scmp.ne.s32.totalorder %s82, %s98
      %p100 = scmp.eq.s32.totalorder %s22, 0
      %p101 = por %p99, %p100
      %s102 = ssub.s32 %s16, %s23
      %p103 = scmp.eq.s32.totalorder %s102, 0
      %s105 = sadd.s32 %s104, 1
      %s106 = scalar_select %p103, %s104, %s105
      %p109 = pneg %p103
      %p110 = scmp.eq.s32.totalorder %s16, 1
      %p111 = por %p109, %p110
      %p112 = scmp.ne.s32.totalorder %s104, %s107
      %p113 = scmp.eq.s32.totalorder %s16, 0
      %p114 = por %p112, %p113
      %p115 = scmp.ne.s32.totalorder %s104, %s107
      %p116 = scmp.eq.s32.totalorder %s21, 1
      %p117 = por %p115, %p116
      %p118 = scmp.ne.s32.totalorder %s107, %s108
      %p119 = scmp.eq.s32.totalorder %s21, 0
      %p120 = por %p118, %p119
      %p121 = scmp.ne.s32.totalorder %s107, %s108
      %p122 = scmp.eq.s32.totalorder %s22, 1
      %p123 = por %p121, %p122
      %p125 = scmp.ne.s32.totalorder %s108, %s124
      %p126 = scmp.eq.s32.totalorder %s22, 0
      %p127 = por %p125, %p126
      %s129 = sadd.s32 %s128, 1
      %p132 = scmp.eq.s32.totalorder %s16, 1
      %p133 = scmp.ne.s32.totalorder %s128, %s130
      %p134 = scmp.eq.s32.totalorder %s16, 0
      %p135 = por %p133, %p134
      %p136 = scmp.ne.s32.totalorder %s128, %s130
      %p137 = scmp.eq.s32.totalorder %s21, 1
      %p138 = por %p136, %p137
      %p139 = scmp.ne.s32.totalorder %s130, %s131
      %p140 = scmp.eq.s32.totalorder %s21, 0
      %p141 = por %p139, %p140
      %p142 = scmp.ne.s32.totalorder %s130, %s131
      %p143 = scmp.eq.s32.totalorder %s22, 1
      %p144 = por %p142, %p143
      %p146 = scmp.ne.s32.totalorder %s131, %s145
      %p147 = scmp.eq.s32.totalorder %s22, 0
      %p148 = por %p146, %p147
      %s150 = sadd.s32 %s149, 1
      %p153 = scmp.eq.s32.totalorder %s16, 1
      %p154 = scmp.ne.s32.totalorder %s149, %s151
      %p155 = scmp.eq.s32.totalorder %s16, 0
      %p156 = por %p154, %p155
      %p157 = scmp.ne.s32.totalorder %s149, %s151
      %p158 = scmp.eq.s32.totalorder %s21, 1
      %p159 = por %p157, %p158
      %p160 = scmp.ne.s32.totalorder %s151, %s152
      %p161 = scmp.eq.s32.totalorder %s21, 0
      %p162 = por %p160, %p161
      %p163 = scmp.ne.s32.totalorder %s151, %s152
      %p164 = scmp.eq.s32.totalorder %s22, 1
      %p165 = por %p163, %p164
      %p167 = scmp.ne.s32.totalorder %s152, %s166
      %p168 = scmp.eq.s32.totalorder %s22, 0
      %p169 = por %p167, %p168
      %s171 = sadd.s32 %s170, 1
      %p174 = scmp.eq.s32.totalorder %s16, 1
      %p175 = scmp.ne.s32.totalorder %s170, %s172
      %p176 = scmp.eq.s32.totalorder %s16, 0
      %p177 = por %p175, %p176
      %p178 = scmp.ne.s32.totalorder %s170, %s172
      %p179 = scmp.eq.s32.totalorder %s21, 1
      %p180 = por %p178, %p179
      %p181 = scmp.ne.s32.totalorder %s172, %s173
      %p182 = scmp.eq.s32.totalorder %s21, 0
      %p183 = por %p181, %p182
      %p184 = scmp.ne.s32.totalorder %s172, %s173
      %p185 = scmp.eq.s32.totalorder %s22, 1
      %p186 = por %p184, %p185
      %p188 = scmp.ne.s32.totalorder %s173, %s187
      %p189 = scmp.eq.s32.totalorder %s22, 0
      %p190 = por %p188, %p189
      %s191 = ssub.s32 %s16, %s23
      %p192 = scmp.eq.s32.totalorder %s191, 0
      %s194 = sadd.s32 %s193, 1
      %s195 = scalar_select %p192, %s193, %s194
      %p198 = pneg %p192
      %p199 = scmp.eq.s32.totalorder %s16, 1
      %p200 = por %p198, %p199
      %p201 = scmp.ne.s32.totalorder %s193, %s196
      %p202 = scmp.eq.s32.totalorder %s16, 0
      %p203 = por %p201, %p202
      %p204 = scmp.ne.s32.totalorder %s193, %s196
      %p205 = scmp.eq.s32.totalorder %s21, 1
      %p206 = por %p204, %p205
      %p207 = scmp.ne.s32.totalorder %s196, %s197
      %p208 = scmp.eq.s32.totalorder %s21, 0
      %p209 = por %p207, %p208
      %p210 = scmp.ne.s32.totalorder %s196, %s197
      %p211 = scmp.eq.s32.totalorder %s22, 1
      %p212 = por %p210, %p211
      %p214 = scmp.ne.s32.totalorder %s197, %s213
      %p215 = scmp.eq.s32.totalorder %s22, 0
      %p216 = por %p214, %p215
      %p217 = scmp.le.s32.totalorder 1, %s16
      %p218 = scmp.lt.s32.totalorder %s16, 3
      %p219 = pnand %p217, %p218
      %p220 = pneg %p219
      // Predicated region
      $region9: #{tpu_custom_call.1} parent=5 // pred_check
        _
      $region10: #{tpu_custom_call.1} parent=5 // pred_check_branch
        %222 = sbr.rel (%p219) target = $region12
      $region11: #{tpu_custom_call.1} parent=5 // pred_region
        %s223 = ssub.s32 %s16, 1
        // Predicated region
        $region13: #{tpu_custom_call.1} parent=11 // pred_check
          %p224 = pneg %p141
        $region14: #{tpu_custom_call.1} parent=11 // pred_check_branch
          %226 = sbr.rel (%p224) target = $region16
        $region15: #{tpu_custom_call.1} parent=11 // pred_region
          _
        $region16: #{tpu_custom_call.1} parent=11 // pred_fallthru
          _
        // Predicated region
        $region17: #{tpu_custom_call.1} parent=11 // pred_check
          %p227 = pneg %p162
        $region18: #{tpu_custom_call.1} parent=11 // pred_check_branch
          %229 = sbr.rel (%p227) target = $region20
        $region19: #{tpu_custom_call.1} parent=11 // pred_region
          _
        $region20: #{tpu_custom_call.1} parent=11 // pred_fallthru
          _
        // Predicated region
        $region21: #{tpu_custom_call.1} parent=11 // pred_check
          %p230 = pneg %p183
        $region22: #{tpu_custom_call.1} parent=11 // pred_check_branch
          %232 = sbr.rel (%p230) target = $region24
        $region23: #{tpu_custom_call.1} parent=11 // pred_region
          _
        $region24: #{tpu_custom_call.1} parent=11 // pred_fallthru
          _
      $region12: #{tpu_custom_call.1} parent=5 // pred_fallthru
        _
      %p233 = scmp.lt.s32.totalorder %s16, 2
      // Predicated region
      $region25: #{tpu_custom_call.1} parent=5 // pred_check
        %p234 = pneg %p233
      $region26: #{tpu_custom_call.1} parent=5 // pred_check_branch
        %236 = sbr.rel (%p234) target = $region28
      $region27: #{tpu_custom_call.1} parent=5 // pred_region
        // Predicated region
        $region29: #{tpu_custom_call.1} parent=27 // pred_check
          %p237 = pneg %p36
        $region30: #{tpu_custom_call.1} parent=27 // pred_check_branch
          %239 = sbr.rel (%p237) target = $region32
        $region31: #{tpu_custom_call.1} parent=27 // pred_region
          %p240 = scmp.lt.s32.totalorder %s16, 1
          %s241 = scalar_select %p240, %s16, 1
          %s242 = smul.addr %s241, 8
          %s243 = scalar_lea.vmem %s0, %s242
        $region32: #{tpu_custom_call.1} parent=27 // pred_fallthru
          _
        // Predicated region
        $region33: #{tpu_custom_call.1} parent=27 // pred_check
          %p244 = pneg %p62
        $region34: #{tpu_custom_call.1} parent=27 // pred_check_branch
          %246 = sbr.rel (%p244) target = $region36
        $region35: #{tpu_custom_call.1} parent=27 // pred_region
          %s247 = smul.u32 8, %s16
          %p248 = scmp.lt.s32.totalorder %s247, 15
          %s249 = scalar_select %p248, %s247, 15
          %s250 = smul.addr %s249, 8
          %s251 = smul.addr %s250, 4
          %s252 = scalar_lea.vmem %s1, %s251
          %s253 = smul.u32 8, %s16
        $region36: #{tpu_custom_call.1} parent=27 // pred_fallthru
          _
        // Predicated region
        $region37: #{tpu_custom_call.1} parent=27 // pred_check
          %p254 = pneg %p88
        $region38: #{tpu_custom_call.1} parent=27 // pred_check_branch
          %256 = sbr.rel (%p254) target = $region40
        $region39: #{tpu_custom_call.1} parent=27 // pred_region
          %p257 = scmp.lt.s32.totalorder %s16, 1
          %s258 = scalar_select %p257, %s16, 1
          %s259 = smul.addr %s258, 8
          %s260 = smul.addr %s259, 8
          %s261 = scalar_lea.vmem %s2, %s260
        $region40: #{tpu_custom_call.1} parent=27 // pred_fallthru
          _
        // Predicated region
        $region41: #{tpu_custom_call.1} parent=27 // pred_check
          %p262 = pneg %p114
        $region42: #{tpu_custom_call.1} parent=27 // pred_check_branch
          %264 = sbr.rel (%p262) target = $region44
        $region43: #{tpu_custom_call.1} parent=27 // pred_region
          %p265 = scmp.lt.s32.totalorder %s16, 1
          %s266 = scalar_select %p265, %s16, 1
          %s267 = smul.addr %s266, 8
          %s268 = scalar_lea.vmem %s3, %s267
        $region44: #{tpu_custom_call.1} parent=27 // pred_fallthru
          _
      $region28: #{tpu_custom_call.1} parent=5 // pred_fallthru
        _
      %p269 = scmp.le.s32.totalorder 1, %s16
      %p270 = scmp.lt.s32.totalorder %s16, 3
      %p271 = pnand %p269, %p270
      %p272 = pneg %p271
      // Predicated region
      $region45: #{tpu_custom_call.1} parent=5 // pred_check
        _
      $region46: #{tpu_custom_call.1} parent=5 // pred_check_branch
        %274 = sbr.rel (%p271) target = $region48
      $region47: #{tpu_custom_call.1} parent=5 // pred_region
        %s275 = ssub.s32 %s16, 1
        %p276 = scmp.lt.s32.totalorder %s21, 1
        %s277 = scalar_select %p276, %s21, 1
        %s278 = smul.addr %s277, 8
        %s279 = scalar_lea.vmem %s0, %s278
        %p280 = pneg %p42
        %p281 = pneg %p39
        %s282 = smul.u32 8, %s21
        %p283 = scmp.lt.s32.totalorder %s282, 15
        %s284 = scalar_select %p283, %s282, 15
        %s285 = smul.addr %s284, 8
        %s286 = smul.addr %s285, 4
        %s287 = scalar_lea.vmem %s1, %s286
        %p288 = pneg %p68
        %p289 = pneg %p65
        %p290 = scmp.lt.s32.totalorder %s21, 1
        %s291 = scalar_select %p290, %s21, 1
        %s292 = smul.addr %s291, 8
        %s293 = smul.addr %s292, 8
        %s294 = scalar_lea.vmem %s2, %s293
        %p295 = pneg %p94
        %p296 = pneg %p91
        %p297 = scmp.lt.s32.totalorder %s21, 1
        %s298 = scalar_select %p297, %s21, 1
        %s299 = smul.addr %s298, 8
        %s300 = scalar_lea.vmem %s3, %s299
        %p301 = pneg %p120
        %p302 = pneg %p117
        %p303 = pneg %p141
        %p304 = pneg %p138
        %p305 = pneg %p162
        %p306 = pneg %p159
        %p307 = pneg %p183
        %p308 = pneg %p180
        %p309 = pneg %p209
        %p310 = pneg %p206
        %s311 = sand.u32 %s196, 1
        %s312 = scalar_lea.sflag [#allocation3], %s311
        %s313 = sand.u32 %s196, 1
        %s314 = smul.addr %s313, 8
        %s315 = scalar_lea.vmem [#allocation2], %s314
        %p316 = scmp.lt.s32.totalorder %s21, 1
        %s317 = scalar_select %p316, %s21, 1
        %s318 = smul.addr %s317, 8
        %s319 = scalar_lea.vmem %s0, %s318
        %s320 = smul.u32 8, %s21
        %p321 = scmp.lt.s32.totalorder %s320, 15
        %s322 = scalar_select %p321, %s320, 15
        %s323 = smul.addr %s322, 8
        %s324 = smul.addr %s323, 4
        %s325 = scalar_lea.vmem %s1, %s324
        %s326 = smul.u32 8, %s21
        %p327 = scmp.lt.s32.totalorder %s21, 1
        %s328 = scalar_select %p327, %s21, 1
        %s329 = smul.addr %s328, 8
        %s330 = smul.addr %s329, 8
        %s331 = scalar_lea.vmem %s2, %s330
        %p332 = scmp.lt.s32.totalorder %s21, 1
        %s333 = scalar_select %p332, %s21, 1
        %s334 = smul.addr %s333, 8
        %s335 = scalar_lea.vmem %s3, %s334
        %v336 = vld [vmem:[%s335] sm:$0xff]
        %v337 = vcvt.f32.s32.to.zero.pseudo %v336
        %v338 = vld [vmem:[%s319] sm:$0xff]
        %v339 = vld [vmem:[%s325] sm:$0xf]
        %v340 = vld [vmem:[%s325 + $0x4] sm:$0xf]
        %v341 = vld [vmem:[%s325 + $0x8] sm:$0xf]
        %v342 = vld [vmem:[%s325 + $0xc] sm:$0xf]
        %v343 = vld [vmem:[%s325 + $0x10] sm:$0xf]
        %v344 = vld [vmem:[%s325 + $0x14] sm:$0xf]
        %v345 = vld [vmem:[%s325 + $0x18] sm:$0xf]
        %v346 = vld [vmem:[%s325 + $0x1c] sm:$0xf]
        %v347 = vld [vmem:[%s325 + $0x20] sm:$0xf]
        %v348 = vld [vmem:[%s325 + $0x24] sm:$0xf]
        %v349 = vld [vmem:[%s325 + $0x28] sm:$0xf]
        %v350 = vld [vmem:[%s325 + $0x2c] sm:$0xf]
        %v351 = vld [vmem:[%s325 + $0x30] sm:$0xf]
        %v352 = vld [vmem:[%s325 + $0x34] sm:$0xf]
        %v353 = vld [vmem:[%s325 + $0x38] sm:$0xf]
        %v354 = vld [vmem:[%s325 + $0x3c] sm:$0xf]
        %v355 = vld [vmem:[%s325 + $0x40] sm:$0xf]
        %v356 = vld [vmem:[%s325 + $0x44] sm:$0xf]
        %v357 = vld [vmem:[%s325 + $0x48] sm:$0xf]
        %v358 = vld [vmem:[%s325 + $0x4c] sm:$0xf]
        %v359 = vld [vmem:[%s325 + $0x50] sm:$0xf]
        %v360 = vld [vmem:[%s325 + $0x54] sm:$0xf]
        %v361 = vld [vmem:[%s325 + $0x58] sm:$0xf]
        %v362 = vld [vmem:[%s325 + $0x5c] sm:$0xf]
        %v363 = vld [vmem:[%s325 + $0x60] sm:$0xf]
        %v364 = vld [vmem:[%s325 + $0x64] sm:$0xf]
        %v365 = vld [vmem:[%s325 + $0x68] sm:$0xf]
        %v366 = vld [vmem:[%s325 + $0x6c] sm:$0xf]
        %v367 = vld [vmem:[%s325 + $0x70] sm:$0xf]
        %v368 = vld [vmem:[%s325 + $0x74] sm:$0xf]
        %v369 = vld [vmem:[%s325 + $0x78] sm:$0xf]
        %v370 = vld [vmem:[%s325 + $0x7c] sm:$0xf]
        %v371 = vld [vmem:[%s325 + $0x80] sm:$0xf]
        %v372 = vld [vmem:[%s325 + $0x84] sm:$0xf]
        %v373 = vld [vmem:[%s325 + $0x88] sm:$0xf]
        %v374 = vld [vmem:[%s325 + $0x8c] sm:$0xf]
        %v375 = vld [vmem:[%s325 + $0x90] sm:$0xf]
        %v376 = vld [vmem:[%s325 + $0x94] sm:$0xf]
        %v377 = vld [vmem:[%s325 + $0x98] sm:$0xf]
        %v378 = vld [vmem:[%s325 + $0x9c] sm:$0xf]
        %v379 = vld [vmem:[%s325 + $0xa0] sm:$0xf]
        %v380 = vld [vmem:[%s325 + $0xa4] sm:$0xf]
        %v381 = vld [vmem:[%s325 + $0xa8] sm:$0xf]
        %v382 = vld [vmem:[%s325 + $0xac] sm:$0xf]
        %v383 = vld [vmem:[%s325 + $0xb0] sm:$0xf]
        %v384 = vld [vmem:[%s325 + $0xb4] sm:$0xf]
        %v385 = vld [vmem:[%s325 + $0xb8] sm:$0xf]
        %v386 = vld [vmem:[%s325 + $0xbc] sm:$0xf]
        %v387 = vld [vmem:[%s325 + $0xc0] sm:$0xf]
        %v388 = vld [vmem:[%s325 + $0xc4] sm:$0xf]
        %v389 = vld [vmem:[%s325 + $0xc8] sm:$0xf]
        %v390 = vld [vmem:[%s325 + $0xcc] sm:$0xf]
        %v391 = vld [vmem:[%s325 + $0xd0] sm:$0xf]
        %v392 = vld [vmem:[%s325 + $0xd4] sm:$0xf]
        %v393 = vld [vmem:[%s325 + $0xd8] sm:$0xf]
        %v394 = vld [vmem:[%s325 + $0xdc] sm:$0xf]
        %v395 = vld [vmem:[%s325 + $0xe0] sm:$0xf]
        %v396 = vld [vmem:[%s325 + $0xe4] sm:$0xf]
        %v397 = vld [vmem:[%s325 + $0xe8] sm:$0xf]
        %v398 = vld [vmem:[%s325 + $0xec] sm:$0xf]
        %v399 = vld [vmem:[%s325 + $0xf0] sm:$0xf]
        %v400 = vld [vmem:[%s325 + $0xf4] sm:$0xf]
        %v401 = vld [vmem:[%s325 + $0xf8] sm:$0xf]
        %v402 = vld [vmem:[%s325 + $0xfc] sm:$0xf]
        %v403 = vunpack.c.l.bf16 %v339
        %v404 = vunpack.c.l.bf16 %v340
        %v405 = vunpack.c.l.bf16 %v341
        %v406 = vunpack.c.l.bf16 %v342
        %v407 = vunpack.c.l.bf16 %v343
        %v408 = vunpack.c.l.bf16 %v344
        %v409 = vunpack.c.l.bf16 %v345
        %v410 = vunpack.c.l.bf16 %v346
        %v411 = vunpack.c.l.bf16 %v347
        %v412 = vunpack.c.l.bf16 %v348
        %v413 = vunpack.c.l.bf16 %v349
        %v414 = vunpack.c.l.bf16 %v350
        %v415 = vunpack.c.l.bf16 %v351
        %v416 = vunpack.c.l.bf16 %v352
        %v417 = vunpack.c.l.bf16 %v353
        %v418 = vunpack.c.l.bf16 %v354
        %v419 = vunpack.c.l.bf16 %v355
        %v420 = vunpack.c.l.bf16 %v356
        %v421 = vunpack.c.l.bf16 %v357
        %v422 = vunpack.c.l.bf16 %v358
        %v423 = vunpack.c.l.bf16 %v359
        %v424 = vunpack.c.l.bf16 %v360
        %v425 = vunpack.c.l.bf16 %v361
        %v426 = vunpack.c.l.bf16 %v362
        %v427 = vunpack.c.l.bf16 %v363
        %v428 = vunpack.c.l.bf16 %v364
        %v429 = vunpack.c.l.bf16 %v365
        %v430 = vunpack.c.l.bf16 %v366
        %v431 = vunpack.c.l.bf16 %v367
        %v432 = vunpack.c.l.bf16 %v368
        %v433 = vunpack.c.l.bf16 %v369
        %v434 = vunpack.c.l.bf16 %v370
        %v435 = vunpack.c.l.bf16 %v371
        %v436 = vunpack.c.l.bf16 %v372
        %v437 = vunpack.c.l.bf16 %v373
        %v438 = vunpack.c.l.bf16 %v374
        %v439 = vunpack.c.l.bf16 %v375
        %v440 = vunpack.c.l.bf16 %v376
        %v441 = vunpack.c.l.bf16 %v377
        %v442 = vunpack.c.l.bf16 %v378
        %v443 = vunpack.c.l.bf16 %v379
        %v444 = vunpack.c.l.bf16 %v380
        %v445 = vunpack.c.l.bf16 %v381
        %v446 = vunpack.c.l.bf16 %v382
        %v447 = vunpack.c.l.bf16 %v383
        %v448 = vunpack.c.l.bf16 %v384
        %v449 = vunpack.c.l.bf16 %v385
        %v450 = vunpack.c.l.bf16 %v386
        %v451 = vunpack.c.l.bf16 %v387
        %v452 = vunpack.c.l.bf16 %v388
        %v453 = vunpack.c.l.bf16 %v389
        %v454 = vunpack.c.l.bf16 %v390
        %v455 = vunpack.c.l.bf16 %v391
        %v456 = vunpack.c.l.bf16 %v392
        %v457 = vunpack.c.l.bf16 %v393
        %v458 = vunpack.c.l.bf16 %v394
        %v459 = vunpack.c.l.bf16 %v395
        %v460 = vunpack.c.l.bf16 %v396
        %v461 = vunpack.c.l.bf16 %v397
        %v462 = vunpack.c.l.bf16 %v398
        %v463 = vunpack.c.l.bf16 %v399
        %v464 = vunpack.c.l.bf16 %v400
        %v465 = vunpack.c.l.bf16 %v401
        %v466 = vunpack.c.l.bf16 %v402
        %v467 = vld [vmem:[%s4] sm:$0xff]
        %v469 = vrot.slane %v338, 1
        %v470 = vrot.slane %v338, 2
        %v471 = vrot.slane %v338, 3
        %v472 = vrot.slane %v338, 4
        %v473 = vrot.slane %v338, 5
        %v474 = vrot.slane %v338, 6
        %v475 = vrot.slane %v338, 7
        %v476 = vperm.slane %v338, 0
        %v477 = vperm.slane %v469, 0
        %v478 = vperm.slane %v470, 0
        %v479 = vperm.slane %v471, 0
        %v480 = vperm.slane %v472, 0
        %v481 = vperm.slane %v473, 0
        %v482 = vperm.slane %v474, 0
        %v483 = vperm.slane %v475, 0
        %v492 = vmul.f32 %v476, %v467
        %v493 = vmul.f32 %v477, %v467
        %v494 = vmul.f32 %v478, %v467
        %v495 = vmul.f32 %v479, %v467
        %v496 = vmul.f32 %v480, %v467
        %v497 = vmul.f32 %v481, %v467
        %v498 = vmul.f32 %v482, %v467
        %v499 = vmul.f32 %v483, %v467
        %vm500 = vcmask 261120
        %v501 = vsel %vm500, %v492, 0.0
        %502 = vadd.xlane.f32.xlu0 %v501
        %v503 = vpop.xlane.xlu0 %502
        %v504 = vsel %vm500, %v493, 0.0
        %505 = vadd.xlane.f32.xlu0 %v504
        %v506 = vpop.xlane.xlu0 %505
        %v507 = vsel %vm500, %v494, 0.0
        %508 = vadd.xlane.f32.xlu0 %v507
        %v509 = vpop.xlane.xlu0 %508
        %v510 = vsel %vm500, %v495, 0.0
        %511 = vadd.xlane.f32.xlu0 %v510
        %v512 = vpop.xlane.xlu0 %511
        %v513 = vsel %vm500, %v496, 0.0
        %514 = vadd.xlane.f32.xlu0 %v513
        %v515 = vpop.xlane.xlu0 %514
        %v516 = vsel %vm500, %v497, 0.0
        %517 = vadd.xlane.f32.xlu0 %v516
        %v518 = vpop.xlane.xlu0 %517
        %v519 = vsel %vm500, %v498, 0.0
        %520 = vadd.xlane.f32.xlu0 %v519
        %v521 = vpop.xlane.xlu0 %520
        %v522 = vsel %vm500, %v499, 0.0
        %523 = vadd.xlane.f32.xlu0 %v522
        %v524 = vpop.xlane.xlu0 %523
        %v525 = vld [vmem:[%s6] sm:$0x1]
        %v527 = vperm.slane %v525, 0
        %v528 = vlaneseq
        %v529 = vshrl.u32 %v528, 7
        %531 = vset.pattern.permute.xlu0 %v529
        %532 = vperm.xlu0 %531, %v527
        %v533 = vpop.permute.xlu0 %532
        %v535 = vadd.f32 %v503, %v533
        %v536 = vadd.f32 %v506, %v533
        %v537 = vadd.f32 %v509, %v533
        %v538 = vadd.f32 %v512, %v533
        %v539 = vadd.f32 %v515, %v533
        %v540 = vadd.f32 %v518, %v533
        %v541 = vadd.f32 %v521, %v533
        %v542 = vadd.f32 %v524, %v533
        %v543 = vld [vmem:[%s5] sm:$0x1]
        %v544 = vld [vmem:[%s5 + $0x1] sm:$0x1]
        %v545 = vperm.slane %v543, 0
        %v546 = vmul.f32 %v403, %v545
        %v547 = vmul.f32 %v404, %v545
        %v548 = vmul.f32 %v405, %v545
        %v549 = vmul.f32 %v406, %v545
        %v550 = vmul.f32 %v407, %v545
        %v551 = vmul.f32 %v408, %v545
        %v552 = vmul.f32 %v409, %v545
        %v553 = vmul.f32 %v410, %v545
        %v554 = vmul.f32 %v411, %v545
        %v555 = vmul.f32 %v412, %v545
        %v556 = vmul.f32 %v413, %v545
        %v557 = vmul.f32 %v414, %v545
        %v558 = vmul.f32 %v415, %v545
        %v559 = vmul.f32 %v416, %v545
        %v560 = vmul.f32 %v417, %v545
        %v561 = vmul.f32 %v418, %v545
        %v562 = vmul.f32 %v419, %v545
        %v563 = vmul.f32 %v420, %v545
        %v564 = vmul.f32 %v421, %v545
        %v565 = vmul.f32 %v422, %v545
        %v566 = vmul.f32 %v423, %v545
        %v567 = vmul.f32 %v424, %v545
        %v568 = vmul.f32 %v425, %v545
        %v569 = vmul.f32 %v426, %v545
        %v570 = vmul.f32 %v427, %v545
        %v571 = vmul.f32 %v428, %v545
        %v572 = vmul.f32 %v429, %v545
        %v573 = vmul.f32 %v430, %v545
        %v574 = vmul.f32 %v431, %v545
        %v575 = vmul.f32 %v432, %v545
        %v576 = vmul.f32 %v433, %v545
        %v577 = vmul.f32 %v434, %v545
        %v578 = vmul.f32 %v435, %v545
        %v579 = vmul.f32 %v436, %v545
        %v580 = vmul.f32 %v437, %v545
        %v581 = vmul.f32 %v438, %v545
        %v582 = vmul.f32 %v439, %v545
        %v583 = vmul.f32 %v440, %v545
        %v584 = vmul.f32 %v441, %v545
        %v585 = vmul.f32 %v442, %v545
        %v586 = vmul.f32 %v443, %v545
        %v587 = vmul.f32 %v444, %v545
        %v588 = vmul.f32 %v445, %v545
        %v589 = vmul.f32 %v446, %v545
        %v590 = vmul.f32 %v447, %v545
        %v591 = vmul.f32 %v448, %v545
        %v592 = vmul.f32 %v449, %v545
        %v593 = vmul.f32 %v450, %v545
        %v594 = vmul.f32 %v451, %v545
        %v595 = vmul.f32 %v452, %v545
        %v596 = vmul.f32 %v453, %v545
        %v597 = vmul.f32 %v454, %v545
        %v598 = vmul.f32 %v455, %v545
        %v599 = vmul.f32 %v456, %v545
        %v600 = vmul.f32 %v457, %v545
        %v601 = vmul.f32 %v458, %v545
        %v602 = vmul.f32 %v459, %v545
        %v603 = vmul.f32 %v460, %v545
        %v604 = vmul.f32 %v461, %v545
        %v605 = vmul.f32 %v462, %v545
        %v606 = vmul.f32 %v463, %v545
        %v607 = vmul.f32 %v464, %v545
        %v608 = vmul.f32 %v465, %v545
        %v609 = vmul.f32 %v466, %v545
        %v610 = vsel %vm500, %v546, 0.0
        %611 = vadd.xlane.f32.xlu0 %v610
        %v612 = vpop.xlane.xlu0 %611
        %v613 = vsel %vm500, %v547, 0.0
        %614 = vadd.xlane.f32.xlu0 %v613
        %v615 = vpop.xlane.xlu0 %614
        %v616 = vsel %vm500, %v548, 0.0
        %617 = vadd.xlane.f32.xlu0 %v616
        %v618 = vpop.xlane.xlu0 %617
        %v619 = vsel %vm500, %v549, 0.0
        %620 = vadd.xlane.f32.xlu0 %v619
        %v621 = vpop.xlane.xlu0 %620
        %v622 = vsel %vm500, %v550, 0.0
        %623 = vadd.xlane.f32.xlu0 %v622
        %v624 = vpop.xlane.xlu0 %623
        %v625 = vsel %vm500, %v551, 0.0
        %626 = vadd.xlane.f32.xlu0 %v625
        %v627 = vpop.xlane.xlu0 %626
        %v628 = vsel %vm500, %v552, 0.0
        %629 = vadd.xlane.f32.xlu0 %v628
        %v630 = vpop.xlane.xlu0 %629
        %v631 = vsel %vm500, %v553, 0.0
        %632 = vadd.xlane.f32.xlu0 %v631
        %v633 = vpop.xlane.xlu0 %632
        %v634 = vsel %vm500, %v554, 0.0
        %635 = vadd.xlane.f32.xlu0 %v634
        %v636 = vpop.xlane.xlu0 %635
        %v637 = vsel %vm500, %v555, 0.0
        %638 = vadd.xlane.f32.xlu0 %v637
        %v639 = vpop.xlane.xlu0 %638
        %v640 = vsel %vm500, %v556, 0.0
        %641 = vadd.xlane.f32.xlu0 %v640
        %v642 = vpop.xlane.xlu0 %641
        %v643 = vsel %vm500, %v557, 0.0
        %644 = vadd.xlane.f32.xlu0 %v643
        %v645 = vpop.xlane.xlu0 %644
        %v646 = vsel %vm500, %v558, 0.0
        %647 = vadd.xlane.f32.xlu0 %v646
        %v648 = vpop.xlane.xlu0 %647
        %v649 = vsel %vm500, %v559, 0.0
        %650 = vadd.xlane.f32.xlu0 %v649
        %v651 = vpop.xlane.xlu0 %650
        %v652 = vsel %vm500, %v560, 0.0
        %653 = vadd.xlane.f32.xlu0 %v652
        %v654 = vpop.xlane.xlu0 %653
        %v655 = vsel %vm500, %v561, 0.0
        %656 = vadd.xlane.f32.xlu0 %v655
        %v657 = vpop.xlane.xlu0 %656
        %v658 = vsel %vm500, %v562, 0.0
        %659 = vadd.xlane.f32.xlu0 %v658
        %v660 = vpop.xlane.xlu0 %659
        %v661 = vsel %vm500, %v563, 0.0
        %662 = vadd.xlane.f32.xlu0 %v661
        %v663 = vpop.xlane.xlu0 %662
        %v664 = vsel %vm500, %v564, 0.0
        %665 = vadd.xlane.f32.xlu0 %v664
        %v666 = vpop.xlane.xlu0 %665
        %v667 = vsel %vm500, %v565, 0.0
        %668 = vadd.xlane.f32.xlu0 %v667
        %v669 = vpop.xlane.xlu0 %668
        %v670 = vsel %vm500, %v566, 0.0
        %671 = vadd.xlane.f32.xlu0 %v670
        %v672 = vpop.xlane.xlu0 %671
        %v673 = vsel %vm500, %v567, 0.0
        %674 = vadd.xlane.f32.xlu0 %v673
        %v675 = vpop.xlane.xlu0 %674
        %v676 = vsel %vm500, %v568, 0.0
        %677 = vadd.xlane.f32.xlu0 %v676
        %v678 = vpop.xlane.xlu0 %677
        %v679 = vsel %vm500, %v569, 0.0
        %680 = vadd.xlane.f32.xlu0 %v679
        %v681 = vpop.xlane.xlu0 %680
        %v682 = vsel %vm500, %v570, 0.0
        %683 = vadd.xlane.f32.xlu0 %v682
        %v684 = vpop.xlane.xlu0 %683
        %v685 = vsel %vm500, %v571, 0.0
        %686 = vadd.xlane.f32.xlu0 %v685
        %v687 = vpop.xlane.xlu0 %686
        %v688 = vsel %vm500, %v572, 0.0
        %689 = vadd.xlane.f32.xlu0 %v688
        %v690 = vpop.xlane.xlu0 %689
        %v691 = vsel %vm500, %v573, 0.0
        %692 = vadd.xlane.f32.xlu0 %v691
        %v693 = vpop.xlane.xlu0 %692
        %v694 = vsel %vm500, %v574, 0.0
        %695 = vadd.xlane.f32.xlu0 %v694
        %v696 = vpop.xlane.xlu0 %695
        %v697 = vsel %vm500, %v575, 0.0
        %698 = vadd.xlane.f32.xlu0 %v697
        %v699 = vpop.xlane.xlu0 %698
        %v700 = vsel %vm500, %v576, 0.0
        %701 = vadd.xlane.f32.xlu0 %v700
        %v702 = vpop.xlane.xlu0 %701
        %v703 = vsel %vm500, %v577, 0.0
        %704 = vadd.xlane.f32.xlu0 %v703
        %v705 = vpop.xlane.xlu0 %704
        %v706 = vsel %vm500, %v578, 0.0
        %707 = vadd.xlane.f32.xlu0 %v706
        %v708 = vpop.xlane.xlu0 %707
        %v709 = vsel %vm500, %v579, 0.0
        %710 = vadd.xlane.f32.xlu0 %v709
        %v711 = vpop.xlane.xlu0 %710
        %v712 = vsel %vm500, %v580, 0.0
        %713 = vadd.xlane.f32.xlu0 %v712
        %v714 = vpop.xlane.xlu0 %713
        %v715 = vsel %vm500, %v581, 0.0
        %716 = vadd.xlane.f32.xlu0 %v715
        %v717 = vpop.xlane.xlu0 %716
        %v718 = vsel %vm500, %v582, 0.0
        %719 = vadd.xlane.f32.xlu0 %v718
        %v720 = vpop.xlane.xlu0 %719
        %v721 = vsel %vm500, %v583, 0.0
        %722 = vadd.xlane.f32.xlu0 %v721
        %v723 = vpop.xlane.xlu0 %722
        %v724 = vsel %vm500, %v584, 0.0
        %725 = vadd.xlane.f32.xlu0 %v724
        %v726 = vpop.xlane.xlu0 %725
        %v727 = vsel %vm500, %v585, 0.0
        %728 = vadd.xlane.f32.xlu0 %v727
        %v729 = vpop.xlane.xlu0 %728
        %v730 = vsel %vm500, %v586, 0.0
        %731 = vadd.xlane.f32.xlu0 %v730
        %v732 = vpop.xlane.xlu0 %731
        %v733 = vsel %vm500, %v587, 0.0
        %734 = vadd.xlane.f32.xlu0 %v733
        %v735 = vpop.xlane.xlu0 %734
        %v736 = vsel %vm500, %v588, 0.0
        %737 = vadd.xlane.f32.xlu0 %v736
        %v738 = vpop.xlane.xlu0 %737
        %v739 = vsel %vm500, %v589, 0.0
        %740 = vadd.xlane.f32.xlu0 %v739
        %v741 = vpop.xlane.xlu0 %740
        %v742 = vsel %vm500, %v590, 0.0
        %743 = vadd.xlane.f32.xlu0 %v742
        %v744 = vpop.xlane.xlu0 %743
        %v745 = vsel %vm500, %v591, 0.0
        %746 = vadd.xlane.f32.xlu0 %v745
        %v747 = vpop.xlane.xlu0 %746
        %v748 = vsel %vm500, %v592, 0.0
        %749 = vadd.xlane.f32.xlu0 %v748
        %v750 = vpop.xlane.xlu0 %749
        %v751 = vsel %vm500, %v593, 0.0
        %752 = vadd.xlane.f32.xlu0 %v751
        %v753 = vpop.xlane.xlu0 %752
        %v754 = vsel %vm500, %v594, 0.0
        %755 = vadd.xlane.f32.xlu0 %v754
        %v756 = vpop.xlane.xlu0 %755
        %v757 = vsel %vm500, %v595, 0.0
        %758 = vadd.xlane.f32.xlu0 %v757
        %v759 = vpop.xlane.xlu0 %758
        %v760 = vsel %vm500, %v596, 0.0
        %761 = vadd.xlane.f32.xlu0 %v760
        %v762 = vpop.xlane.xlu0 %761
        %v763 = vsel %vm500, %v597, 0.0
        %764 = vadd.xlane.f32.xlu0 %v763
        %v765 = vpop.xlane.xlu0 %764
        %v766 = vsel %vm500, %v598, 0.0
        %767 = vadd.xlane.f32.xlu0 %v766
        %v768 = vpop.xlane.xlu0 %767
        %v769 = vsel %vm500, %v599, 0.0
        %770 = vadd.xlane.f32.xlu0 %v769
        %v771 = vpop.xlane.xlu0 %770
        %v772 = vsel %vm500, %v600, 0.0
        %773 = vadd.xlane.f32.xlu0 %v772
        %v774 = vpop.xlane.xlu0 %773
        %v775 = vsel %vm500, %v601, 0.0
        %776 = vadd.xlane.f32.xlu0 %v775
        %v777 = vpop.xlane.xlu0 %776
        %v778 = vsel %vm500, %v602, 0.0
        %779 = vadd.xlane.f32.xlu0 %v778
        %v780 = vpop.xlane.xlu0 %779
        %v781 = vsel %vm500, %v603, 0.0
        %782 = vadd.xlane.f32.xlu0 %v781
        %v783 = vpop.xlane.xlu0 %782
        %v784 = vsel %vm500, %v604, 0.0
        %785 = vadd.xlane.f32.xlu0 %v784
        %v786 = vpop.xlane.xlu0 %785
        %v787 = vsel %vm500, %v605, 0.0
        %788 = vadd.xlane.f32.xlu0 %v787
        %v789 = vpop.xlane.xlu0 %788
        %v790 = vsel %vm500, %v606, 0.0
        %791 = vadd.xlane.f32.xlu0 %v790
        %v792 = vpop.xlane.xlu0 %791
        %v793 = vsel %vm500, %v607, 0.0
        %794 = vadd.xlane.f32.xlu0 %v793
        %v795 = vpop.xlane.xlu0 %794
        %v796 = vsel %vm500, %v608, 0.0
        %797 = vadd.xlane.f32.xlu0 %v796
        %v798 = vpop.xlane.xlu0 %797
        %v799 = vsel %vm500, %v609, 0.0
        %800 = vadd.xlane.f32.xlu0 %v799
        %v801 = vpop.xlane.xlu0 %800
        %802 = vset.pattern.permute.xlu0 8
        %803 = vperm.xlu0 %802, %v527
        %v804 = vpop.permute.xlu0 %803
        %v806 = vadd.f32 %v612, %v804
        %v807 = vadd.f32 %v615, %v804
        %v808 = vadd.f32 %v618, %v804
        %v809 = vadd.f32 %v621, %v804
        %v810 = vadd.f32 %v624, %v804
        %v811 = vadd.f32 %v627, %v804
        %v812 = vadd.f32 %v630, %v804
        %v813 = vadd.f32 %v633, %v804
        %v814 = vadd.f32 %v636, %v804
        %v815 = vadd.f32 %v639, %v804
        %v816 = vadd.f32 %v642, %v804
        %v817 = vadd.f32 %v645, %v804
        %v818 = vadd.f32 %v648, %v804
        %v819 = vadd.f32 %v651, %v804
        %v820 = vadd.f32 %v654, %v804
        %v821 = vadd.f32 %v657, %v804
        %v822 = vadd.f32 %v660, %v804
        %v823 = vadd.f32 %v663, %v804
        %v824 = vadd.f32 %v666, %v804
        %v825 = vadd.f32 %v669, %v804
        %v826 = vadd.f32 %v672, %v804
        %v827 = vadd.f32 %v675, %v804
        %v828 = vadd.f32 %v678, %v804
        %v829 = vadd.f32 %v681, %v804
        %v830 = vadd.f32 %v684, %v804
        %v831 = vadd.f32 %v687, %v804
        %v832 = vadd.f32 %v690, %v804
        %v833 = vadd.f32 %v693, %v804
        %v834 = vadd.f32 %v696, %v804
        %v835 = vadd.f32 %v699, %v804
        %v836 = vadd.f32 %v702, %v804
        %v837 = vadd.f32 %v705, %v804
        %v838 = vadd.f32 %v708, %v804
        %v839 = vadd.f32 %v711, %v804
        %v840 = vadd.f32 %v714, %v804
        %v841 = vadd.f32 %v717, %v804
        %v842 = vadd.f32 %v720, %v804
        %v843 = vadd.f32 %v723, %v804
        %v844 = vadd.f32 %v726, %v804
        %v845 = vadd.f32 %v729, %v804
        %v846 = vadd.f32 %v732, %v804
        %v847 = vadd.f32 %v735, %v804
        %v848 = vadd.f32 %v738, %v804
        %v849 = vadd.f32 %v741, %v804
        %v850 = vadd.f32 %v744, %v804
        %v851 = vadd.f32 %v747, %v804
        %v852 = vadd.f32 %v750, %v804
        %v853 = vadd.f32 %v753, %v804
        %v854 = vadd.f32 %v756, %v804
        %v855 = vadd.f32 %v759, %v804
        %v856 = vadd.f32 %v762, %v804
        %v857 = vadd.f32 %v765, %v804
        %v858 = vadd.f32 %v768, %v804
        %v859 = vadd.f32 %v771, %v804
        %v860 = vadd.f32 %v774, %v804
        %v861 = vadd.f32 %v777, %v804
        %v862 = vadd.f32 %v780, %v804
        %v863 = vadd.f32 %v783, %v804
        %v864 = vadd.f32 %v786, %v804
        %v865 = vadd.f32 %v789, %v804
        %v866 = vadd.f32 %v792, %v804
        %v867 = vadd.f32 %v795, %v804
        %v868 = vadd.f32 %v798, %v804
        %v869 = vadd.f32 %v801, %v804
        %v870 = vperm.slane %v544, 0
        %v871 = vmul.f32 %v403, %v870
        %v872 = vmul.f32 %v404, %v870
        %v873 = vmul.f32 %v405, %v870
        %v874 = vmul.f32 %v406, %v870
        %v875 = vmul.f32 %v407, %v870
        %v876 = vmul.f32 %v408, %v870
        %v877 = vmul.f32 %v409, %v870
        %v878 = vmul.f32 %v410, %v870
        %v879 = vmul.f32 %v411, %v870
        %v880 = vmul.f32 %v412, %v870
        %v881 = vmul.f32 %v413, %v870
        %v882 = vmul.f32 %v414, %v870
        %v883 = vmul.f32 %v415, %v870
        %v884 = vmul.f32 %v416, %v870
        %v885 = vmul.f32 %v417, %v870
        %v886 = vmul.f32 %v418, %v870
        %v887 = vmul.f32 %v419, %v870
        %v888 = vmul.f32 %v420, %v870
        %v889 = vmul.f32 %v421, %v870
        %v890 = vmul.f32 %v422, %v870
        %v891 = vmul.f32 %v423, %v870
        %v892 = vmul.f32 %v424, %v870
        %v893 = vmul.f32 %v425, %v870
        %v894 = vmul.f32 %v426, %v870
        %v895 = vmul.f32 %v427, %v870
        %v896 = vmul.f32 %v428, %v870
        %v897 = vmul.f32 %v429, %v870
        %v898 = vmul.f32 %v430, %v870
        %v899 = vmul.f32 %v431, %v870
        %v900 = vmul.f32 %v432, %v870
        %v901 = vmul.f32 %v433, %v870
        %v902 = vmul.f32 %v434, %v870
        %v903 = vmul.f32 %v435, %v870
        %v904 = vmul.f32 %v436, %v870
        %v905 = vmul.f32 %v437, %v870
        %v906 = vmul.f32 %v438, %v870
        %v907 = vmul.f32 %v439, %v870
        %v908 = vmul.f32 %v440, %v870
        %v909 = vmul.f32 %v441, %v870
        %v910 = vmul.f32 %v442, %v870
        %v911 = vmul.f32 %v443, %v870
        %v912 = vmul.f32 %v444, %v870
        %v913 = vmul.f32 %v445, %v870
        %v914 = vmul.f32 %v446, %v870
        %v915 = vmul.f32 %v447, %v870
        %v916 = vmul.f32 %v448, %v870
        %v917 = vmul.f32 %v449, %v870
        %v918 = vmul.f32 %v450, %v870
        %v919 = vmul.f32 %v451, %v870
        %v920 = vmul.f32 %v452, %v870
        %v921 = vmul.f32 %v453, %v870
        %v922 = vmul.f32 %v454, %v870
        %v923 = vmul.f32 %v455, %v870
        %v924 = vmul.f32 %v456, %v870
        %v925 = vmul.f32 %v457, %v870
        %v926 = vmul.f32 %v458, %v870
        %v927 = vmul.f32 %v459, %v870
        %v928 = vmul.f32 %v460, %v870
        %v929 = vmul.f32 %v461, %v870
        %v930 = vmul.f32 %v462, %v870
        %v931 = vmul.f32 %v463, %v870
        %v932 = vmul.f32 %v464, %v870
        %v933 = vmul.f32 %v465, %v870
        %v934 = vmul.f32 %v466, %v870
        %v935 = vsel %vm500, %v871, 0.0
        %936 = vadd.xlane.f32.xlu0 %v935
        %v937 = vpop.xlane.xlu0 %936
        %v938 = vsel %vm500, %v872, 0.0
        %939 = vadd.xlane.f32.xlu0 %v938
        %v940 = vpop.xlane.xlu0 %939
        %v941 = vsel %vm500, %v873, 0.0
        %942 = vadd.xlane.f32.xlu0 %v941
        %v943 = vpop.xlane.xlu0 %942
        %v944 = vsel %vm500, %v874, 0.0
        %945 = vadd.xlane.f32.xlu0 %v944
        %v946 = vpop.xlane.xlu0 %945
        %v947 = vsel %vm500, %v875, 0.0
        %948 = vadd.xlane.f32.xlu0 %v947
        %v949 = vpop.xlane.xlu0 %948
        %v950 = vsel %vm500, %v876, 0.0
        %951 = vadd.xlane.f32.xlu0 %v950
        %v952 = vpop.xlane.xlu0 %951
        %v953 = vsel %vm500, %v877, 0.0
        %954 = vadd.xlane.f32.xlu0 %v953
        %v955 = vpop.xlane.xlu0 %954
        %v956 = vsel %vm500, %v878, 0.0
        %957 = vadd.xlane.f32.xlu0 %v956
        %v958 = vpop.xlane.xlu0 %957
        %v959 = vsel %vm500, %v879, 0.0
        %960 = vadd.xlane.f32.xlu0 %v959
        %v961 = vpop.xlane.xlu0 %960
        %v962 = vsel %vm500, %v880, 0.0
        %963 = vadd.xlane.f32.xlu0 %v962
        %v964 = vpop.xlane.xlu0 %963
        %v965 = vsel %vm500, %v881, 0.0
        %966 = vadd.xlane.f32.xlu0 %v965
        %v967 = vpop.xlane.xlu0 %966
        %v968 = vsel %vm500, %v882, 0.0
        %969 = vadd.xlane.f32.xlu0 %v968
        %v970 = vpop.xlane.xlu0 %969
        %v971 = vsel %vm500, %v883, 0.0
        %972 = vadd.xlane.f32.xlu0 %v971
        %v973 = vpop.xlane.xlu0 %972
        %v974 = vsel %vm500, %v884, 0.0
        %975 = vadd.xlane.f32.xlu0 %v974
        %v976 = vpop.xlane.xlu0 %975
        %v977 = vsel %vm500, %v885, 0.0
        %978 = vadd.xlane.f32.xlu0 %v977
        %v979 = vpop.xlane.xlu0 %978
        %v980 = vsel %vm500, %v886, 0.0
        %981 = vadd.xlane.f32.xlu0 %v980
        %v982 = vpop.xlane.xlu0 %981
        %v983 = vsel %vm500, %v887, 0.0
        %984 = vadd.xlane.f32.xlu0 %v983
        %v985 = vpop.xlane.xlu0 %984
        %v986 = vsel %vm500, %v888, 0.0
        %987 = vadd.xlane.f32.xlu0 %v986
        %v988 = vpop.xlane.xlu0 %987
        %v989 = vsel %vm500, %v889, 0.0
        %990 = vadd.xlane.f32.xlu0 %v989
        %v991 = vpop.xlane.xlu0 %990
        %v992 = vsel %vm500, %v890, 0.0
        %993 = vadd.xlane.f32.xlu0 %v992
        %v994 = vpop.xlane.xlu0 %993
        %v995 = vsel %vm500, %v891, 0.0
        %996 = vadd.xlane.f32.xlu0 %v995
        %v997 = vpop.xlane.xlu0 %996
        %v998 = vsel %vm500, %v892, 0.0
        %999 = vadd.xlane.f32.xlu0 %v998
        %v1000 = vpop.xlane.xlu0 %999
        %v1001 = vsel %vm500, %v893, 0.0
        %1002 = vadd.xlane.f32.xlu0 %v1001
        %v1003 = vpop.xlane.xlu0 %1002
        %v1004 = vsel %vm500, %v894, 0.0
        %1005 = vadd.xlane.f32.xlu0 %v1004
        %v1006 = vpop.xlane.xlu0 %1005
        %v1007 = vsel %vm500, %v895, 0.0
        %1008 = vadd.xlane.f32.xlu0 %v1007
        %v1009 = vpop.xlane.xlu0 %1008
        %v1010 = vsel %vm500, %v896, 0.0
        %1011 = vadd.xlane.f32.xlu0 %v1010
        %v1012 = vpop.xlane.xlu0 %1011
        %v1013 = vsel %vm500, %v897, 0.0
        %1014 = vadd.xlane.f32.xlu0 %v1013
        %v1015 = vpop.xlane.xlu0 %1014
        %v1016 = vsel %vm500, %v898, 0.0
        %1017 = vadd.xlane.f32.xlu0 %v1016
        %v1018 = vpop.xlane.xlu0 %1017
        %v1019 = vsel %vm500, %v899, 0.0
        %1020 = vadd.xlane.f32.xlu0 %v1019
        %v1021 = vpop.xlane.xlu0 %1020
        %v1022 = vsel %vm500, %v900, 0.0
        %1023 = vadd.xlane.f32.xlu0 %v1022
        %v1024 = vpop.xlane.xlu0 %1023
        %v1025 = vsel %vm500, %v901, 0.0
        %1026 = vadd.xlane.f32.xlu0 %v1025
        %v1027 = vpop.xlane.xlu0 %1026
        %v1028 = vsel %vm500, %v902, 0.0
        %1029 = vadd.xlane.f32.xlu0 %v1028
        %v1030 = vpop.xlane.xlu0 %1029
        %v1031 = vsel %vm500, %v903, 0.0
        %1032 = vadd.xlane.f32.xlu0 %v1031
        %v1033 = vpop.xlane.xlu0 %1032
        %v1034 = vsel %vm500, %v904, 0.0
        %1035 = vadd.xlane.f32.xlu0 %v1034
        %v1036 = vpop.xlane.xlu0 %1035
        %v1037 = vsel %vm500, %v905, 0.0
        %1038 = vadd.xlane.f32.xlu0 %v1037
        %v1039 = vpop.xlane.xlu0 %1038
        %v1040 = vsel %vm500, %v906, 0.0
        %1041 = vadd.xlane.f32.xlu0 %v1040
        %v1042 = vpop.xlane.xlu0 %1041
        %v1043 = vsel %vm500, %v907, 0.0
        %1044 = vadd.xlane.f32.xlu0 %v1043
        %v1045 = vpop.xlane.xlu0 %1044
        %v1046 = vsel %vm500, %v908, 0.0
        %1047 = vadd.xlane.f32.xlu0 %v1046
        %v1048 = vpop.xlane.xlu0 %1047
        %v1049 = vsel %vm500, %v909, 0.0
        %1050 = vadd.xlane.f32.xlu0 %v1049
        %v1051 = vpop.xlane.xlu0 %1050
        %v1052 = vsel %vm500, %v910, 0.0
        %1053 = vadd.xlane.f32.xlu0 %v1052
        %v1054 = vpop.xlane.xlu0 %1053
        %v1055 = vsel %vm500, %v911, 0.0
        %1056 = vadd.xlane.f32.xlu0 %v1055
        %v1057 = vpop.xlane.xlu0 %1056
        %v1058 = vsel %vm500, %v912, 0.0
        %1059 = vadd.xlane.f32.xlu0 %v1058
        %v1060 = vpop.xlane.xlu0 %1059
        %v1061 = vsel %vm500, %v913, 0.0
        %1062 = vadd.xlane.f32.xlu0 %v1061
        %v1063 = vpop.xlane.xlu0 %1062
        %v1064 = vsel %vm500, %v914, 0.0
        %1065 = vadd.xlane.f32.xlu0 %v1064
        %v1066 = vpop.xlane.xlu0 %1065
        %v1067 = vsel %vm500, %v915, 0.0
        %1068 = vadd.xlane.f32.xlu0 %v1067
        %v1069 = vpop.xlane.xlu0 %1068
        %v1070 = vsel %vm500, %v916, 0.0
        %1071 = vadd.xlane.f32.xlu0 %v1070
        %v1072 = vpop.xlane.xlu0 %1071
        %v1073 = vsel %vm500, %v917, 0.0
        %1074 = vadd.xlane.f32.xlu0 %v1073
        %v1075 = vpop.xlane.xlu0 %1074
        %v1076 = vsel %vm500, %v918, 0.0
        %1077 = vadd.xlane.f32.xlu0 %v1076
        %v1078 = vpop.xlane.xlu0 %1077
        %v1079 = vsel %vm500, %v919, 0.0
        %1080 = vadd.xlane.f32.xlu0 %v1079
        %v1081 = vpop.xlane.xlu0 %1080
        %v1082 = vsel %vm500, %v920, 0.0
        %1083 = vadd.xlane.f32.xlu0 %v1082
        %v1084 = vpop.xlane.xlu0 %1083
        %v1085 = vsel %vm500, %v921, 0.0
        %1086 = vadd.xlane.f32.xlu0 %v1085
        %v1087 = vpop.xlane.xlu0 %1086
        %v1088 = vsel %vm500, %v922, 0.0
        %1089 = vadd.xlane.f32.xlu0 %v1088
        %v1090 = vpop.xlane.xlu0 %1089
        %v1091 = vsel %vm500, %v923, 0.0
        %1092 = vadd.xlane.f32.xlu0 %v1091
        %v1093 = vpop.xlane.xlu0 %1092
        %v1094 = vsel %vm500, %v924, 0.0
        %1095 = vadd.xlane.f32.xlu0 %v1094
        %v1096 = vpop.xlane.xlu0 %1095
        %v1097 = vsel %vm500, %v925, 0.0
        %1098 = vadd.xlane.f32.xlu0 %v1097
        %v1099 = vpop.xlane.xlu0 %1098
        %v1100 = vsel %vm500, %v926, 0.0
        %1101 = vadd.xlane.f32.xlu0 %v1100
        %v1102 = vpop.xlane.xlu0 %1101
        %v1103 = vsel %vm500, %v927, 0.0
        %1104 = vadd.xlane.f32.xlu0 %v1103
        %v1105 = vpop.xlane.xlu0 %1104
        %v1106 = vsel %vm500, %v928, 0.0
        %1107 = vadd.xlane.f32.xlu0 %v1106
        %v1108 = vpop.xlane.xlu0 %1107
        %v1109 = vsel %vm500, %v929, 0.0
        %1110 = vadd.xlane.f32.xlu0 %v1109
        %v1111 = vpop.xlane.xlu0 %1110
        %v1112 = vsel %vm500, %v930, 0.0
        %1113 = vadd.xlane.f32.xlu0 %v1112
        %v1114 = vpop.xlane.xlu0 %1113
        %v1115 = vsel %vm500, %v931, 0.0
        %1116 = vadd.xlane.f32.xlu0 %v1115
        %v1117 = vpop.xlane.xlu0 %1116
        %v1118 = vsel %vm500, %v932, 0.0
        %1119 = vadd.xlane.f32.xlu0 %v1118
        %v1120 = vpop.xlane.xlu0 %1119
        %v1121 = vsel %vm500, %v933, 0.0
        %1122 = vadd.xlane.f32.xlu0 %v1121
        %v1123 = vpop.xlane.xlu0 %1122
        %v1124 = vsel %vm500, %v934, 0.0
        %1125 = vadd.xlane.f32.xlu0 %v1124
        %v1126 = vpop.xlane.xlu0 %1125
        %1127 = vset.pattern.permute.xlu0 9
        %1128 = vperm.xlu0 %1127, %v527
        %v1129 = vpop.permute.xlu0 %1128
        %v1131 = vadd.f32 %v937, %v1129
        %v1132 = vadd.f32 %v940, %v1129
        %v1133 = vadd.f32 %v943, %v1129
        %v1134 = vadd.f32 %v946, %v1129
        %v1135 = vadd.f32 %v949, %v1129
        %v1136 = vadd.f32 %v952, %v1129
        %v1137 = vadd.f32 %v955, %v1129
        %v1138 = vadd.f32 %v958, %v1129
        %v1139 = vadd.f32 %v961, %v1129
        %v1140 = vadd.f32 %v964, %v1129
        %v1141 = vadd.f32 %v967, %v1129
        %v1142 = vadd.f32 %v970, %v1129
        %v1143 = vadd.f32 %v973, %v1129
        %v1144 = vadd.f32 %v976, %v1129
        %v1145 = vadd.f32 %v979, %v1129
        %v1146 = vadd.f32 %v982, %v1129
        %v1147 = vadd.f32 %v985, %v1129
        %v1148 = vadd.f32 %v988, %v1129
        %v1149 = vadd.f32 %v991, %v1129
        %v1150 = vadd.f32 %v994, %v1129
        %v1151 = vadd.f32 %v997, %v1129
        %v1152 = vadd.f32 %v1000, %v1129
        %v1153 = vadd.f32 %v1003, %v1129
        %v1154 = vadd.f32 %v1006, %v1129
        %v1155 = vadd.f32 %v1009, %v1129
        %v1156 = vadd.f32 %v1012, %v1129
        %v1157 = vadd.f32 %v1015, %v1129
        %v1158 = vadd.f32 %v1018, %v1129
        %v1159 = vadd.f32 %v1021, %v1129
        %v1160 = vadd.f32 %v1024, %v1129
        %v1161 = vadd.f32 %v1027, %v1129
        %v1162 = vadd.f32 %v1030, %v1129
        %v1163 = vadd.f32 %v1033, %v1129
        %v1164 = vadd.f32 %v1036, %v1129
        %v1165 = vadd.f32 %v1039, %v1129
        %v1166 = vadd.f32 %v1042, %v1129
        %v1167 = vadd.f32 %v1045, %v1129
        %v1168 = vadd.f32 %v1048, %v1129
        %v1169 = vadd.f32 %v1051, %v1129
        %v1170 = vadd.f32 %v1054, %v1129
        %v1171 = vadd.f32 %v1057, %v1129
        %v1172 = vadd.f32 %v1060, %v1129
        %v1173 = vadd.f32 %v1063, %v1129
        %v1174 = vadd.f32 %v1066, %v1129
        %v1175 = vadd.f32 %v1069, %v1129
        %v1176 = vadd.f32 %v1072, %v1129
        %v1177 = vadd.f32 %v1075, %v1129
        %v1178 = vadd.f32 %v1078, %v1129
        %v1179 = vadd.f32 %v1081, %v1129
        %v1180 = vadd.f32 %v1084, %v1129
        %v1181 = vadd.f32 %v1087, %v1129
        %v1182 = vadd.f32 %v1090, %v1129
        %v1183 = vadd.f32 %v1093, %v1129
        %v1184 = vadd.f32 %v1096, %v1129
        %v1185 = vadd.f32 %v1099, %v1129
        %v1186 = vadd.f32 %v1102, %v1129
        %v1187 = vadd.f32 %v1105, %v1129
        %v1188 = vadd.f32 %v1108, %v1129
        %v1189 = vadd.f32 %v1111, %v1129
        %v1190 = vadd.f32 %v1114, %v1129
        %v1191 = vadd.f32 %v1117, %v1129
        %v1192 = vadd.f32 %v1120, %v1129
        %v1193 = vadd.f32 %v1123, %v1129
        %v1194 = vadd.f32 %v1126, %v1129
        %v1195 = vadd.f32 %v336, 1.0
        %v1196 = vmul.f32 %v1195, 0.5
        %v1197 = vmul.f32 %v1196, 8.0
        %v1198 = vfloor.f32 %v1197
        %v1199 = vmax.f32 %v1198, 0.0
        %v1200 = vmin.f32 %v1199, 7.0
        %v1201 = vcvt.f32.s32.to.zero.pseudo %v1200
        %v1202 = vlaneseq
        %v1203 = vand.u32 %v1202, 127
        %1204 = vset.pattern.permute.xlu0 0
        %1205 = vperm.xlu0 %1204, %v1201
        %v1206 = vpop.permute.xlu0 %1205
        %vm1207 = vcmp.eq.s32.totalorder %v1203, %v1206
        %v1208 = vsel %vm1207, 1, 0
        %v1209 = vcvt.s32.f32 %v1208
        %1218 = vset.pattern.permute.xlu0 0
        %1219 = vperm.xlu0 %1218, %v535
        %v1220 = vpop.permute.xlu0 %1219
        %1221 = vset.pattern.permute.xlu0 0
        %1222 = vperm.xlu0 %1221, %v536
        %v1223 = vpop.permute.xlu0 %1222
        %1224 = vset.pattern.permute.xlu0 0
        %1225 = vperm.xlu0 %1224, %v537
        %v1226 = vpop.permute.xlu0 %1225
        %1227 = vset.pattern.permute.xlu0 0
        %1228 = vperm.xlu0 %1227, %v538
        %v1229 = vpop.permute.xlu0 %1228
        %1230 = vset.pattern.permute.xlu0 0
        %1231 = vperm.xlu0 %1230, %v539
        %v1232 = vpop.permute.xlu0 %1231
        %1233 = vset.pattern.permute.xlu0 0
        %1234 = vperm.xlu0 %1233, %v540
        %v1235 = vpop.permute.xlu0 %1234
        %1236 = vset.pattern.permute.xlu0 0
        %1237 = vperm.xlu0 %1236, %v541
        %v1238 = vpop.permute.xlu0 %1237
        %1239 = vset.pattern.permute.xlu0 0
        %1240 = vperm.xlu0 %1239, %v542
        %v1241 = vpop.permute.xlu0 %1240
        %v1242 = vperm.slane %v1220, %v1203
        %v1243 = vperm.slane %v1223, %v1203
        %v1244 = vperm.slane %v1226, %v1203
        %v1245 = vperm.slane %v1229, %v1203
        %v1246 = vperm.slane %v1232, %v1203
        %v1247 = vperm.slane %v1235, %v1203
        %v1248 = vperm.slane %v1238, %v1203
        %v1249 = vperm.slane %v1241, %v1203
        %vm1250 = vcmask 1041409
        %v1251 = vsel %vm1250, %v1243, %v1242
        %vm1252 = vcmask 1042434
        %v1253 = vsel %vm1252, %v1244, %v1251
        %vm1254 = vcmask 1043459
        %v1255 = vsel %vm1254, %v1245, %v1253
        %vm1256 = vcmask 1044484
        %v1257 = vsel %vm1256, %v1246, %v1255
        %vm1258 = vcmask 1045509
        %v1259 = vsel %vm1258, %v1247, %v1257
        %vm1260 = vcmask 1046534
        %v1261 = vsel %vm1260, %v1248, %v1259
        %vm1262 = vcmask 1047559
        %v1263 = vsel %vm1262, %v1249, %v1261
        %vm1265 = vcmask 64512
        %v1266 = vsel %vm1265, %v1263, -inf
        %1267 = vmax.xlane.f32.xlu0 %v1266
        %v1268 = vpop.xlane.xlu0 %1267
        %v1270 = vperm.slane %v1268, 0
        %v1271 = vperm.slane %v1268, 1
        %v1272 = vperm.slane %v1268, 2
        %v1273 = vperm.slane %v1268, 3
        %v1274 = vperm.slane %v1268, 4
        %v1275 = vperm.slane %v1268, 5
        %v1276 = vperm.slane %v1268, 6
        %v1277 = vperm.slane %v1268, 7
        %v1286 = vsub.f32 %v535, %v1270
        %v1287 = vsub.f32 %v536, %v1271
        %v1288 = vsub.f32 %v537, %v1272
        %v1289 = vsub.f32 %v538, %v1273
        %v1290 = vsub.f32 %v539, %v1274
        %v1291 = vsub.f32 %v540, %v1275
        %v1292 = vsub.f32 %v541, %v1276
        %v1293 = vsub.f32 %v542, %v1277
        %v1294 = vmul.f32 %v1286, 1.442695
        %v1295 = vpow.pop %v1294
        %v1296 = vmul.f32 %v1287, 1.442695
        %v1297 = vpow.pop %v1296
        %v1298 = vmul.f32 %v1288, 1.442695
        %v1299 = vpow.pop %v1298
        %v1300 = vmul.f32 %v1289, 1.442695
        %v1301 = vpow.pop %v1300
        %v1302 = vmul.f32 %v1290, 1.442695
        %v1303 = vpow.pop %v1302
        %v1304 = vmul.f32 %v1291, 1.442695
        %v1305 = vpow.pop %v1304
        %v1306 = vmul.f32 %v1292, 1.442695
        %v1307 = vpow.pop %v1306
        %v1308 = vmul.f32 %v1293, 1.442695
        %v1309 = vpow.pop %v1308
        %1318 = vset.pattern.permute.xlu0 0
        %1319 = vperm.xlu0 %1318, %v1295
        %v1320 = vpop.permute.xlu0 %1319
        %1321 = vset.pattern.permute.xlu0 0
        %1322 = vperm.xlu0 %1321, %v1297
        %v1323 = vpop.permute.xlu0 %1322
        %1324 = vset.pattern.permute.xlu0 0
        %1325 = vperm.xlu0 %1324, %v1299
        %v1326 = vpop.permute.xlu0 %1325
        %1327 = vset.pattern.permute.xlu0 0
        %1328 = vperm.xlu0 %1327, %v1301
        %v1329 = vpop.permute.xlu0 %1328
        %1330 = vset.pattern.permute.xlu0 0
        %1331 = vperm.xlu0 %1330, %v1303
        %v1332 = vpop.permute.xlu0 %1331
        %1333 = vset.pattern.permute.xlu0 0
        %1334 = vperm.xlu0 %1333, %v1305
        %v1335 = vpop.permute.xlu0 %1334
        %1336 = vset.pattern.permute.xlu0 0
        %1337 = vperm.xlu0 %1336, %v1307
        %v1338 = vpop.permute.xlu0 %1337
        %1339 = vset.pattern.permute.xlu0 0
        %1340 = vperm.xlu0 %1339, %v1309
        %v1341 = vpop.permute.xlu0 %1340
        %v1342 = vperm.slane %v1320, %v1203
        %v1343 = vperm.slane %v1323, %v1203
        %v1344 = vperm.slane %v1326, %v1203
        %v1345 = vperm.slane %v1329, %v1203
        %v1346 = vperm.slane %v1332, %v1203
        %v1347 = vperm.slane %v1335, %v1203
        %v1348 = vperm.slane %v1338, %v1203
        %v1349 = vperm.slane %v1341, %v1203
        %v1350 = vsel %vm1250, %v1343, %v1342
        %v1351 = vsel %vm1252, %v1344, %v1350
        %v1352 = vsel %vm1254, %v1345, %v1351
        %v1353 = vsel %vm1256, %v1346, %v1352
        %v1354 = vsel %vm1258, %v1347, %v1353
        %v1355 = vsel %vm1260, %v1348, %v1354
        %v1356 = vsel %vm1262, %v1349, %v1355
        %v1358 = vsel %vm1265, %v1356, 0.0
        %1359 = vadd.xlane.f32.xlu0 %v1358
        %v1360 = vpop.xlane.xlu0 %1359
        %v1361 = vlog2.pop %v1360
        %v1362 = vmul.f32 %v1361, 0.6931472
        %v1363 = vadd.f32 %v1268, %v1362
        %v1364 = vmul.f32 %v1209, %v1263
        %v1365 = vsel %vm1265, %v1364, 0.0
        %1366 = vadd.xlane.f32.xlu0 %v1365
        %v1367 = vpop.xlane.xlu0 %1366
        %v1368 = vsub.f32 %v1363, %v1367
        %1369 = vset.pattern.permute.xlu0 2
        %1370 = vperm.xlu0 %1369, %v337
        %v1371 = vpop.permute.xlu0 %1370
        %vm1372 = vcmp.eq.s32.totalorder %v1203, %v1371
        %v1373 = vsel %vm1372, 1, 0
        %v1374 = vcvt.s32.f32 %v1373
        %v1376 = vperm.slane %v1374, 0
        %v1377 = vlaneseq
        %v1378 = vshrl.u32 %v1377, 7
        %1380 = vset.pattern.permute.xlu0 %v1378
        %1381 = vperm.xlu0 %1380, %v1376
        %v1382 = vpop.permute.xlu0 %1381
        %v1383 = vlaneseq
        %v1384 = vshrl.u32 %v1383, 7
        %v1385 = vadd.s32 %v1384, 8
        %1386 = vset.pattern.permute.xlu0 %v1385
        %1387 = vperm.xlu0 %1386, %v1376
        %v1388 = vpop.permute.xlu0 %1387
        %v1389 = vlaneseq
        %v1390 = vshrl.u32 %v1389, 7
        %v1391 = vadd.s32 %v1390, 16
        %1392 = vset.pattern.permute.xlu0 %v1391
        %1393 = vperm.xlu0 %1392, %v1376
        %v1394 = vpop.permute.xlu0 %1393
        %v1395 = vlaneseq
        %v1396 = vshrl.u32 %v1395, 7
        %v1397 = vadd.s32 %v1396, 24
        %1398 = vset.pattern.permute.xlu0 %v1397
        %1399 = vperm.xlu0 %1398, %v1376
        %v1400 = vpop.permute.xlu0 %1399
        %v1401 = vlaneseq
        %v1402 = vshrl.u32 %v1401, 7
        %v1403 = vadd.s32 %v1402, 32
        %1404 = vset.pattern.permute.xlu0 %v1403
        %1405 = vperm.xlu0 %1404, %v1376
        %v1406 = vpop.permute.xlu0 %1405
        %v1407 = vlaneseq
        %v1408 = vshrl.u32 %v1407, 7
        %v1409 = vadd.s32 %v1408, 40
        %1410 = vset.pattern.permute.xlu0 %v1409
        %1411 = vperm.xlu0 %1410, %v1376
        %v1412 = vpop.permute.xlu0 %1411
        %v1413 = vlaneseq
        %v1414 = vshrl.u32 %v1413, 7
        %v1415 = vadd.s32 %v1414, 48
        %1416 = vset.pattern.permute.xlu0 %v1415
        %1417 = vperm.xlu0 %1416, %v1376
        %v1418 = vpop.permute.xlu0 %1417
        %v1419 = vlaneseq
        %v1420 = vshrl.u32 %v1419, 7
        %v1421 = vadd.s32 %v1420, 56
        %1422 = vset.pattern.permute.xlu0 %v1421
        %1423 = vperm.xlu0 %1422, %v1376
        %v1424 = vpop.permute.xlu0 %1423
        %v1425 = vperm.slane %v1374, 1
        %v1426 = vlaneseq
        %v1427 = vshrl.u32 %v1426, 7
        %1429 = vset.pattern.permute.xlu0 %v1427
        %1430 = vperm.xlu0 %1429, %v1425
        %v1431 = vpop.permute.xlu0 %1430
        %v1432 = vlaneseq
        %v1433 = vshrl.u32 %v1432, 7
        %v1434 = vadd.s32 %v1433, 8
        %1435 = vset.pattern.permute.xlu0 %v1434
        %1436 = vperm.xlu0 %1435, %v1425
        %v1437 = vpop.permute.xlu0 %1436
        %v1438 = vlaneseq
        %v1439 = vshrl.u32 %v1438, 7
        %v1440 = vadd.s32 %v1439, 16
        %1441 = vset.pattern.permute.xlu0 %v1440
        %1442 = vperm.xlu0 %1441, %v1425
        %v1443 = vpop.permute.xlu0 %1442
        %v1444 = vlaneseq
        %v1445 = vshrl.u32 %v1444, 7
        %v1446 = vadd.s32 %v1445, 24
        %1447 = vset.pattern.permute.xlu0 %v1446
        %1448 = vperm.xlu0 %1447, %v1425
        %v1449 = vpop.permute.xlu0 %1448
        %v1450 = vlaneseq
        %v1451 = vshrl.u32 %v1450, 7
        %v1452 = vadd.s32 %v1451, 32
        %1453 = vset.pattern.permute.xlu0 %v1452
        %1454 = vperm.xlu0 %1453, %v1425
        %v1455 = vpop.permute.xlu0 %1454
        %v1456 = vlaneseq
        %v1457 = vshrl.u32 %v1456, 7
        %v1458 = vadd.s32 %v1457, 40
        %1459 = vset.pattern.permute.xlu0 %v1458
        %1460 = vperm.xlu0 %1459, %v1425
        %v1461 = vpop.permute.xlu0 %1460
        %v1462 = vlaneseq
        %v1463 = vshrl.u32 %v1462, 7
        %v1464 = vadd.s32 %v1463, 48
        %1465 = vset.pattern.permute.xlu0 %v1464
        %1466 = vperm.xlu0 %1465, %v1425
        %v1467 = vpop.permute.xlu0 %1466
        %v1468 = vlaneseq
        %v1469 = vshrl.u32 %v1468, 7
        %v1470 = vadd.s32 %v1469, 56
        %1471 = vset.pattern.permute.xlu0 %v1470
        %1472 = vperm.xlu0 %1471, %v1425
        %v1473 = vpop.permute.xlu0 %1472
        %v1474 = vperm.slane %v1374, 2
        %v1475 = vlaneseq
        %v1476 = vshrl.u32 %v1475, 7
        %1478 = vset.pattern.permute.xlu0 %v1476
        %1479 = vperm.xlu0 %1478, %v1474
        %v1480 = vpop.permute.xlu0 %1479
        %v1481 = vlaneseq
        %v1482 = vshrl.u32 %v1481, 7
        %v1483 = vadd.s32 %v1482, 8
        %1484 = vset.pattern.permute.xlu0 %v1483
        %1485 = vperm.xlu0 %1484, %v1474
        %v1486 = vpop.permute.xlu0 %1485
        %v1487 = vlaneseq
        %v1488 = vshrl.u32 %v1487, 7
        %v1489 = vadd.s32 %v1488, 16
        %1490 = vset.pattern.permute.xlu0 %v1489
        %1491 = vperm.xlu0 %1490, %v1474
        %v1492 = vpop.permute.xlu0 %1491
        %v1493 = vlaneseq
        %v1494 = vshrl.u32 %v1493, 7
        %v1495 = vadd.s32 %v1494, 24
        %1496 = vset.pattern.permute.xlu0 %v1495
        %1497 = vperm.xlu0 %1496, %v1474
        %v1498 = vpop.permute.xlu0 %1497
        %v1499 = vlaneseq
        %v1500 = vshrl.u32 %v1499, 7
        %v1501 = vadd.s32 %v1500, 32
        %1502 = vset.pattern.permute.xlu0 %v1501
        %1503 = vperm.xlu0 %1502, %v1474
        %v1504 = vpop.permute.xlu0 %1503
        %v1505 = vlaneseq
        %v1506 = vshrl.u32 %v1505, 7
        %v1507 = vadd.s32 %v1506, 40
        %1508 = vset.pattern.permute.xlu0 %v1507
        %1509 = vperm.xlu0 %1508, %v1474
        %v1510 = vpop.permute.xlu0 %1509
        %v1511 = vlaneseq
        %v1512 = vshrl.u32 %v1511, 7
        %v1513 = vadd.s32 %v1512, 48
        %1514 = vset.pattern.permute.xlu0 %v1513
        %1515 = vperm.xlu0 %1514, %v1474
        %v1516 = vpop.permute.xlu0 %1515
        %v1517 = vlaneseq
        %v1518 = vshrl.u32 %v1517, 7
        %v1519 = vadd.s32 %v1518, 56
        %1520 = vset.pattern.permute.xlu0 %v1519
        %1521 = vperm.xlu0 %1520, %v1474
        %v1522 = vpop.permute.xlu0 %1521
        %v1523 = vperm.slane %v1374, 3
        %v1524 = vlaneseq
        %v1525 = vshrl.u32 %v1524, 7
        %1527 = vset.pattern.permute.xlu0 %v1525
        %1528 = vperm.xlu0 %1527, %v1523
        %v1529 = vpop.permute.xlu0 %1528
        %v1530 = vlaneseq
        %v1531 = vshrl.u32 %v1530, 7
        %v1532 = vadd.s32 %v1531, 8
        %1533 = vset.pattern.permute.xlu0 %v1532
        %1534 = vperm.xlu0 %1533, %v1523
        %v1535 = vpop.permute.xlu0 %1534
        %v1536 = vlaneseq
        %v1537 = vshrl.u32 %v1536, 7
        %v1538 = vadd.s32 %v1537, 16
        %1539 = vset.pattern.permute.xlu0 %v1538
        %1540 = vperm.xlu0 %1539, %v1523
        %v1541 = vpop.permute.xlu0 %1540
        %v1542 = vlaneseq
        %v1543 = vshrl.u32 %v1542, 7
        %v1544 = vadd.s32 %v1543, 24
        %1545 = vset.pattern.permute.xlu0 %v1544
        %1546 = vperm.xlu0 %1545, %v1523
        %v1547 = vpop.permute.xlu0 %1546
        %v1548 = vlaneseq
        %v1549 = vshrl.u32 %v1548, 7
        %v1550 = vadd.s32 %v1549, 32
        %1551 = vset.pattern.permute.xlu0 %v1550
        %1552 = vperm.xlu0 %1551, %v1523
        %v1553 = vpop.permute.xlu0 %1552
        %v1554 = vlaneseq
        %v1555 = vshrl.u32 %v1554, 7
        %v1556 = vadd.s32 %v1555, 40
        %1557 = vset.pattern.permute.xlu0 %v1556
        %1558 = vperm.xlu0 %1557, %v1523
        %v1559 = vpop.permute.xlu0 %1558
        %v1560 = vlaneseq
        %v1561 = vshrl.u32 %v1560, 7
        %v1562 = vadd.s32 %v1561, 48
        %1563 = vset.pattern.permute.xlu0 %v1562
        %1564 = vperm.xlu0 %1563, %v1523
        %v1565 = vpop.permute.xlu0 %1564
        %v1566 = vlaneseq
        %v1567 = vshrl.u32 %v1566, 7
        %v1568 = vadd.s32 %v1567, 56
        %1569 = vset.pattern.permute.xlu0 %v1568
        %1570 = vperm.xlu0 %1569, %v1523
        %v1571 = vpop.permute.xlu0 %1570
        %v1572 = vperm.slane %v1374, 4
        %v1573 = vlaneseq
        %v1574 = vshrl.u32 %v1573, 7
        %1576 = vset.pattern.permute.xlu0 %v1574
        %1577 = vperm.xlu0 %1576, %v1572
        %v1578 = vpop.permute.xlu0 %1577
        %v1579 = vlaneseq
        %v1580 = vshrl.u32 %v1579, 7
        %v1581 = vadd.s32 %v1580, 8
        %1582 = vset.pattern.permute.xlu0 %v1581
        %1583 = vperm.xlu0 %1582, %v1572
        %v1584 = vpop.permute.xlu0 %1583
        %v1585 = vlaneseq
        %v1586 = vshrl.u32 %v1585, 7
        %v1587 = vadd.s32 %v1586, 16
        %1588 = vset.pattern.permute.xlu0 %v1587
        %1589 = vperm.xlu0 %1588, %v1572
        %v1590 = vpop.permute.xlu0 %1589
        %v1591 = vlaneseq
        %v1592 = vshrl.u32 %v1591, 7
        %v1593 = vadd.s32 %v1592, 24
        %1594 = vset.pattern.permute.xlu0 %v1593
        %1595 = vperm.xlu0 %1594, %v1572
        %v1596 = vpop.permute.xlu0 %1595
        %v1597 = vlaneseq
        %v1598 = vshrl.u32 %v1597, 7
        %v1599 = vadd.s32 %v1598, 32
        %1600 = vset.pattern.permute.xlu0 %v1599
        %1601 = vperm.xlu0 %1600, %v1572
        %v1602 = vpop.permute.xlu0 %1601
        %v1603 = vlaneseq
        %v1604 = vshrl.u32 %v1603, 7
        %v1605 = vadd.s32 %v1604, 40
        %1606 = vset.pattern.permute.xlu0 %v1605
        %1607 = vperm.xlu0 %1606, %v1572
        %v1608 = vpop.permute.xlu0 %1607
        %v1609 = vlaneseq
        %v1610 = vshrl.u32 %v1609, 7
        %v1611 = vadd.s32 %v1610, 48
        %1612 = vset.pattern.permute.xlu0 %v1611
        %1613 = vperm.xlu0 %1612, %v1572
        %v1614 = vpop.permute.xlu0 %1613
        %v1615 = vlaneseq
        %v1616 = vshrl.u32 %v1615, 7
        %v1617 = vadd.s32 %v1616, 56
        %1618 = vset.pattern.permute.xlu0 %v1617
        %1619 = vperm.xlu0 %1618, %v1572
        %v1620 = vpop.permute.xlu0 %1619
        %v1621 = vperm.slane %v1374, 5
        %v1622 = vlaneseq
        %v1623 = vshrl.u32 %v1622, 7
        %1625 = vset.pattern.permute.xlu0 %v1623
        %1626 = vperm.xlu0 %1625, %v1621
        %v1627 = vpop.permute.xlu0 %1626
        %v1628 = vlaneseq
        %v1629 = vshrl.u32 %v1628, 7
        %v1630 = vadd.s32 %v1629, 8
        %1631 = vset.pattern.permute.xlu0 %v1630
        %1632 = vperm.xlu0 %1631, %v1621
        %v1633 = vpop.permute.xlu0 %1632
        %v1634 = vlaneseq
        %v1635 = vshrl.u32 %v1634, 7
        %v1636 = vadd.s32 %v1635, 16
        %1637 = vset.pattern.permute.xlu0 %v1636
        %1638 = vperm.xlu0 %1637, %v1621
        %v1639 = vpop.permute.xlu0 %1638
        %v1640 = vlaneseq
        %v1641 = vshrl.u32 %v1640, 7
        %v1642 = vadd.s32 %v1641, 24
        %1643 = vset.pattern.permute.xlu0 %v1642
        %1644 = vperm.xlu0 %1643, %v1621
        %v1645 = vpop.permute.xlu0 %1644
        %v1646 = vlaneseq
        %v1647 = vshrl.u32 %v1646, 7
        %v1648 = vadd.s32 %v1647, 32
        %1649 = vset.pattern.permute.xlu0 %v1648
        %1650 = vperm.xlu0 %1649, %v1621
        %v1651 = vpop.permute.xlu0 %1650
        %v1652 = vlaneseq
        %v1653 = vshrl.u32 %v1652, 7
        %v1654 = vadd.s32 %v1653, 40
        %1655 = vset.pattern.permute.xlu0 %v1654
        %1656 = vperm.xlu0 %1655, %v1621
        %v1657 = vpop.permute.xlu0 %1656
        %v1658 = vlaneseq
        %v1659 = vshrl.u32 %v1658, 7
        %v1660 = vadd.s32 %v1659, 48
        %1661 = vset.pattern.permute.xlu0 %v1660
        %1662 = vperm.xlu0 %1661, %v1621
        %v1663 = vpop.permute.xlu0 %1662
        %v1664 = vlaneseq
        %v1665 = vshrl.u32 %v1664, 7
        %v1666 = vadd.s32 %v1665, 56
        %1667 = vset.pattern.permute.xlu0 %v1666
        %1668 = vperm.xlu0 %1667, %v1621
        %v1669 = vpop.permute.xlu0 %1668
        %v1670 = vperm.slane %v1374, 6
        %v1671 = vlaneseq
        %v1672 = vshrl.u32 %v1671, 7
        %1674 = vset.pattern.permute.xlu0 %v1672
        %1675 = vperm.xlu0 %1674, %v1670
        %v1676 = vpop.permute.xlu0 %1675
        %v1677 = vlaneseq
        %v1678 = vshrl.u32 %v1677, 7
        %v1679 = vadd.s32 %v1678, 8
        %1680 = vset.pattern.permute.xlu0 %v1679
        %1681 = vperm.xlu0 %1680, %v1670
        %v1682 = vpop.permute.xlu0 %1681
        %v1683 = vlaneseq
        %v1684 = vshrl.u32 %v1683, 7
        %v1685 = vadd.s32 %v1684, 16
        %1686 = vset.pattern.permute.xlu0 %v1685
        %1687 = vperm.xlu0 %1686, %v1670
        %v1688 = vpop.permute.xlu0 %1687
        %v1689 = vlaneseq
        %v1690 = vshrl.u32 %v1689, 7
        %v1691 = vadd.s32 %v1690, 24
        %1692 = vset.pattern.permute.xlu0 %v1691
        %1693 = vperm.xlu0 %1692, %v1670
        %v1694 = vpop.permute.xlu0 %1693
        %v1695 = vlaneseq
        %v1696 = vshrl.u32 %v1695, 7
        %v1697 = vadd.s32 %v1696, 32
        %1698 = vset.pattern.permute.xlu0 %v1697
        %1699 = vperm.xlu0 %1698, %v1670
        %v1700 = vpop.permute.xlu0 %1699
        %v1701 = vlaneseq
        %v1702 = vshrl.u32 %v1701, 7
        %v1703 = vadd.s32 %v1702, 40
        %1704 = vset.pattern.permute.xlu0 %v1703
        %1705 = vperm.xlu0 %1704, %v1670
        %v1706 = vpop.permute.xlu0 %1705
        %v1707 = vlaneseq
        %v1708 = vshrl.u32 %v1707, 7
        %v1709 = vadd.s32 %v1708, 48
        %1710 = vset.pattern.permute.xlu0 %v1709
        %1711 = vperm.xlu0 %1710, %v1670
        %v1712 = vpop.permute.xlu0 %1711
        %v1713 = vlaneseq
        %v1714 = vshrl.u32 %v1713, 7
        %v1715 = vadd.s32 %v1714, 56
        %1716 = vset.pattern.permute.xlu0 %v1715
        %1717 = vperm.xlu0 %1716, %v1670
        %v1718 = vpop.permute.xlu0 %1717
        %v1719 = vperm.slane %v1374, 7
        %v1720 = vlaneseq
        %v1721 = vshrl.u32 %v1720, 7
        %1723 = vset.pattern.permute.xlu0 %v1721
        %1724 = vperm.xlu0 %1723, %v1719
        %v1725 = vpop.permute.xlu0 %1724
        %v1726 = vlaneseq
        %v1727 = vshrl.u32 %v1726, 7
        %v1728 = vadd.s32 %v1727, 8
        %1729 = vset.pattern.permute.xlu0 %v1728
        %1730 = vperm.xlu0 %1729, %v1719
        %v1731 = vpop.permute.xlu0 %1730
        %v1732 = vlaneseq
        %v1733 = vshrl.u32 %v1732, 7
        %v1734 = vadd.s32 %v1733, 16
        %1735 = vset.pattern.permute.xlu0 %v1734
        %1736 = vperm.xlu0 %1735, %v1719
        %v1737 = vpop.permute.xlu0 %1736
        %v1738 = vlaneseq
        %v1739 = vshrl.u32 %v1738, 7
        %v1740 = vadd.s32 %v1739, 24
        %1741 = vset.pattern.permute.xlu0 %v1740
        %1742 = vperm.xlu0 %1741, %v1719
        %v1743 = vpop.permute.xlu0 %1742
        %v1744 = vlaneseq
        %v1745 = vshrl.u32 %v1744, 7
        %v1746 = vadd.s32 %v1745, 32
        %1747 = vset.pattern.permute.xlu0 %v1746
        %1748 = vperm.xlu0 %1747, %v1719
        %v1749 = vpop.permute.xlu0 %1748
        %v1750 = vlaneseq
        %v1751 = vshrl.u32 %v1750, 7
        %v1752 = vadd.s32 %v1751, 40
        %1753 = vset.pattern.permute.xlu0 %v1752
        %1754 = vperm.xlu0 %1753, %v1719
        %v1755 = vpop.permute.xlu0 %1754
        %v1756 = vlaneseq
        %v1757 = vshrl.u32 %v1756, 7
        %v1758 = vadd.s32 %v1757, 48
        %1759 = vset.pattern.permute.xlu0 %v1758
        %1760 = vperm.xlu0 %1759, %v1719
        %v1761 = vpop.permute.xlu0 %1760
        %v1762 = vlaneseq
        %v1763 = vshrl.u32 %v1762, 7
        %v1764 = vadd.s32 %v1763, 56
        %1765 = vset.pattern.permute.xlu0 %v1764
        %1766 = vperm.xlu0 %1765, %v1719
        %v1767 = vpop.permute.xlu0 %1766
        %v1832 = vmul.f32 %v806, %v1382
        %v1833 = vmul.f32 %v807, %v1388
        %v1834 = vmul.f32 %v808, %v1394
        %v1835 = vmul.f32 %v809, %v1400
        %v1836 = vmul.f32 %v810, %v1406
        %v1837 = vmul.f32 %v811, %v1412
        %v1838 = vmul.f32 %v812, %v1418
        %v1839 = vmul.f32 %v813, %v1424
        %v1840 = vmul.f32 %v814, %v1431
        %v1841 = vmul.f32 %v815, %v1437
        %v1842 = vmul.f32 %v816, %v1443
        %v1843 = vmul.f32 %v817, %v1449
        %v1844 = vmul.f32 %v818, %v1455
        %v1845 = vmul.f32 %v819, %v1461
        %v1846 = vmul.f32 %v820, %v1467
        %v1847 = vmul.f32 %v821, %v1473
        %v1848 = vmul.f32 %v822, %v1480
        %v1849 = vmul.f32 %v823, %v1486
        %v1850 = vmul.f32 %v824, %v1492
        %v1851 = vmul.f32 %v825, %v1498
        %v1852 = vmul.f32 %v826, %v1504
        %v1853 = vmul.f32 %v827, %v1510
        %v1854 = vmul.f32 %v828, %v1516
        %v1855 = vmul.f32 %v829, %v1522
        %v1856 = vmul.f32 %v830, %v1529
        %v1857 = vmul.f32 %v831, %v1535
        %v1858 = vmul.f32 %v832, %v1541
        %v1859 = vmul.f32 %v833, %v1547
        %v1860 = vmul.f32 %v834, %v1553
        %v1861 = vmul.f32 %v835, %v1559
        %v1862 = vmul.f32 %v836, %v1565
        %v1863 = vmul.f32 %v837, %v1571
        %v1864 = vmul.f32 %v838, %v1578
        %v1865 = vmul.f32 %v839, %v1584
        %v1866 = vmul.f32 %v840, %v1590
        %v1867 = vmul.f32 %v841, %v1596
        %v1868 = vmul.f32 %v842, %v1602
        %v1869 = vmul.f32 %v843, %v1608
        %v1870 = vmul.f32 %v844, %v1614
        %v1871 = vmul.f32 %v845, %v1620
        %v1872 = vmul.f32 %v846, %v1627
        %v1873 = vmul.f32 %v847, %v1633
        %v1874 = vmul.f32 %v848, %v1639
        %v1875 = vmul.f32 %v849, %v1645
        %v1876 = vmul.f32 %v850, %v1651
        %v1877 = vmul.f32 %v851, %v1657
        %v1878 = vmul.f32 %v852, %v1663
        %v1879 = vmul.f32 %v853, %v1669
        %v1880 = vmul.f32 %v854, %v1676
        %v1881 = vmul.f32 %v855, %v1682
        %v1882 = vmul.f32 %v856, %v1688
        %v1883 = vmul.f32 %v857, %v1694
        %v1884 = vmul.f32 %v858, %v1700
        %v1885 = vmul.f32 %v859, %v1706
        %v1886 = vmul.f32 %v860, %v1712
        %v1887 = vmul.f32 %v861, %v1718
        %v1888 = vmul.f32 %v862, %v1725
        %v1889 = vmul.f32 %v863, %v1731
        %v1890 = vmul.f32 %v864, %v1737
        %v1891 = vmul.f32 %v865, %v1743
        %v1892 = vmul.f32 %v866, %v1749
        %v1893 = vmul.f32 %v867, %v1755
        %v1894 = vmul.f32 %v868, %v1761
        %v1895 = vmul.f32 %v869, %v1767
        %1960 = vset.pattern.permute.xlu0 0
        %1961 = vperm.xlu0 %1960, %v1832
        %v1962 = vpop.permute.xlu0 %1961
        %1963 = vset.pattern.permute.xlu0 0
        %1964 = vperm.xlu0 %1963, %v1833
        %v1965 = vpop.permute.xlu0 %1964
        %1966 = vset.pattern.permute.xlu0 0
        %1967 = vperm.xlu0 %1966, %v1834
        %v1968 = vpop.permute.xlu0 %1967
        %1969 = vset.pattern.permute.xlu0 0
        %1970 = vperm.xlu0 %1969, %v1835
        %v1971 = vpop.permute.xlu0 %1970
        %1972 = vset.pattern.permute.xlu0 0
        %1973 = vperm.xlu0 %1972, %v1836
        %v1974 = vpop.permute.xlu0 %1973
        %1975 = vset.pattern.permute.xlu0 0
        %1976 = vperm.xlu0 %1975, %v1837
        %v1977 = vpop.permute.xlu0 %1976
        %1978 = vset.pattern.permute.xlu0 0
        %1979 = vperm.xlu0 %1978, %v1838
        %v1980 = vpop.permute.xlu0 %1979
        %1981 = vset.pattern.permute.xlu0 0
        %1982 = vperm.xlu0 %1981, %v1839
        %v1983 = vpop.permute.xlu0 %1982
        %1984 = vset.pattern.permute.xlu0 0
        %1985 = vperm.xlu0 %1984, %v1840
        %v1986 = vpop.permute.xlu0 %1985
        %1987 = vset.pattern.permute.xlu0 0
        %1988 = vperm.xlu0 %1987, %v1841
        %v1989 = vpop.permute.xlu0 %1988
        %1990 = vset.pattern.permute.xlu0 0
        %1991 = vperm.xlu0 %1990, %v1842
        %v1992 = vpop.permute.xlu0 %1991
        %1993 = vset.pattern.permute.xlu0 0
        %1994 = vperm.xlu0 %1993, %v1843
        %v1995 = vpop.permute.xlu0 %1994
        %1996 = vset.pattern.permute.xlu0 0
        %1997 = vperm.xlu0 %1996, %v1844
        %v1998 = vpop.permute.xlu0 %1997
        %1999 = vset.pattern.permute.xlu0 0
        %2000 = vperm.xlu0 %1999, %v1845
        %v2001 = vpop.permute.xlu0 %2000
        %2002 = vset.pattern.permute.xlu0 0
        %2003 = vperm.xlu0 %2002, %v1846
        %v2004 = vpop.permute.xlu0 %2003
        %2005 = vset.pattern.permute.xlu0 0
        %2006 = vperm.xlu0 %2005, %v1847
        %v2007 = vpop.permute.xlu0 %2006
        %2008 = vset.pattern.permute.xlu0 0
        %2009 = vperm.xlu0 %2008, %v1848
        %v2010 = vpop.permute.xlu0 %2009
        %2011 = vset.pattern.permute.xlu0 0
        %2012 = vperm.xlu0 %2011, %v1849
        %v2013 = vpop.permute.xlu0 %2012
        %2014 = vset.pattern.permute.xlu0 0
        %2015 = vperm.xlu0 %2014, %v1850
        %v2016 = vpop.permute.xlu0 %2015
        %2017 = vset.pattern.permute.xlu0 0
        %2018 = vperm.xlu0 %2017, %v1851
        %v2019 = vpop.permute.xlu0 %2018
        %2020 = vset.pattern.permute.xlu0 0
        %2021 = vperm.xlu0 %2020, %v1852
        %v2022 = vpop.permute.xlu0 %2021
        %2023 = vset.pattern.permute.xlu0 0
        %2024 = vperm.xlu0 %2023, %v1853
        %v2025 = vpop.permute.xlu0 %2024
        %2026 = vset.pattern.permute.xlu0 0
        %2027 = vperm.xlu0 %2026, %v1854
        %v2028 = vpop.permute.xlu0 %2027
        %2029 = vset.pattern.permute.xlu0 0
        %2030 = vperm.xlu0 %2029, %v1855
        %v2031 = vpop.permute.xlu0 %2030
        %2032 = vset.pattern.permute.xlu0 0
        %2033 = vperm.xlu0 %2032, %v1856
        %v2034 = vpop.permute.xlu0 %2033
        %2035 = vset.pattern.permute.xlu0 0
        %2036 = vperm.xlu0 %2035, %v1857
        %v2037 = vpop.permute.xlu0 %2036
        %2038 = vset.pattern.permute.xlu0 0
        %2039 = vperm.xlu0 %2038, %v1858
        %v2040 = vpop.permute.xlu0 %2039
        %2041 = vset.pattern.permute.xlu0 0
        %2042 = vperm.xlu0 %2041, %v1859
        %v2043 = vpop.permute.xlu0 %2042
        %2044 = vset.pattern.permute.xlu0 0
        %2045 = vperm.xlu0 %2044, %v1860
        %v2046 = vpop.permute.xlu0 %2045
        %2047 = vset.pattern.permute.xlu0 0
        %2048 = vperm.xlu0 %2047, %v1861
        %v2049 = vpop.permute.xlu0 %2048
        %2050 = vset.pattern.permute.xlu0 0
        %2051 = vperm.xlu0 %2050, %v1862
        %v2052 = vpop.permute.xlu0 %2051
        %2053 = vset.pattern.permute.xlu0 0
        %2054 = vperm.xlu0 %2053, %v1863
        %v2055 = vpop.permute.xlu0 %2054
        %2056 = vset.pattern.permute.xlu0 0
        %2057 = vperm.xlu0 %2056, %v1864
        %v2058 = vpop.permute.xlu0 %2057
        %2059 = vset.pattern.permute.xlu0 0
        %2060 = vperm.xlu0 %2059, %v1865
        %v2061 = vpop.permute.xlu0 %2060
        %2062 = vset.pattern.permute.xlu0 0
        %2063 = vperm.xlu0 %2062, %v1866
        %v2064 = vpop.permute.xlu0 %2063
        %2065 = vset.pattern.permute.xlu0 0
        %2066 = vperm.xlu0 %2065, %v1867
        %v2067 = vpop.permute.xlu0 %2066
        %2068 = vset.pattern.permute.xlu0 0
        %2069 = vperm.xlu0 %2068, %v1868
        %v2070 = vpop.permute.xlu0 %2069
        %2071 = vset.pattern.permute.xlu0 0
        %2072 = vperm.xlu0 %2071, %v1869
        %v2073 = vpop.permute.xlu0 %2072
        %2074 = vset.pattern.permute.xlu0 0
        %2075 = vperm.xlu0 %2074, %v1870
        %v2076 = vpop.permute.xlu0 %2075
        %2077 = vset.pattern.permute.xlu0 0
        %2078 = vperm.xlu0 %2077, %v1871
        %v2079 = vpop.permute.xlu0 %2078
        %2080 = vset.pattern.permute.xlu0 0
        %2081 = vperm.xlu0 %2080, %v1872
        %v2082 = vpop.permute.xlu0 %2081
        %2083 = vset.pattern.permute.xlu0 0
        %2084 = vperm.xlu0 %2083, %v1873
        %v2085 = vpop.permute.xlu0 %2084
        %2086 = vset.pattern.permute.xlu0 0
        %2087 = vperm.xlu0 %2086, %v1874
        %v2088 = vpop.permute.xlu0 %2087
        %2089 = vset.pattern.permute.xlu0 0
        %2090 = vperm.xlu0 %2089, %v1875
        %v2091 = vpop.permute.xlu0 %2090
        %2092 = vset.pattern.permute.xlu0 0
        %2093 = vperm.xlu0 %2092, %v1876
        %v2094 = vpop.permute.xlu0 %2093
        %2095 = vset.pattern.permute.xlu0 0
        %2096 = vperm.xlu0 %2095, %v1877
        %v2097 = vpop.permute.xlu0 %2096
        %2098 = vset.pattern.permute.xlu0 0
        %2099 = vperm.xlu0 %2098, %v1878
        %v2100 = vpop.permute.xlu0 %2099
        %2101 = vset.pattern.permute.xlu0 0
        %2102 = vperm.xlu0 %2101, %v1879
        %v2103 = vpop.permute.xlu0 %2102
        %2104 = vset.pattern.permute.xlu0 0
        %2105 = vperm.xlu0 %2104, %v1880
        %v2106 = vpop.permute.xlu0 %2105
        %2107 = vset.pattern.permute.xlu0 0
        %2108 = vperm.xlu0 %2107, %v1881
        %v2109 = vpop.permute.xlu0 %2108
        %2110 = vset.pattern.permute.xlu0 0
        %2111 = vperm.xlu0 %2110, %v1882
        %v2112 = vpop.permute.xlu0 %2111
        %2113 = vset.pattern.permute.xlu0 0
        %2114 = vperm.xlu0 %2113, %v1883
        %v2115 = vpop.permute.xlu0 %2114
        %2116 = vset.pattern.permute.xlu0 0
        %2117 = vperm.xlu0 %2116, %v1884
        %v2118 = vpop.permute.xlu0 %2117
        %2119 = vset.pattern.permute.xlu0 0
        %2120 = vperm.xlu0 %2119, %v1885
        %v2121 = vpop.permute.xlu0 %2120
        %2122 = vset.pattern.permute.xlu0 0
        %2123 = vperm.xlu0 %2122, %v1886
        %v2124 = vpop.permute.xlu0 %2123
        %2125 = vset.pattern.permute.xlu0 0
        %2126 = vperm.xlu0 %2125, %v1887
        %v2127 = vpop.permute.xlu0 %2126
        %2128 = vset.pattern.permute.xlu0 0
        %2129 = vperm.xlu0 %2128, %v1888
        %v2130 = vpop.permute.xlu0 %2129
        %2131 = vset.pattern.permute.xlu0 0
        %2132 = vperm.xlu0 %2131, %v1889
        %v2133 = vpop.permute.xlu0 %2132
        %2134 = vset.pattern.permute.xlu0 0
        %2135 = vperm.xlu0 %2134, %v1890
        %v2136 = vpop.permute.xlu0 %2135
        %2137 = vset.pattern.permute.xlu0 0
        %2138 = vperm.xlu0 %2137, %v1891
        %v2139 = vpop.permute.xlu0 %2138
        %2140 = vset.pattern.permute.xlu0 0
        %2141 = vperm.xlu0 %2140, %v1892
        %v2142 = vpop.permute.xlu0 %2141
        %2143 = vset.pattern.permute.xlu0 0
        %2144 = vperm.xlu0 %2143, %v1893
        %v2145 = vpop.permute.xlu0 %2144
        %2146 = vset.pattern.permute.xlu0 0
        %2147 = vperm.xlu0 %2146, %v1894
        %v2148 = vpop.permute.xlu0 %2147
        %2149 = vset.pattern.permute.xlu0 0
        %2150 = vperm.xlu0 %2149, %v1895
        %v2151 = vpop.permute.xlu0 %2150
        %v2152 = vperm.slane %v1962, %v1203
        %v2153 = vadd.s32 %v1203, 4294967288
        %v2154 = vperm.slane %v1965, %v2153
        %vm2155 = vcmask 130112
        %v2156 = vsel %vm2155, %v2154, %v2152
        %v2157 = vadd.s32 %v1203, 4294967280
        %v2158 = vperm.slane %v1968, %v2157
        %vm2159 = vcmask 195712
        %v2160 = vsel %vm2159, %v2158, %v2156
        %v2161 = vadd.s32 %v1203, 4294967272
        %v2162 = vperm.slane %v1971, %v2161
        %vm2163 = vcmask 261312
        %v2164 = vsel %vm2163, %v2162, %v2160
        %v2165 = vadd.s32 %v1203, 4294967264
        %v2166 = vperm.slane %v1974, %v2165
        %vm2167 = vcmask 326912
        %v2168 = vsel %vm2167, %v2166, %v2164
        %v2169 = vadd.s32 %v1203, 4294967256
        %v2170 = vperm.slane %v1977, %v2169
        %vm2171 = vcmask 392512
        %v2172 = vsel %vm2171, %v2170, %v2168
        %v2173 = vadd.s32 %v1203, 4294967248
        %v2174 = vperm.slane %v1980, %v2173
        %vm2175 = vcmask 458112
        %v2176 = vsel %vm2175, %v2174, %v2172
        %v2177 = vadd.s32 %v1203, 4294967240
        %v2178 = vperm.slane %v1983, %v2177
        %vm2179 = vcmask 523712
        %v2180 = vsel %vm2179, %v2178, %v2176
        %v2181 = vperm.slane %v1986, %v1203
        %v2182 = vperm.slane %v1989, %v2153
        %v2183 = vsel %vm2155, %v2182, %v2181
        %v2184 = vperm.slane %v1992, %v2157
        %v2185 = vsel %vm2159, %v2184, %v2183
        %v2186 = vperm.slane %v1995, %v2161
        %v2187 = vsel %vm2163, %v2186, %v2185
        %v2188 = vperm.slane %v1998, %v2165
        %v2189 = vsel %vm2167, %v2188, %v2187
        %v2190 = vperm.slane %v2001, %v2169
        %v2191 = vsel %vm2171, %v2190, %v2189
        %v2192 = vperm.slane %v2004, %v2173
        %v2193 = vsel %vm2175, %v2192, %v2191
        %v2194 = vperm.slane %v2007, %v2177
        %v2195 = vsel %vm2179, %v2194, %v2193
        %v2196 = vperm.slane %v2010, %v1203
        %v2197 = vperm.slane %v2013, %v2153
        %v2198 = vsel %vm2155, %v2197, %v2196
        %v2199 = vperm.slane %v2016, %v2157
        %v2200 = vsel %vm2159, %v2199, %v2198
        %v2201 = vperm.slane %v2019, %v2161
        %v2202 = vsel %vm2163, %v2201, %v2200
        %v2203 = vperm.slane %v2022, %v2165
        %v2204 = vsel %vm2167, %v2203, %v2202
        %v2205 = vperm.slane %v2025, %v2169
        %v2206 = vsel %vm2171, %v2205, %v2204
        %v2207 = vperm.slane %v2028, %v2173
        %v2208 = vsel %vm2175, %v2207, %v2206
        %v2209 = vperm.slane %v2031, %v2177
        %v2210 = vsel %vm2179, %v2209, %v2208
        %v2211 = vperm.slane %v2034, %v1203
        %v2212 = vperm.slane %v2037, %v2153
        %v2213 = vsel %vm2155, %v2212, %v2211
        %v2214 = vperm.slane %v2040, %v2157
        %v2215 = vsel %vm2159, %v2214, %v2213
        %v2216 = vperm.slane %v2043, %v2161
        %v2217 = vsel %vm2163, %v2216, %v2215
        %v2218 = vperm.slane %v2046, %v2165
        %v2219 = vsel %vm2167, %v2218, %v2217
        %v2220 = vperm.slane %v2049, %v2169
        %v2221 = vsel %vm2171, %v2220, %v2219
        %v2222 = vperm.slane %v2052, %v2173
        %v2223 = vsel %vm2175, %v2222, %v2221
        %v2224 = vperm.slane %v2055, %v2177
        %v2225 = vsel %vm2179, %v2224, %v2223
        %v2226 = vperm.slane %v2058, %v1203
        %v2227 = vperm.slane %v2061, %v2153
        %v2228 = vsel %vm2155, %v2227, %v2226
        %v2229 = vperm.slane %v2064, %v2157
        %v2230 = vsel %vm2159, %v2229, %v2228
        %v2231 = vperm.slane %v2067, %v2161
        %v2232 = vsel %vm2163, %v2231, %v2230
        %v2233 = vperm.slane %v2070, %v2165
        %v2234 = vsel %vm2167, %v2233, %v2232
        %v2235 = vperm.slane %v2073, %v2169
        %v2236 = vsel %vm2171, %v2235, %v2234
        %v2237 = vperm.slane %v2076, %v2173
        %v2238 = vsel %vm2175, %v2237, %v2236
        %v2239 = vperm.slane %v2079, %v2177
        %v2240 = vsel %vm2179, %v2239, %v2238
        %v2241 = vperm.slane %v2082, %v1203
        %v2242 = vperm.slane %v2085, %v2153
        %v2243 = vsel %vm2155, %v2242, %v2241
        %v2244 = vperm.slane %v2088, %v2157
        %v2245 = vsel %vm2159, %v2244, %v2243
        %v2246 = vperm.slane %v2091, %v2161
        %v2247 = vsel %vm2163, %v2246, %v2245
        %v2248 = vperm.slane %v2094, %v2165
        %v2249 = vsel %vm2167, %v2248, %v2247
        %v2250 = vperm.slane %v2097, %v2169
        %v2251 = vsel %vm2171, %v2250, %v2249
        %v2252 = vperm.slane %v2100, %v2173
        %v2253 = vsel %vm2175, %v2252, %v2251
        %v2254 = vperm.slane %v2103, %v2177
        %v2255 = vsel %vm2179, %v2254, %v2253
        %v2256 = vperm.slane %v2106, %v1203
        %v2257 = vperm.slane %v2109, %v2153
        %v2258 = vsel %vm2155, %v2257, %v2256
        %v2259 = vperm.slane %v2112, %v2157
        %v2260 = vsel %vm2159, %v2259, %v2258
        %v2261 = vperm.slane %v2115, %v2161
        %v2262 = vsel %vm2163, %v2261, %v2260
        %v2263 = vperm.slane %v2118, %v2165
        %v2264 = vsel %vm2167, %v2263, %v2262
        %v2265 = vperm.slane %v2121, %v2169
        %v2266 = vsel %vm2171, %v2265, %v2264
        %v2267 = vperm.slane %v2124, %v2173
        %v2268 = vsel %vm2175, %v2267, %v2266
        %v2269 = vperm.slane %v2127, %v2177
        %v2270 = vsel %vm2179, %v2269, %v2268
        %v2271 = vperm.slane %v2130, %v1203
        %v2272 = vperm.slane %v2133, %v2153
        %v2273 = vsel %vm2155, %v2272, %v2271
        %v2274 = vperm.slane %v2136, %v2157
        %v2275 = vsel %vm2159, %v2274, %v2273
        %v2276 = vperm.slane %v2139, %v2161
        %v2277 = vsel %vm2163, %v2276, %v2275
        %v2278 = vperm.slane %v2142, %v2165
        %v2279 = vsel %vm2167, %v2278, %v2277
        %v2280 = vperm.slane %v2145, %v2169
        %v2281 = vsel %vm2171, %v2280, %v2279
        %v2282 = vperm.slane %v2148, %v2173
        %v2283 = vsel %vm2175, %v2282, %v2281
        %v2284 = vperm.slane %v2151, %v2177
        %v2285 = vsel %vm2179, %v2284, %v2283
        %v2286 = vsel %vm1250, %v2195, %v2180
        %v2287 = vsel %vm1252, %v2210, %v2286
        %v2288 = vsel %vm1254, %v2225, %v2287
        %v2289 = vsel %vm1256, %v2240, %v2288
        %v2290 = vsel %vm1258, %v2255, %v2289
        %v2291 = vsel %vm1260, %v2270, %v2290
        %v2292 = vsel %vm1262, %v2285, %v2291
        %vm2294 = vcmask 523264
        %v2295 = vsel %vm2294, %v2292, 0.0
        %2296 = vadd.xlane.f32.xlu0 %v2295
        %v2297 = vpop.xlane.xlu0 %2296
        %v2298 = vmax.f32 %v2297, 0.0
        %v2299 = vmul.f32 %v2297, %v336
        %v2300 = vsub.f32 %v2298, %v2299
        %v2301 = vand.u32 2147483647, %v2297
        %v2302 = vsub.f32 0.0, %v2301
        %v2303 = vmul.f32 %v2302, 1.442695
        %v2304 = vpow.pop %v2303
        %v2305 = vadd.f32 %v2304, 1.0
        %v2306 = vlog2.pop %v2305
        %v2307 = vmul.f32 %v2306, 0.6931472
        %v2308 = vmul.f32 -0.5, %v2304
        %v2309 = vadd.f32 %v2308, 1.0
        %v2310 = vmul.f32 %v2309, %v2304
        %v2311 = vand.u32 2147483647, %v2304
        %vm2312 = vcmp.lt.f32.partialorder %v2311, 0.0004427343
        %v2313 = vsel %vm2312, %v2310, %v2307
        %v2314 = vadd.f32 %v2300, %v2313
        %vm2315 = vcmp.ge.f32.partialorder %v336, 0.0
        %v2316 = vsel %vm2315, %v336, 0.0
        %v2317 = vmax.f32 %v1131, 0.0
        %v2318 = vmax.f32 %v1132, 0.0
        %v2319 = vmax.f32 %v1133, 0.0
        %v2320 = vmax.f32 %v1134, 0.0
        %v2321 = vmax.f32 %v1135, 0.0
        %v2322 = vmax.f32 %v1136, 0.0
        %v2323 = vmax.f32 %v1137, 0.0
        %v2324 = vmax.f32 %v1138, 0.0
        %v2325 = vmax.f32 %v1139, 0.0
        %v2326 = vmax.f32 %v1140, 0.0
        %v2327 = vmax.f32 %v1141, 0.0
        %v2328 = vmax.f32 %v1142, 0.0
        %v2329 = vmax.f32 %v1143, 0.0
        %v2330 = vmax.f32 %v1144, 0.0
        %v2331 = vmax.f32 %v1145, 0.0
        %v2332 = vmax.f32 %v1146, 0.0
        %v2333 = vmax.f32 %v1147, 0.0
        %v2334 = vmax.f32 %v1148, 0.0
        %v2335 = vmax.f32 %v1149, 0.0
        %v2336 = vmax.f32 %v1150, 0.0
        %v2337 = vmax.f32 %v1151, 0.0
        %v2338 = vmax.f32 %v1152, 0.0
        %v2339 = vmax.f32 %v1153, 0.0
        %v2340 = vmax.f32 %v1154, 0.0
        %v2341 = vmax.f32 %v1155, 0.0
        %v2342 = vmax.f32 %v1156, 0.0
        %v2343 = vmax.f32 %v1157, 0.0
        %v2344 = vmax.f32 %v1158, 0.0
        %v2345 = vmax.f32 %v1159, 0.0
        %v2346 = vmax.f32 %v1160, 0.0
        %v2347 = vmax.f32 %v1161, 0.0
        %v2348 = vmax.f32 %v1162, 0.0
        %v2349 = vmax.f32 %v1163, 0.0
        %v2350 = vmax.f32 %v1164, 0.0
        %v2351 = vmax.f32 %v1165, 0.0
        %v2352 = vmax.f32 %v1166, 0.0
        %v2353 = vmax.f32 %v1167, 0.0
        %v2354 = vmax.f32 %v1168, 0.0
        %v2355 = vmax.f32 %v1169, 0.0
        %v2356 = vmax.f32 %v1170, 0.0
        %v2357 = vmax.f32 %v1171, 0.0
        %v2358 = vmax.f32 %v1172, 0.0
        %v2359 = vmax.f32 %v1173, 0.0
        %v2360 = vmax.f32 %v1174, 0.0
        %v2361 = vmax.f32 %v1175, 0.0
        %v2362 = vmax.f32 %v1176, 0.0
        %v2363 = vmax.f32 %v1177, 0.0
        %v2364 = vmax.f32 %v1178, 0.0
        %v2365 = vmax.f32 %v1179, 0.0
        %v2366 = vmax.f32 %v1180, 0.0
        %v2367 = vmax.f32 %v1181, 0.0
        %v2368 = vmax.f32 %v1182, 0.0
        %v2369 = vmax.f32 %v1183, 0.0
        %v2370 = vmax.f32 %v1184, 0.0
        %v2371 = vmax.f32 %v1185, 0.0
        %v2372 = vmax.f32 %v1186, 0.0
        %v2373 = vmax.f32 %v1187, 0.0
        %v2374 = vmax.f32 %v1188, 0.0
        %v2375 = vmax.f32 %v1189, 0.0
        %v2376 = vmax.f32 %v1190, 0.0
        %v2377 = vmax.f32 %v1191, 0.0
        %v2378 = vmax.f32 %v1192, 0.0
        %v2379 = vmax.f32 %v1193, 0.0
        %v2380 = vmax.f32 %v1194, 0.0
        %v2382 = vperm.slane %v2316, 0
        %v2383 = vlaneseq
        %v2384 = vshrl.u32 %v2383, 7
        %v2385 = vadd.s32 %v2384, 64
        %2386 = vset.pattern.permute.xlu0 %v2385
        %2387 = vperm.xlu0 %2386, %v2382
        %v2388 = vpop.permute.xlu0 %2387
        %v2389 = vlaneseq
        %v2390 = vshrl.u32 %v2389, 7
        %v2391 = vadd.s32 %v2390, 72
        %2392 = vset.pattern.permute.xlu0 %v2391
        %2393 = vperm.xlu0 %2392, %v2382
        %v2394 = vpop.permute.xlu0 %2393
        %v2395 = vlaneseq
        %v2396 = vshrl.u32 %v2395, 7
        %v2397 = vadd.s32 %v2396, 80
        %2398 = vset.pattern.permute.xlu0 %v2397
        %2399 = vperm.xlu0 %2398, %v2382
        %v2400 = vpop.permute.xlu0 %2399
        %v2401 = vlaneseq
        %v2402 = vshrl.u32 %v2401, 7
        %v2403 = vadd.s32 %v2402, 88
        %2404 = vset.pattern.permute.xlu0 %v2403
        %2405 = vperm.xlu0 %2404, %v2382
        %v2406 = vpop.permute.xlu0 %2405
        %v2407 = vlaneseq
        %v2408 = vshrl.u32 %v2407, 7
        %v2409 = vadd.s32 %v2408, 96
        %2410 = vset.pattern.permute.xlu0 %v2409
        %2411 = vperm.xlu0 %2410, %v2382
        %v2412 = vpop.permute.xlu0 %2411
        %v2413 = vlaneseq
        %v2414 = vshrl.u32 %v2413, 7
        %v2415 = vadd.s32 %v2414, 104
        %2416 = vset.pattern.permute.xlu0 %v2415
        %2417 = vperm.xlu0 %2416, %v2382
        %v2418 = vpop.permute.xlu0 %2417
        %v2419 = vlaneseq
        %v2420 = vshrl.u32 %v2419, 7
        %v2421 = vadd.s32 %v2420, 112
        %2422 = vset.pattern.permute.xlu0 %v2421
        %2423 = vperm.xlu0 %2422, %v2382
        %v2424 = vpop.permute.xlu0 %2423
        %v2425 = vlaneseq
        %v2426 = vshrl.u32 %v2425, 7
        %v2427 = vadd.s32 %v2426, 120
        %2428 = vset.pattern.permute.xlu0 %v2427
        %2429 = vperm.xlu0 %2428, %v2382
        %v2430 = vpop.permute.xlu0 %2429
        %v2431 = vperm.slane %v2316, 1
        %v2432 = vlaneseq
        %v2433 = vshrl.u32 %v2432, 7
        %v2434 = vadd.s32 %v2433, 64
        %2435 = vset.pattern.permute.xlu0 %v2434
        %2436 = vperm.xlu0 %2435, %v2431
        %v2437 = vpop.permute.xlu0 %2436
        %v2438 = vlaneseq
        %v2439 = vshrl.u32 %v2438, 7
        %v2440 = vadd.s32 %v2439, 72
        %2441 = vset.pattern.permute.xlu0 %v2440
        %2442 = vperm.xlu0 %2441, %v2431
        %v2443 = vpop.permute.xlu0 %2442
        %v2444 = vlaneseq
        %v2445 = vshrl.u32 %v2444, 7
        %v2446 = vadd.s32 %v2445, 80
        %2447 = vset.pattern.permute.xlu0 %v2446
        %2448 = vperm.xlu0 %2447, %v2431
        %v2449 = vpop.permute.xlu0 %2448
        %v2450 = vlaneseq
        %v2451 = vshrl.u32 %v2450, 7
        %v2452 = vadd.s32 %v2451, 88
        %2453 = vset.pattern.permute.xlu0 %v2452
        %2454 = vperm.xlu0 %2453, %v2431
        %v2455 = vpop.permute.xlu0 %2454
        %v2456 = vlaneseq
        %v2457 = vshrl.u32 %v2456, 7
        %v2458 = vadd.s32 %v2457, 96
        %2459 = vset.pattern.permute.xlu0 %v2458
        %2460 = vperm.xlu0 %2459, %v2431
        %v2461 = vpop.permute.xlu0 %2460
        %v2462 = vlaneseq
        %v2463 = vshrl.u32 %v2462, 7
        %v2464 = vadd.s32 %v2463, 104
        %2465 = vset.pattern.permute.xlu0 %v2464
        %2466 = vperm.xlu0 %2465, %v2431
        %v2467 = vpop.permute.xlu0 %2466
        %v2468 = vlaneseq
        %v2469 = vshrl.u32 %v2468, 7
        %v2470 = vadd.s32 %v2469, 112
        %2471 = vset.pattern.permute.xlu0 %v2470
        %2472 = vperm.xlu0 %2471, %v2431
        %v2473 = vpop.permute.xlu0 %2472
        %v2474 = vlaneseq
        %v2475 = vshrl.u32 %v2474, 7
        %v2476 = vadd.s32 %v2475, 120
        %2477 = vset.pattern.permute.xlu0 %v2476
        %2478 = vperm.xlu0 %2477, %v2431
        %v2479 = vpop.permute.xlu0 %2478
        %v2480 = vperm.slane %v2316, 2
        %v2481 = vlaneseq
        %v2482 = vshrl.u32 %v2481, 7
        %v2483 = vadd.s32 %v2482, 64
        %2484 = vset.pattern.permute.xlu0 %v2483
        %2485 = vperm.xlu0 %2484, %v2480
        %v2486 = vpop.permute.xlu0 %2485
        %v2487 = vlaneseq
        %v2488 = vshrl.u32 %v2487, 7
        %v2489 = vadd.s32 %v2488, 72
        %2490 = vset.pattern.permute.xlu0 %v2489
        %2491 = vperm.xlu0 %2490, %v2480
        %v2492 = vpop.permute.xlu0 %2491
        %v2493 = vlaneseq
        %v2494 = vshrl.u32 %v2493, 7
        %v2495 = vadd.s32 %v2494, 80
        %2496 = vset.pattern.permute.xlu0 %v2495
        %2497 = vperm.xlu0 %2496, %v2480
        %v2498 = vpop.permute.xlu0 %2497
        %v2499 = vlaneseq
        %v2500 = vshrl.u32 %v2499, 7
        %v2501 = vadd.s32 %v2500, 88
        %2502 = vset.pattern.permute.xlu0 %v2501
        %2503 = vperm.xlu0 %2502, %v2480
        %v2504 = vpop.permute.xlu0 %2503
        %v2505 = vlaneseq
        %v2506 = vshrl.u32 %v2505, 7
        %v2507 = vadd.s32 %v2506, 96
        %2508 = vset.pattern.permute.xlu0 %v2507
        %2509 = vperm.xlu0 %2508, %v2480
        %v2510 = vpop.permute.xlu0 %2509
        %v2511 = vlaneseq
        %v2512 = vshrl.u32 %v2511, 7
        %v2513 = vadd.s32 %v2512, 104
        %2514 = vset.pattern.permute.xlu0 %v2513
        %2515 = vperm.xlu0 %2514, %v2480
        %v2516 = vpop.permute.xlu0 %2515
        %v2517 = vlaneseq
        %v2518 = vshrl.u32 %v2517, 7
        %v2519 = vadd.s32 %v2518, 112
        %2520 = vset.pattern.permute.xlu0 %v2519
        %2521 = vperm.xlu0 %2520, %v2480
        %v2522 = vpop.permute.xlu0 %2521
        %v2523 = vlaneseq
        %v2524 = vshrl.u32 %v2523, 7
        %v2525 = vadd.s32 %v2524, 120
        %2526 = vset.pattern.permute.xlu0 %v2525
        %2527 = vperm.xlu0 %2526, %v2480
        %v2528 = vpop.permute.xlu0 %2527
        %v2529 = vperm.slane %v2316, 3
        %v2530 = vlaneseq
        %v2531 = vshrl.u32 %v2530, 7
        %v2532 = vadd.s32 %v2531, 64
        %2533 = vset.pattern.permute.xlu0 %v2532
        %2534 = vperm.xlu0 %2533, %v2529
        %v2535 = vpop.permute.xlu0 %2534
        %v2536 = vlaneseq
        %v2537 = vshrl.u32 %v2536, 7
        %v2538 = vadd.s32 %v2537, 72
        %2539 = vset.pattern.permute.xlu0 %v2538
        %2540 = vperm.xlu0 %2539, %v2529
        %v2541 = vpop.permute.xlu0 %2540
        %v2542 = vlaneseq
        %v2543 = vshrl.u32 %v2542, 7
        %v2544 = vadd.s32 %v2543, 80
        %2545 = vset.pattern.permute.xlu0 %v2544
        %2546 = vperm.xlu0 %2545, %v2529
        %v2547 = vpop.permute.xlu0 %2546
        %v2548 = vlaneseq
        %v2549 = vshrl.u32 %v2548, 7
        %v2550 = vadd.s32 %v2549, 88
        %2551 = vset.pattern.permute.xlu0 %v2550
        %2552 = vperm.xlu0 %2551, %v2529
        %v2553 = vpop.permute.xlu0 %2552
        %v2554 = vlaneseq
        %v2555 = vshrl.u32 %v2554, 7
        %v2556 = vadd.s32 %v2555, 96
        %2557 = vset.pattern.permute.xlu0 %v2556
        %2558 = vperm.xlu0 %2557, %v2529
        %v2559 = vpop.permute.xlu0 %2558
        %v2560 = vlaneseq
        %v2561 = vshrl.u32 %v2560, 7
        %v2562 = vadd.s32 %v2561, 104
        %2563 = vset.pattern.permute.xlu0 %v2562
        %2564 = vperm.xlu0 %2563, %v2529
        %v2565 = vpop.permute.xlu0 %2564
        %v2566 = vlaneseq
        %v2567 = vshrl.u32 %v2566, 7
        %v2568 = vadd.s32 %v2567, 112
        %2569 = vset.pattern.permute.xlu0 %v2568
        %2570 = vperm.xlu0 %2569, %v2529
        %v2571 = vpop.permute.xlu0 %2570
        %v2572 = vlaneseq
        %v2573 = vshrl.u32 %v2572, 7
        %v2574 = vadd.s32 %v2573, 120
        %2575 = vset.pattern.permute.xlu0 %v2574
        %2576 = vperm.xlu0 %2575, %v2529
        %v2577 = vpop.permute.xlu0 %2576
        %v2578 = vperm.slane %v2316, 4
        %v2579 = vlaneseq
        %v2580 = vshrl.u32 %v2579, 7
        %v2581 = vadd.s32 %v2580, 64
        %2582 = vset.pattern.permute.xlu0 %v2581
        %2583 = vperm.xlu0 %2582, %v2578
        %v2584 = vpop.permute.xlu0 %2583
        %v2585 = vlaneseq
        %v2586 = vshrl.u32 %v2585, 7
        %v2587 = vadd.s32 %v2586, 72
        %2588 = vset.pattern.permute.xlu0 %v2587
        %2589 = vperm.xlu0 %2588, %v2578
        %v2590 = vpop.permute.xlu0 %2589
        %v2591 = vlaneseq
        %v2592 = vshrl.u32 %v2591, 7
        %v2593 = vadd.s32 %v2592, 80
        %2594 = vset.pattern.permute.xlu0 %v2593
        %2595 = vperm.xlu0 %2594, %v2578
        %v2596 = vpop.permute.xlu0 %2595
        %v2597 = vlaneseq
        %v2598 = vshrl.u32 %v2597, 7
        %v2599 = vadd.s32 %v2598, 88
        %2600 = vset.pattern.permute.xlu0 %v2599
        %2601 = vperm.xlu0 %2600, %v2578
        %v2602 = vpop.permute.xlu0 %2601
        %v2603 = vlaneseq
        %v2604 = vshrl.u32 %v2603, 7
        %v2605 = vadd.s32 %v2604, 96
        %2606 = vset.pattern.permute.xlu0 %v2605
        %2607 = vperm.xlu0 %2606, %v2578
        %v2608 = vpop.permute.xlu0 %2607
        %v2609 = vlaneseq
        %v2610 = vshrl.u32 %v2609, 7
        %v2611 = vadd.s32 %v2610, 104
        %2612 = vset.pattern.permute.xlu0 %v2611
        %2613 = vperm.xlu0 %2612, %v2578
        %v2614 = vpop.permute.xlu0 %2613
        %v2615 = vlaneseq
        %v2616 = vshrl.u32 %v2615, 7
        %v2617 = vadd.s32 %v2616, 112
        %2618 = vset.pattern.permute.xlu0 %v2617
        %2619 = vperm.xlu0 %2618, %v2578
        %v2620 = vpop.permute.xlu0 %2619
        %v2621 = vlaneseq
        %v2622 = vshrl.u32 %v2621, 7
        %v2623 = vadd.s32 %v2622, 120
        %2624 = vset.pattern.permute.xlu0 %v2623
        %2625 = vperm.xlu0 %2624, %v2578
        %v2626 = vpop.permute.xlu0 %2625
        %v2627 = vperm.slane %v2316, 5
        %v2628 = vlaneseq
        %v2629 = vshrl.u32 %v2628, 7
        %v2630 = vadd.s32 %v2629, 64
        %2631 = vset.pattern.permute.xlu0 %v2630
        %2632 = vperm.xlu0 %2631, %v2627
        %v2633 = vpop.permute.xlu0 %2632
        %v2634 = vlaneseq
        %v2635 = vshrl.u32 %v2634, 7
        %v2636 = vadd.s32 %v2635, 72
        %2637 = vset.pattern.permute.xlu0 %v2636
        %2638 = vperm.xlu0 %2637, %v2627
        %v2639 = vpop.permute.xlu0 %2638
        %v2640 = vlaneseq
        %v2641 = vshrl.u32 %v2640, 7
        %v2642 = vadd.s32 %v2641, 80
        %2643 = vset.pattern.permute.xlu0 %v2642
        %2644 = vperm.xlu0 %2643, %v2627
        %v2645 = vpop.permute.xlu0 %2644
        %v2646 = vlaneseq
        %v2647 = vshrl.u32 %v2646, 7
        %v2648 = vadd.s32 %v2647, 88
        %2649 = vset.pattern.permute.xlu0 %v2648
        %2650 = vperm.xlu0 %2649, %v2627
        %v2651 = vpop.permute.xlu0 %2650
        %v2652 = vlaneseq
        %v2653 = vshrl.u32 %v2652, 7
        %v2654 = vadd.s32 %v2653, 96
        %2655 = vset.pattern.permute.xlu0 %v2654
        %2656 = vperm.xlu0 %2655, %v2627
        %v2657 = vpop.permute.xlu0 %2656
        %v2658 = vlaneseq
        %v2659 = vshrl.u32 %v2658, 7
        %v2660 = vadd.s32 %v2659, 104
        %2661 = vset.pattern.permute.xlu0 %v2660
        %2662 = vperm.xlu0 %2661, %v2627
        %v2663 = vpop.permute.xlu0 %2662
        %v2664 = vlaneseq
        %v2665 = vshrl.u32 %v2664, 7
        %v2666 = vadd.s32 %v2665, 112
        %2667 = vset.pattern.permute.xlu0 %v2666
        %2668 = vperm.xlu0 %2667, %v2627
        %v2669 = vpop.permute.xlu0 %2668
        %v2670 = vlaneseq
        %v2671 = vshrl.u32 %v2670, 7
        %v2672 = vadd.s32 %v2671, 120
        %2673 = vset.pattern.permute.xlu0 %v2672
        %2674 = vperm.xlu0 %2673, %v2627
        %v2675 = vpop.permute.xlu0 %2674
        %v2676 = vperm.slane %v2316, 6
        %v2677 = vlaneseq
        %v2678 = vshrl.u32 %v2677, 7
        %v2679 = vadd.s32 %v2678, 64
        %2680 = vset.pattern.permute.xlu0 %v2679
        %2681 = vperm.xlu0 %2680, %v2676
        %v2682 = vpop.permute.xlu0 %2681
        %v2683 = vlaneseq
        %v2684 = vshrl.u32 %v2683, 7
        %v2685 = vadd.s32 %v2684, 72
        %2686 = vset.pattern.permute.xlu0 %v2685
        %2687 = vperm.xlu0 %2686, %v2676
        %v2688 = vpop.permute.xlu0 %2687
        %v2689 = vlaneseq
        %v2690 = vshrl.u32 %v2689, 7
        %v2691 = vadd.s32 %v2690, 80
        %2692 = vset.pattern.permute.xlu0 %v2691
        %2693 = vperm.xlu0 %2692, %v2676
        %v2694 = vpop.permute.xlu0 %2693
        %v2695 = vlaneseq
        %v2696 = vshrl.u32 %v2695, 7
        %v2697 = vadd.s32 %v2696, 88
        %2698 = vset.pattern.permute.xlu0 %v2697
        %2699 = vperm.xlu0 %2698, %v2676
        %v2700 = vpop.permute.xlu0 %2699
        %v2701 = vlaneseq
        %v2702 = vshrl.u32 %v2701, 7
        %v2703 = vadd.s32 %v2702, 96
        %2704 = vset.pattern.permute.xlu0 %v2703
        %2705 = vperm.xlu0 %2704, %v2676
        %v2706 = vpop.permute.xlu0 %2705
        %v2707 = vlaneseq
        %v2708 = vshrl.u32 %v2707, 7
        %v2709 = vadd.s32 %v2708, 104
        %2710 = vset.pattern.permute.xlu0 %v2709
        %2711 = vperm.xlu0 %2710, %v2676
        %v2712 = vpop.permute.xlu0 %2711
        %v2713 = vlaneseq
        %v2714 = vshrl.u32 %v2713, 7
        %v2715 = vadd.s32 %v2714, 112
        %2716 = vset.pattern.permute.xlu0 %v2715
        %2717 = vperm.xlu0 %2716, %v2676
        %v2718 = vpop.permute.xlu0 %2717
        %v2719 = vlaneseq
        %v2720 = vshrl.u32 %v2719, 7
        %v2721 = vadd.s32 %v2720, 120
        %2722 = vset.pattern.permute.xlu0 %v2721
        %2723 = vperm.xlu0 %2722, %v2676
        %v2724 = vpop.permute.xlu0 %2723
        %v2725 = vperm.slane %v2316, 7
        %v2726 = vlaneseq
        %v2727 = vshrl.u32 %v2726, 7
        %v2728 = vadd.s32 %v2727, 64
        %2729 = vset.pattern.permute.xlu0 %v2728
        %2730 = vperm.xlu0 %2729, %v2725
        %v2731 = vpop.permute.xlu0 %2730
        %v2732 = vlaneseq
        %v2733 = vshrl.u32 %v2732, 7
        %v2734 = vadd.s32 %v2733, 72
        %2735 = vset.pattern.permute.xlu0 %v2734
        %2736 = vperm.xlu0 %2735, %v2725
        %v2737 = vpop.permute.xlu0 %2736
        %v2738 = vlaneseq
        %v2739 = vshrl.u32 %v2738, 7
        %v2740 = vadd.s32 %v2739, 80
        %2741 = vset.pattern.permute.xlu0 %v2740
        %2742 = vperm.xlu0 %2741, %v2725
        %v2743 = vpop.permute.xlu0 %2742
        %v2744 = vlaneseq
        %v2745 = vshrl.u32 %v2744, 7
        %v2746 = vadd.s32 %v2745, 88
        %2747 = vset.pattern.permute.xlu0 %v2746
        %2748 = vperm.xlu0 %2747, %v2725
        %v2749 = vpop.permute.xlu0 %2748
        %v2750 = vlaneseq
        %v2751 = vshrl.u32 %v2750, 7
        %v2752 = vadd.s32 %v2751, 96
        %2753 = vset.pattern.permute.xlu0 %v2752
        %2754 = vperm.xlu0 %2753, %v2725
        %v2755 = vpop.permute.xlu0 %2754
        %v2756 = vlaneseq
        %v2757 = vshrl.u32 %v2756, 7
        %v2758 = vadd.s32 %v2757, 104
        %2759 = vset.pattern.permute.xlu0 %v2758
        %2760 = vperm.xlu0 %2759, %v2725
        %v2761 = vpop.permute.xlu0 %2760
        %v2762 = vlaneseq
        %v2763 = vshrl.u32 %v2762, 7
        %v2764 = vadd.s32 %v2763, 112
        %2765 = vset.pattern.permute.xlu0 %v2764
        %2766 = vperm.xlu0 %2765, %v2725
        %v2767 = vpop.permute.xlu0 %2766
        %v2768 = vlaneseq
        %v2769 = vshrl.u32 %v2768, 7
        %v2770 = vadd.s32 %v2769, 120
        %2771 = vset.pattern.permute.xlu0 %v2770
        %2772 = vperm.xlu0 %2771, %v2725
        %v2773 = vpop.permute.xlu0 %2772
        %v2838 = vmul.f32 %v1131, %v2388
        %v2839 = vmul.f32 %v1132, %v2394
        %v2840 = vmul.f32 %v1133, %v2400
        %v2841 = vmul.f32 %v1134, %v2406
        %v2842 = vmul.f32 %v1135, %v2412
        %v2843 = vmul.f32 %v1136, %v2418
        %v2844 = vmul.f32 %v1137, %v2424
        %v2845 = vmul.f32 %v1138, %v2430
        %v2846 = vmul.f32 %v1139, %v2437
        %v2847 = vmul.f32 %v1140, %v2443
        %v2848 = vmul.f32 %v1141, %v2449
        %v2849 = vmul.f32 %v1142, %v2455
        %v2850 = vmul.f32 %v1143, %v2461
        %v2851 = vmul.f32 %v1144, %v2467
        %v2852 = vmul.f32 %v1145, %v2473
        %v2853 = vmul.f32 %v1146, %v2479
        %v2854 = vmul.f32 %v1147, %v2486
        %v2855 = vmul.f32 %v1148, %v2492
        %v2856 = vmul.f32 %v1149, %v2498
        %v2857 = vmul.f32 %v1150, %v2504
        %v2858 = vmul.f32 %v1151, %v2510
        %v2859 = vmul.f32 %v1152, %v2516
        %v2860 = vmul.f32 %v1153, %v2522
        %v2861 = vmul.f32 %v1154, %v2528
        %v2862 = vmul.f32 %v1155, %v2535
        %v2863 = vmul.f32 %v1156, %v2541
        %v2864 = vmul.f32 %v1157, %v2547
        %v2865 = vmul.f32 %v1158, %v2553
        %v2866 = vmul.f32 %v1159, %v2559
        %v2867 = vmul.f32 %v1160, %v2565
        %v2868 = vmul.f32 %v1161, %v2571
        %v2869 = vmul.f32 %v1162, %v2577
        %v2870 = vmul.f32 %v1163, %v2584
        %v2871 = vmul.f32 %v1164, %v2590
        %v2872 = vmul.f32 %v1165, %v2596
        %v2873 = vmul.f32 %v1166, %v2602
        %v2874 = vmul.f32 %v1167, %v2608
        %v2875 = vmul.f32 %v1168, %v2614
        %v2876 = vmul.f32 %v1169, %v2620
        %v2877 = vmul.f32 %v1170, %v2626
        %v2878 = vmul.f32 %v1171, %v2633
        %v2879 = vmul.f32 %v1172, %v2639
        %v2880 = vmul.f32 %v1173, %v2645
        %v2881 = vmul.f32 %v1174, %v2651
        %v2882 = vmul.f32 %v1175, %v2657
        %v2883 = vmul.f32 %v1176, %v2663
        %v2884 = vmul.f32 %v1177, %v2669
        %v2885 = vmul.f32 %v1178, %v2675
        %v2886 = vmul.f32 %v1179, %v2682
        %v2887 = vmul.f32 %v1180, %v2688
        %v2888 = vmul.f32 %v1181, %v2694
        %v2889 = vmul.f32 %v1182, %v2700
        %v2890 = vmul.f32 %v1183, %v2706
        %v2891 = vmul.f32 %v1184, %v2712
        %v2892 = vmul.f32 %v1185, %v2718
        %v2893 = vmul.f32 %v1186, %v2724
        %v2894 = vmul.f32 %v1187, %v2731
        %v2895 = vmul.f32 %v1188, %v2737
        %v2896 = vmul.f32 %v1189, %v2743
        %v2897 = vmul.f32 %v1190, %v2749
        %v2898 = vmul.f32 %v1191, %v2755
        %v2899 = vmul.f32 %v1192, %v2761
        %v2900 = vmul.f32 %v1193, %v2767
        %v2901 = vmul.f32 %v1194, %v2773
        %v2902 = vsub.f32 %v2317, %v2838
        %v2903 = vsub.f32 %v2318, %v2839
        %v2904 = vsub.f32 %v2319, %v2840
        %v2905 = vsub.f32 %v2320, %v2841
        %v2906 = vsub.f32 %v2321, %v2842
        %v2907 = vsub.f32 %v2322, %v2843
        %v2908 = vsub.f32 %v2323, %v2844
        %v2909 = vsub.f32 %v2324, %v2845
        %v2910 = vsub.f32 %v2325, %v2846
        %v2911 = vsub.f32 %v2326, %v2847
        %v2912 = vsub.f32 %v2327, %v2848
        %v2913 = vsub.f32 %v2328, %v2849
        %v2914 = vsub.f32 %v2329, %v2850
        %v2915 = vsub.f32 %v2330, %v2851
        %v2916 = vsub.f32 %v2331, %v2852
        %v2917 = vsub.f32 %v2332, %v2853
        %v2918 = vsub.f32 %v2333, %v2854
        %v2919 = vsub.f32 %v2334, %v2855
        %v2920 = vsub.f32 %v2335, %v2856
        %v2921 = vsub.f32 %v2336, %v2857
        %v2922 = vsub.f32 %v2337, %v2858
        %v2923 = vsub.f32 %v2338, %v2859
        %v2924 = vsub.f32 %v2339, %v2860
        %v2925 = vsub.f32 %v2340, %v2861
        %v2926 = vsub.f32 %v2341, %v2862
        %v2927 = vsub.f32 %v2342, %v2863
        %v2928 = vsub.f32 %v2343, %v2864
        %v2929 = vsub.f32 %v2344, %v2865
        %v2930 = vsub.f32 %v2345, %v2866
        %v2931 = vsub.f32 %v2346, %v2867
        %v2932 = vsub.f32 %v2347, %v2868
        %v2933 = vsub.f32 %v2348, %v2869
        %v2934 = vsub.f32 %v2349, %v2870
        %v2935 = vsub.f32 %v2350, %v2871
        %v2936 = vsub.f32 %v2351, %v2872
        %v2937 = vsub.f32 %v2352, %v2873
        %v2938 = vsub.f32 %v2353, %v2874
        %v2939 = vsub.f32 %v2354, %v2875
        %v2940 = vsub.f32 %v2355, %v2876
        %v2941 = vsub.f32 %v2356, %v2877
        %v2942 = vsub.f32 %v2357, %v2878
        %v2943 = vsub.f32 %v2358, %v2879
        %v2944 = vsub.f32 %v2359, %v2880
        %v2945 = vsub.f32 %v2360, %v2881
        %v2946 = vsub.f32 %v2361, %v2882
        %v2947 = vsub.f32 %v2362, %v2883
        %v2948 = vsub.f32 %v2363, %v2884
        %v2949 = vsub.f32 %v2364, %v2885
        %v2950 = vsub.f32 %v2365, %v2886
        %v2951 = vsub.f32 %v2366, %v2887
        %v2952 = vsub.f32 %v2367, %v2888
        %v2953 = vsub.f32 %v2368, %v2889
        %v2954 = vsub.f32 %v2369, %v2890
        %v2955 = vsub.f32 %v2370, %v2891
        %v2956 = vsub.f32 %v2371, %v2892
        %v2957 = vsub.f32 %v2372, %v2893
        %v2958 = vsub.f32 %v2373, %v2894
        %v2959 = vsub.f32 %v2374, %v2895
        %v2960 = vsub.f32 %v2375, %v2896
        %v2961 = vsub.f32 %v2376, %v2897
        %v2962 = vsub.f32 %v2377, %v2898
        %v2963 = vsub.f32 %v2378, %v2899
        %v2964 = vsub.f32 %v2379, %v2900
        %v2965 = vsub.f32 %v2380, %v2901
        %v2966 = vand.u32 2147483647, %v1131
        %v2967 = vand.u32 2147483647, %v1132
        %v2968 = vand.u32 2147483647, %v1133
        %v2969 = vand.u32 2147483647, %v1134
        %v2970 = vand.u32 2147483647, %v1135
        %v2971 = vand.u32 2147483647, %v1136
        %v2972 = vand.u32 2147483647, %v1137
        %v2973 = vand.u32 2147483647, %v1138
        %v2974 = vand.u32 2147483647, %v1139
        %v2975 = vand.u32 2147483647, %v1140
        %v2976 = vand.u32 2147483647, %v1141
        %v2977 = vand.u32 2147483647, %v1142
        %v2978 = vand.u32 2147483647, %v1143
        %v2979 = vand.u32 2147483647, %v1144
        %v2980 = vand.u32 2147483647, %v1145
        %v2981 = vand.u32 2147483647, %v1146
        %v2982 = vand.u32 2147483647, %v1147
        %v2983 = vand.u32 2147483647, %v1148
        %v2984 = vand.u32 2147483647, %v1149
        %v2985 = vand.u32 2147483647, %v1150
        %v2986 = vand.u32 2147483647, %v1151
        %v2987 = vand.u32 2147483647, %v1152
        %v2988 = vand.u32 2147483647, %v1153
        %v2989 = vand.u32 2147483647, %v1154
        %v2990 = vand.u32 2147483647, %v1155
        %v2991 = vand.u32 2147483647, %v1156
        %v2992 = vand.u32 2147483647, %v1157
        %v2993 = vand.u32 2147483647, %v1158
        %v2994 = vand.u32 2147483647, %v1159
        %v2995 = vand.u32 2147483647, %v1160
        %v2996 = vand.u32 2147483647, %v1161
        %v2997 = vand.u32 2147483647, %v1162
        %v2998 = vand.u32 2147483647, %v1163
        %v2999 = vand.u32 2147483647, %v1164
        %v3000 = vand.u32 2147483647, %v1165
        %v3001 = vand.u32 2147483647, %v1166
        %v3002 = vand.u32 2147483647, %v1167
        %v3003 = vand.u32 2147483647, %v1168
        %v3004 = vand.u32 2147483647, %v1169
        %v3005 = vand.u32 2147483647, %v1170
        %v3006 = vand.u32 2147483647, %v1171
        %v3007 = vand.u32 2147483647, %v1172
        %v3008 = vand.u32 2147483647, %v1173
        %v3009 = vand.u32 2147483647, %v1174
        %v3010 = vand.u32 2147483647, %v1175
        %v3011 = vand.u32 2147483647, %v1176
        %v3012 = vand.u32 2147483647, %v1177
        %v3013 = vand.u32 2147483647, %v1178
        %v3014 = vand.u32 2147483647, %v1179
        %v3015 = vand.u32 2147483647, %v1180
        %v3016 = vand.u32 2147483647, %v1181
        %v3017 = vand.u32 2147483647, %v1182
        %v3018 = vand.u32 2147483647, %v1183
        %v3019 = vand.u32 2147483647, %v1184
        %v3020 = vand.u32 2147483647, %v1185
        %v3021 = vand.u32 2147483647, %v1186
        %v3022 = vand.u32 2147483647, %v1187
        %v3023 = vand.u32 2147483647, %v1188
        %v3024 = vand.u32 2147483647, %v1189
        %v3025 = vand.u32 2147483647, %v1190
        %v3026 = vand.u32 2147483647, %v1191
        %v3027 = vand.u32 2147483647, %v1192
        %v3028 = vand.u32 2147483647, %v1193
        %v3029 = vand.u32 2147483647, %v1194
        %v3030 = vsub.f32 0.0, %v2966
        %v3031 = vsub.f32 0.0, %v2967
        %v3032 = vsub.f32 0.0, %v2968
        %v3033 = vsub.f32 0.0, %v2969
        %v3034 = vsub.f32 0.0, %v2970
        %v3035 = vsub.f32 0.0, %v2971
        %v3036 = vsub.f32 0.0, %v2972
        %v3037 = vsub.f32 0.0, %v2973
        %v3038 = vsub.f32 0.0, %v2974
        %v3039 = vsub.f32 0.0, %v2975
        %v3040 = vsub.f32 0.0, %v2976
        %v3041 = vsub.f32 0.0, %v2977
        %v3042 = vsub.f32 0.0, %v2978
        %v3043 = vsub.f32 0.0, %v2979
        %v3044 = vsub.f32 0.0, %v2980
        %v3045 = vsub.f32 0.0, %v2981
        %v3046 = vsub.f32 0.0, %v2982
        %v3047 = vsub.f32 0.0, %v2983
        %v3048 = vsub.f32 0.0, %v2984
        %v3049 = vsub.f32 0.0, %v2985
        %v3050 = vsub.f32 0.0, %v2986
        %v3051 = vsub.f32 0.0, %v2987
        %v3052 = vsub.f32 0.0, %v2988
        %v3053 = vsub.f32 0.0, %v2989
        %v3054 = vsub.f32 0.0, %v2990
        %v3055 = vsub.f32 0.0, %v2991
        %v3056 = vsub.f32 0.0, %v2992
        %v3057 = vsub.f32 0.0, %v2993
        %v3058 = vsub.f32 0.0, %v2994
        %v3059 = vsub.f32 0.0, %v2995
        %v3060 = vsub.f32 0.0, %v2996
        %v3061 = vsub.f32 0.0, %v2997
        %v3062 = vsub.f32 0.0, %v2998
        %v3063 = vsub.f32 0.0, %v2999
        %v3064 = vsub.f32 0.0, %v3000
        %v3065 = vsub.f32 0.0, %v3001
        %v3066 = vsub.f32 0.0, %v3002
        %v3067 = vsub.f32 0.0, %v3003
        %v3068 = vsub.f32 0.0, %v3004
        %v3069 = vsub.f32 0.0, %v3005
        %v3070 = vsub.f32 0.0, %v3006
        %v3071 = vsub.f32 0.0, %v3007
        %v3072 = vsub.f32 0.0, %v3008
        %v3073 = vsub.f32 0.0, %v3009
        %v3074 = vsub.f32 0.0, %v3010
        %v3075 = vsub.f32 0.0, %v3011
        %v3076 = vsub.f32 0.0, %v3012
        %v3077 = vsub.f32 0.0, %v3013
        %v3078 = vsub.f32 0.0, %v3014
        %v3079 = vsub.f32 0.0, %v3015
        %v3080 = vsub.f32 0.0, %v3016
        %v3081 = vsub.f32 0.0, %v3017
        %v3082 = vsub.f32 0.0, %v3018
        %v3083 = vsub.f32 0.0, %v3019
        %v3084 = vsub.f32 0.0, %v3020
        %v3085 = vsub.f32 0.0, %v3021
        %v3086 = vsub.f32 0.0, %v3022
        %v3087 = vsub.f32 0.0, %v3023
        %v3088 = vsub.f32 0.0, %v3024
        %v3089 = vsub.f32 0.0, %v3025
        %v3090 = vsub.f32 0.0, %v3026
        %v3091 = vsub.f32 0.0, %v3027
        %v3092 = vsub.f32 0.0, %v3028
        %v3093 = vsub.f32 0.0, %v3029
        %v3094 = vmul.f32 %v3030, 1.442695
        %v3095 = vpow.pop %v3094
        %v3096 = vmul.f32 %v3031, 1.442695
        %v3097 = vpow.pop %v3096
        %v3098 = vmul.f32 %v3032, 1.442695
        %v3099 = vpow.pop %v3098
        %v3100 = vmul.f32 %v3033, 1.442695
        %v3101 = vpow.pop %v3100
        %v3102 = vmul.f32 %v3034, 1.442695
        %v3103 = vpow.pop %v3102
        %v3104 = vmul.f32 %v3035, 1.442695
        %v3105 = vpow.pop %v3104
        %v3106 = vmul.f32 %v3036, 1.442695
        %v3107 = vpow.pop %v3106
        %v3108 = vmul.f32 %v3037, 1.442695
        %v3109 = vpow.pop %v3108
        %v3110 = vmul.f32 %v3038, 1.442695
        %v3111 = vpow.pop %v3110
        %v3112 = vmul.f32 %v3039, 1.442695
        %v3113 = vpow.pop %v3112
        %v3114 = vmul.f32 %v3040, 1.442695
        %v3115 = vpow.pop %v3114
        %v3116 = vmul.f32 %v3041, 1.442695
        %v3117 = vpow.pop %v3116
        %v3118 = vmul.f32 %v3042, 1.442695
        %v3119 = vpow.pop %v3118
        %v3120 = vmul.f32 %v3043, 1.442695
        %v3121 = vpow.pop %v3120
        %v3122 = vmul.f32 %v3044, 1.442695
        %v3123 = vpow.pop %v3122
        %v3124 = vmul.f32 %v3045, 1.442695
        %v3125 = vpow.pop %v3124
        %v3126 = vmul.f32 %v3046, 1.442695
        %v3127 = vpow.pop %v3126
        %v3128 = vmul.f32 %v3047, 1.442695
        %v3129 = vpow.pop %v3128
        %v3130 = vmul.f32 %v3048, 1.442695
        %v3131 = vpow.pop %v3130
        %v3132 = vmul.f32 %v3049, 1.442695
        %v3133 = vpow.pop %v3132
        %v3134 = vmul.f32 %v3050, 1.442695
        %v3135 = vpow.pop %v3134
        %v3136 = vmul.f32 %v3051, 1.442695
        %v3137 = vpow.pop %v3136
        %v3138 = vmul.f32 %v3052, 1.442695
        %v3139 = vpow.pop %v3138
        %v3140 = vmul.f32 %v3053, 1.442695
        %v3141 = vpow.pop %v3140
        %v3142 = vmul.f32 %v3054, 1.442695
        %v3143 = vpow.pop %v3142
        %v3144 = vmul.f32 %v3055, 1.442695
        %v3145 = vpow.pop %v3144
        %v3146 = vmul.f32 %v3056, 1.442695
        %v3147 = vpow.pop %v3146
        %v3148 = vmul.f32 %v3057, 1.442695
        %v3149 = vpow.pop %v3148
        %v3150 = vmul.f32 %v3058, 1.442695
        %v3151 = vpow.pop %v3150
        %v3152 = vmul.f32 %v3059, 1.442695
        %v3153 = vpow.pop %v3152
        %v3154 = vmul.f32 %v3060, 1.442695
        %v3155 = vpow.pop %v3154
        %v3156 = vmul.f32 %v3061, 1.442695
        %v3157 = vpow.pop %v3156
        %v3158 = vmul.f32 %v3062, 1.442695
        %v3159 = vpow.pop %v3158
        %v3160 = vmul.f32 %v3063, 1.442695
        %v3161 = vpow.pop %v3160
        %v3162 = vmul.f32 %v3064, 1.442695
        %v3163 = vpow.pop %v3162
        %v3164 = vmul.f32 %v3065, 1.442695
        %v3165 = vpow.pop %v3164
        %v3166 = vmul.f32 %v3066, 1.442695
        %v3167 = vpow.pop %v3166
        %v3168 = vmul.f32 %v3067, 1.442695
        %v3169 = vpow.pop %v3168
        %v3170 = vmul.f32 %v3068, 1.442695
        %v3171 = vpow.pop %v3170
        %v3172 = vmul.f32 %v3069, 1.442695
        %v3173 = vpow.pop %v3172
        %v3174 = vmul.f32 %v3070, 1.442695
        %v3175 = vpow.pop %v3174
        %v3176 = vmul.f32 %v3071, 1.442695
        %v3177 = vpow.pop %v3176
        %v3178 = vmul.f32 %v3072, 1.442695
        %v3179 = vpow.pop %v3178
        %v3180 = vmul.f32 %v3073, 1.442695
        %v3181 = vpow.pop %v3180
        %v3182 = vmul.f32 %v3074, 1.442695
        %v3183 = vpow.pop %v3182
        %v3184 = vmul.f32 %v3075, 1.442695
        %v3185 = vpow.pop %v3184
        %v3186 = vmul.f32 %v3076, 1.442695
        %v3187 = vpow.pop %v3186
        %v3188 = vmul.f32 %v3077, 1.442695
        %v3189 = vpow.pop %v3188
        %v3190 = vmul.f32 %v3078, 1.442695
        %v3191 = vpow.pop %v3190
        %v3192 = vmul.f32 %v3079, 1.442695
        %v3193 = vpow.pop %v3192
        %v3194 = vmul.f32 %v3080, 1.442695
        %v3195 = vpow.pop %v3194
        %v3196 = vmul.f32 %v3081, 1.442695
        %v3197 = vpow.pop %v3196
        %v3198 = vmul.f32 %v3082, 1.442695
        %v3199 = vpow.pop %v3198
        %v3200 = vmul.f32 %v3083, 1.442695
        %v3201 = vpow.pop %v3200
        %v3202 = vmul.f32 %v3084, 1.442695
        %v3203 = vpow.pop %v3202
        %v3204 = vmul.f32 %v3085, 1.442695
        %v3205 = vpow.pop %v3204
        %v3206 = vmul.f32 %v3086, 1.442695
        %v3207 = vpow.pop %v3206
        %v3208 = vmul.f32 %v3087, 1.442695
        %v3209 = vpow.pop %v3208
        %v3210 = vmul.f32 %v3088, 1.442695
        %v3211 = vpow.pop %v3210
        %v3212 = vmul.f32 %v3089, 1.442695
        %v3213 = vpow.pop %v3212
        %v3214 = vmul.f32 %v3090, 1.442695
        %v3215 = vpow.pop %v3214
        %v3216 = vmul.f32 %v3091, 1.442695
        %v3217 = vpow.pop %v3216
        %v3218 = vmul.f32 %v3092, 1.442695
        %v3219 = vpow.pop %v3218
        %v3220 = vmul.f32 %v3093, 1.442695
        %v3221 = vpow.pop %v3220
        %v3222 = vadd.f32 %v3095, 1.0
        %v3223 = vlog2.pop %v3222
        %v3224 = vmul.f32 %v3223, 0.6931472
        %v3225 = vmul.f32 -0.5, %v3095
        %v3226 = vadd.f32 %v3225, 1.0
        %v3227 = vmul.f32 %v3226, %v3095
        %v3228 = vand.u32 2147483647, %v3095
        %vm3229 = vcmp.lt.f32.partialorder %v3228, 0.0004427343
        %v3230 = vsel %vm3229, %v3227, %v3224
        %v3231 = vadd.f32 %v3097, 1.0
        %v3232 = vlog2.pop %v3231
        %v3233 = vmul.f32 %v3232, 0.6931472
        %v3234 = vmul.f32 -0.5, %v3097
        %v3235 = vadd.f32 %v3234, 1.0
        %v3236 = vmul.f32 %v3235, %v3097
        %v3237 = vand.u32 2147483647, %v3097
        %vm3238 = vcmp.lt.f32.partialorder %v3237, 0.0004427343
        %v3239 = vsel %vm3238, %v3236, %v3233
        %v3240 = vadd.f32 %v3099, 1.0
        %v3241 = vlog2.pop %v3240
        %v3242 = vmul.f32 %v3241, 0.6931472
        %v3243 = vmul.f32 -0.5, %v3099
        %v3244 = vadd.f32 %v3243, 1.0
        %v3245 = vmul.f32 %v3244, %v3099
        %v3246 = vand.u32 2147483647, %v3099
        %vm3247 = vcmp.lt.f32.partialorder %v3246, 0.0004427343
        %v3248 = vsel %vm3247, %v3245, %v3242
        %v3249 = vadd.f32 %v3101, 1.0
        %v3250 = vlog2.pop %v3249
        %v3251 = vmul.f32 %v3250, 0.6931472
        %v3252 = vmul.f32 -0.5, %v3101
        %v3253 = vadd.f32 %v3252, 1.0
        %v3254 = vmul.f32 %v3253, %v3101
        %v3255 = vand.u32 2147483647, %v3101
        %vm3256 = vcmp.lt.f32.partialorder %v3255, 0.0004427343
        %v3257 = vsel %vm3256, %v3254, %v3251
        %v3258 = vadd.f32 %v3103, 1.0
        %v3259 = vlog2.pop %v3258
        %v3260 = vmul.f32 %v3259, 0.6931472
        %v3261 = vmul.f32 -0.5, %v3103
        %v3262 = vadd.f32 %v3261, 1.0
        %v3263 = vmul.f32 %v3262, %v3103
        %v3264 = vand.u32 2147483647, %v3103
        %vm3265 = vcmp.lt.f32.partialorder %v3264, 0.0004427343
        %v3266 = vsel %vm3265, %v3263, %v3260
        %v3267 = vadd.f32 %v3105, 1.0
        %v3268 = vlog2.pop %v3267
        %v3269 = vmul.f32 %v3268, 0.6931472
        %v3270 = vmul.f32 -0.5, %v3105
        %v3271 = vadd.f32 %v3270, 1.0
        %v3272 = vmul.f32 %v3271, %v3105
        %v3273 = vand.u32 2147483647, %v3105
        %vm3274 = vcmp.lt.f32.partialorder %v3273, 0.0004427343
        %v3275 = vsel %vm3274, %v3272, %v3269
        %v3276 = vadd.f32 %v3107, 1.0
        %v3277 = vlog2.pop %v3276
        %v3278 = vmul.f32 %v3277, 0.6931472
        %v3279 = vmul.f32 -0.5, %v3107
        %v3280 = vadd.f32 %v3279, 1.0
        %v3281 = vmul.f32 %v3280, %v3107
        %v3282 = vand.u32 2147483647, %v3107
        %vm3283 = vcmp.lt.f32.partialorder %v3282, 0.0004427343
        %v3284 = vsel %vm3283, %v3281, %v3278
        %v3285 = vadd.f32 %v3109, 1.0
        %v3286 = vlog2.pop %v3285
        %v3287 = vmul.f32 %v3286, 0.6931472
        %v3288 = vmul.f32 -0.5, %v3109
        %v3289 = vadd.f32 %v3288, 1.0
        %v3290 = vmul.f32 %v3289, %v3109
        %v3291 = vand.u32 2147483647, %v3109
        %vm3292 = vcmp.lt.f32.partialorder %v3291, 0.0004427343
        %v3293 = vsel %vm3292, %v3290, %v3287
        %v3294 = vadd.f32 %v3111, 1.0
        %v3295 = vlog2.pop %v3294
        %v3296 = vmul.f32 %v3295, 0.6931472
        %v3297 = vmul.f32 -0.5, %v3111
        %v3298 = vadd.f32 %v3297, 1.0
        %v3299 = vmul.f32 %v3298, %v3111
        %v3300 = vand.u32 2147483647, %v3111
        %vm3301 = vcmp.lt.f32.partialorder %v3300, 0.0004427343
        %v3302 = vsel %vm3301, %v3299, %v3296
        %v3303 = vadd.f32 %v3113, 1.0
        %v3304 = vlog2.pop %v3303
        %v3305 = vmul.f32 %v3304, 0.6931472
        %v3306 = vmul.f32 -0.5, %v3113
        %v3307 = vadd.f32 %v3306, 1.0
        %v3308 = vmul.f32 %v3307, %v3113
        %v3309 = vand.u32 2147483647, %v3113
        %vm3310 = vcmp.lt.f32.partialorder %v3309, 0.0004427343
        %v3311 = vsel %vm3310, %v3308, %v3305
        %v3312 = vadd.f32 %v3115, 1.0
        %v3313 = vlog2.pop %v3312
        %v3314 = vmul.f32 %v3313, 0.6931472
        %v3315 = vmul.f32 -0.5, %v3115
        %v3316 = vadd.f32 %v3315, 1.0
        %v3317 = vmul.f32 %v3316, %v3115
        %v3318 = vand.u32 2147483647, %v3115
        %vm3319 = vcmp.lt.f32.partialorder %v3318, 0.0004427343
        %v3320 = vsel %vm3319, %v3317, %v3314
        %v3321 = vadd.f32 %v3117, 1.0
        %v3322 = vlog2.pop %v3321
        %v3323 = vmul.f32 %v3322, 0.6931472
        %v3324 = vmul.f32 -0.5, %v3117
        %v3325 = vadd.f32 %v3324, 1.0
        %v3326 = vmul.f32 %v3325, %v3117
        %v3327 = vand.u32 2147483647, %v3117
        %vm3328 = vcmp.lt.f32.partialorder %v3327, 0.0004427343
        %v3329 = vsel %vm3328, %v3326, %v3323
        %v3330 = vadd.f32 %v3119, 1.0
        %v3331 = vlog2.pop %v3330
        %v3332 = vmul.f32 %v3331, 0.6931472
        %v3333 = vmul.f32 -0.5, %v3119
        %v3334 = vadd.f32 %v3333, 1.0
        %v3335 = vmul.f32 %v3334, %v3119
        %v3336 = vand.u32 2147483647, %v3119
        %vm3337 = vcmp.lt.f32.partialorder %v3336, 0.0004427343
        %v3338 = vsel %vm3337, %v3335, %v3332
        %v3339 = vadd.f32 %v3121, 1.0
        %v3340 = vlog2.pop %v3339
        %v3341 = vmul.f32 %v3340, 0.6931472
        %v3342 = vmul.f32 -0.5, %v3121
        %v3343 = vadd.f32 %v3342, 1.0
        %v3344 = vmul.f32 %v3343, %v3121
        %v3345 = vand.u32 2147483647, %v3121
        %vm3346 = vcmp.lt.f32.partialorder %v3345, 0.0004427343
        %v3347 = vsel %vm3346, %v3344, %v3341
        %v3348 = vadd.f32 %v3123, 1.0
        %v3349 = vlog2.pop %v3348
        %v3350 = vmul.f32 %v3349, 0.6931472
        %v3351 = vmul.f32 -0.5, %v3123
        %v3352 = vadd.f32 %v3351, 1.0
        %v3353 = vmul.f32 %v3352, %v3123
        %v3354 = vand.u32 2147483647, %v3123
        %vm3355 = vcmp.lt.f32.partialorder %v3354, 0.0004427343
        %v3356 = vsel %vm3355, %v3353, %v3350
        %v3357 = vadd.f32 %v3125, 1.0
        %v3358 = vlog2.pop %v3357
        %v3359 = vmul.f32 %v3358, 0.6931472
        %v3360 = vmul.f32 -0.5, %v3125
        %v3361 = vadd.f32 %v3360, 1.0
        %v3362 = vmul.f32 %v3361, %v3125
        %v3363 = vand.u32 2147483647, %v3125
        %vm3364 = vcmp.lt.f32.partialorder %v3363, 0.0004427343
        %v3365 = vsel %vm3364, %v3362, %v3359
        %v3366 = vadd.f32 %v3127, 1.0
        %v3367 = vlog2.pop %v3366
        %v3368 = vmul.f32 %v3367, 0.6931472
        %v3369 = vmul.f32 -0.5, %v3127
        %v3370 = vadd.f32 %v3369, 1.0
        %v3371 = vmul.f32 %v3370, %v3127
        %v3372 = vand.u32 2147483647, %v3127
        %vm3373 = vcmp.lt.f32.partialorder %v3372, 0.0004427343
        %v3374 = vsel %vm3373, %v3371, %v3368
        %v3375 = vadd.f32 %v3129, 1.0
        %v3376 = vlog2.pop %v3375
        %v3377 = vmul.f32 %v3376, 0.6931472
        %v3378 = vmul.f32 -0.5, %v3129
        %v3379 = vadd.f32 %v3378, 1.0
        %v3380 = vmul.f32 %v3379, %v3129
        %v3381 = vand.u32 2147483647, %v3129
        %vm3382 = vcmp.lt.f32.partialorder %v3381, 0.0004427343
        %v3383 = vsel %vm3382, %v3380, %v3377
        %v3384 = vadd.f32 %v3131, 1.0
        %v3385 = vlog2.pop %v3384
        %v3386 = vmul.f32 %v3385, 0.6931472
        %v3387 = vmul.f32 -0.5, %v3131
        %v3388 = vadd.f32 %v3387, 1.0
        %v3389 = vmul.f32 %v3388, %v3131
        %v3390 = vand.u32 2147483647, %v3131
        %vm3391 = vcmp.lt.f32.partialorder %v3390, 0.0004427343
        %v3392 = vsel %vm3391, %v3389, %v3386
        %v3393 = vadd.f32 %v3133, 1.0
        %v3394 = vlog2.pop %v3393
        %v3395 = vmul.f32 %v3394, 0.6931472
        %v3396 = vmul.f32 -0.5, %v3133
        %v3397 = vadd.f32 %v3396, 1.0
        %v3398 = vmul.f32 %v3397, %v3133
        %v3399 = vand.u32 2147483647, %v3133
        %vm3400 = vcmp.lt.f32.partialorder %v3399, 0.0004427343
        %v3401 = vsel %vm3400, %v3398, %v3395
        %v3402 = vadd.f32 %v3135, 1.0
        %v3403 = vlog2.pop %v3402
        %v3404 = vmul.f32 %v3403, 0.6931472
        %v3405 = vmul.f32 -0.5, %v3135
        %v3406 = vadd.f32 %v3405, 1.0
        %v3407 = vmul.f32 %v3406, %v3135
        %v3408 = vand.u32 2147483647, %v3135
        %vm3409 = vcmp.lt.f32.partialorder %v3408, 0.0004427343
        %v3410 = vsel %vm3409, %v3407, %v3404
        %v3411 = vadd.f32 %v3137, 1.0
        %v3412 = vlog2.pop %v3411
        %v3413 = vmul.f32 %v3412, 0.6931472
        %v3414 = vmul.f32 -0.5, %v3137
        %v3415 = vadd.f32 %v3414, 1.0
        %v3416 = vmul.f32 %v3415, %v3137
        %v3417 = vand.u32 2147483647, %v3137
        %vm3418 = vcmp.lt.f32.partialorder %v3417, 0.0004427343
        %v3419 = vsel %vm3418, %v3416, %v3413
        %v3420 = vadd.f32 %v3139, 1.0
        %v3421 = vlog2.pop %v3420
        %v3422 = vmul.f32 %v3421, 0.6931472
        %v3423 = vmul.f32 -0.5, %v3139
        %v3424 = vadd.f32 %v3423, 1.0
        %v3425 = vmul.f32 %v3424, %v3139
        %v3426 = vand.u32 2147483647, %v3139
        %vm3427 = vcmp.lt.f32.partialorder %v3426, 0.0004427343
        %v3428 = vsel %vm3427, %v3425, %v3422
        %v3429 = vadd.f32 %v3141, 1.0
        %v3430 = vlog2.pop %v3429
        %v3431 = vmul.f32 %v3430, 0.6931472
        %v3432 = vmul.f32 -0.5, %v3141
        %v3433 = vadd.f32 %v3432, 1.0
        %v3434 = vmul.f32 %v3433, %v3141
        %v3435 = vand.u32 2147483647, %v3141
        %vm3436 = vcmp.lt.f32.partialorder %v3435, 0.0004427343
        %v3437 = vsel %vm3436, %v3434, %v3431
        %v3438 = vadd.f32 %v3143, 1.0
        %v3439 = vlog2.pop %v3438
        %v3440 = vmul.f32 %v3439, 0.6931472
        %v3441 = vmul.f32 -0.5, %v3143
        %v3442 = vadd.f32 %v3441, 1.0
        %v3443 = vmul.f32 %v3442, %v3143
        %v3444 = vand.u32 2147483647, %v3143
        %vm3445 = vcmp.lt.f32.partialorder %v3444, 0.0004427343
        %v3446 = vsel %vm3445, %v3443, %v3440
        %v3447 = vadd.f32 %v3145, 1.0
        %v3448 = vlog2.pop %v3447
        %v3449 = vmul.f32 %v3448, 0.6931472
        %v3450 = vmul.f32 -0.5, %v3145
        %v3451 = vadd.f32 %v3450, 1.0
        %v3452 = vmul.f32 %v3451, %v3145
        %v3453 = vand.u32 2147483647, %v3145
        %vm3454 = vcmp.lt.f32.partialorder %v3453, 0.0004427343
        %v3455 = vsel %vm3454, %v3452, %v3449
        %v3456 = vadd.f32 %v3147, 1.0
        %v3457 = vlog2.pop %v3456
        %v3458 = vmul.f32 %v3457, 0.6931472
        %v3459 = vmul.f32 -0.5, %v3147
        %v3460 = vadd.f32 %v3459, 1.0
        %v3461 = vmul.f32 %v3460, %v3147
        %v3462 = vand.u32 2147483647, %v3147
        %vm3463 = vcmp.lt.f32.partialorder %v3462, 0.0004427343
        %v3464 = vsel %vm3463, %v3461, %v3458
        %v3465 = vadd.f32 %v3149, 1.0
        %v3466 = vlog2.pop %v3465
        %v3467 = vmul.f32 %v3466, 0.6931472
        %v3468 = vmul.f32 -0.5, %v3149
        %v3469 = vadd.f32 %v3468, 1.0
        %v3470 = vmul.f32 %v3469, %v3149
        %v3471 = vand.u32 2147483647, %v3149
        %vm3472 = vcmp.lt.f32.partialorder %v3471, 0.0004427343
        %v3473 = vsel %vm3472, %v3470, %v3467
        %v3474 = vadd.f32 %v3151, 1.0
        %v3475 = vlog2.pop %v3474
        %v3476 = vmul.f32 %v3475, 0.6931472
        %v3477 = vmul.f32 -0.5, %v3151
        %v3478 = vadd.f32 %v3477, 1.0
        %v3479 = vmul.f32 %v3478, %v3151
        %v3480 = vand.u32 2147483647, %v3151
        %vm3481 = vcmp.lt.f32.partialorder %v3480, 0.0004427343
        %v3482 = vsel %vm3481, %v3479, %v3476
        %v3483 = vadd.f32 %v3153, 1.0
        %v3484 = vlog2.pop %v3483
        %v3485 = vmul.f32 %v3484, 0.6931472
        %v3486 = vmul.f32 -0.5, %v3153
        %v3487 = vadd.f32 %v3486, 1.0
        %v3488 = vmul.f32 %v3487, %v3153
        %v3489 = vand.u32 2147483647, %v3153
        %vm3490 = vcmp.lt.f32.partialorder %v3489, 0.0004427343
        %v3491 = vsel %vm3490, %v3488, %v3485
        %v3492 = vadd.f32 %v3155, 1.0
        %v3493 = vlog2.pop %v3492
        %v3494 = vmul.f32 %v3493, 0.6931472
        %v3495 = vmul.f32 -0.5, %v3155
        %v3496 = vadd.f32 %v3495, 1.0
        %v3497 = vmul.f32 %v3496, %v3155
        %v3498 = vand.u32 2147483647, %v3155
        %vm3499 = vcmp.lt.f32.partialorder %v3498, 0.0004427343
        %v3500 = vsel %vm3499, %v3497, %v3494
        %v3501 = vadd.f32 %v3157, 1.0
        %v3502 = vlog2.pop %v3501
        %v3503 = vmul.f32 %v3502, 0.6931472
        %v3504 = vmul.f32 -0.5, %v3157
        %v3505 = vadd.f32 %v3504, 1.0
        %v3506 = vmul.f32 %v3505, %v3157
        %v3507 = vand.u32 2147483647, %v3157
        %vm3508 = vcmp.lt.f32.partialorder %v3507, 0.0004427343
        %v3509 = vsel %vm3508, %v3506, %v3503
        %v3510 = vadd.f32 %v3159, 1.0
        %v3511 = vlog2.pop %v3510
        %v3512 = vmul.f32 %v3511, 0.6931472
        %v3513 = vmul.f32 -0.5, %v3159
        %v3514 = vadd.f32 %v3513, 1.0
        %v3515 = vmul.f32 %v3514, %v3159
        %v3516 = vand.u32 2147483647, %v3159
        %vm3517 = vcmp.lt.f32.partialorder %v3516, 0.0004427343
        %v3518 = vsel %vm3517, %v3515, %v3512
        %v3519 = vadd.f32 %v3161, 1.0
        %v3520 = vlog2.pop %v3519
        %v3521 = vmul.f32 %v3520, 0.6931472
        %v3522 = vmul.f32 -0.5, %v3161
        %v3523 = vadd.f32 %v3522, 1.0
        %v3524 = vmul.f32 %v3523, %v3161
        %v3525 = vand.u32 2147483647, %v3161
        %vm3526 = vcmp.lt.f32.partialorder %v3525, 0.0004427343
        %v3527 = vsel %vm3526, %v3524, %v3521
        %v3528 = vadd.f32 %v3163, 1.0
        %v3529 = vlog2.pop %v3528
        %v3530 = vmul.f32 %v3529, 0.6931472
        %v3531 = vmul.f32 -0.5, %v3163
        %v3532 = vadd.f32 %v3531, 1.0
        %v3533 = vmul.f32 %v3532, %v3163
        %v3534 = vand.u32 2147483647, %v3163
        %vm3535 = vcmp.lt.f32.partialorder %v3534, 0.0004427343
        %v3536 = vsel %vm3535, %v3533, %v3530
        %v3537 = vadd.f32 %v3165, 1.0
        %v3538 = vlog2.pop %v3537
        %v3539 = vmul.f32 %v3538, 0.6931472
        %v3540 = vmul.f32 -0.5, %v3165
        %v3541 = vadd.f32 %v3540, 1.0
        %v3542 = vmul.f32 %v3541, %v3165
        %v3543 = vand.u32 2147483647, %v3165
        %vm3544 = vcmp.lt.f32.partialorder %v3543, 0.0004427343
        %v3545 = vsel %vm3544, %v3542, %v3539
        %v3546 = vadd.f32 %v3167, 1.0
        %v3547 = vlog2.pop %v3546
        %v3548 = vmul.f32 %v3547, 0.6931472
        %v3549 = vmul.f32 -0.5, %v3167
        %v3550 = vadd.f32 %v3549, 1.0
        %v3551 = vmul.f32 %v3550, %v3167
        %v3552 = vand.u32 2147483647, %v3167
        %vm3553 = vcmp.lt.f32.partialorder %v3552, 0.0004427343
        %v3554 = vsel %vm3553, %v3551, %v3548
        %v3555 = vadd.f32 %v3169, 1.0
        %v3556 = vlog2.pop %v3555
        %v3557 = vmul.f32 %v3556, 0.6931472
        %v3558 = vmul.f32 -0.5, %v3169
        %v3559 = vadd.f32 %v3558, 1.0
        %v3560 = vmul.f32 %v3559, %v3169
        %v3561 = vand.u32 2147483647, %v3169
        %vm3562 = vcmp.lt.f32.partialorder %v3561, 0.0004427343
        %v3563 = vsel %vm3562, %v3560, %v3557
        %v3564 = vadd.f32 %v3171, 1.0
        %v3565 = vlog2.pop %v3564
        %v3566 = vmul.f32 %v3565, 0.6931472
        %v3567 = vmul.f32 -0.5, %v3171
        %v3568 = vadd.f32 %v3567, 1.0
        %v3569 = vmul.f32 %v3568, %v3171
        %v3570 = vand.u32 2147483647, %v3171
        %vm3571 = vcmp.lt.f32.partialorder %v3570, 0.0004427343
        %v3572 = vsel %vm3571, %v3569, %v3566
        %v3573 = vadd.f32 %v3173, 1.0
        %v3574 = vlog2.pop %v3573
        %v3575 = vmul.f32 %v3574, 0.6931472
        %v3576 = vmul.f32 -0.5, %v3173
        %v3577 = vadd.f32 %v3576, 1.0
        %v3578 = vmul.f32 %v3577, %v3173
        %v3579 = vand.u32 2147483647, %v3173
        %vm3580 = vcmp.lt.f32.partialorder %v3579, 0.0004427343
        %v3581 = vsel %vm3580, %v3578, %v3575
        %v3582 = vadd.f32 %v3175, 1.0
        %v3583 = vlog2.pop %v3582
        %v3584 = vmul.f32 %v3583, 0.6931472
        %v3585 = vmul.f32 -0.5, %v3175
        %v3586 = vadd.f32 %v3585, 1.0
        %v3587 = vmul.f32 %v3586, %v3175
        %v3588 = vand.u32 2147483647, %v3175
        %vm3589 = vcmp.lt.f32.partialorder %v3588, 0.0004427343
        %v3590 = vsel %vm3589, %v3587, %v3584
        %v3591 = vadd.f32 %v3177, 1.0
        %v3592 = vlog2.pop %v3591
        %v3593 = vmul.f32 %v3592, 0.6931472
        %v3594 = vmul.f32 -0.5, %v3177
        %v3595 = vadd.f32 %v3594, 1.0
        %v3596 = vmul.f32 %v3595, %v3177
        %v3597 = vand.u32 2147483647, %v3177
        %vm3598 = vcmp.lt.f32.partialorder %v3597, 0.0004427343
        %v3599 = vsel %vm3598, %v3596, %v3593
        %v3600 = vadd.f32 %v3179, 1.0
        %v3601 = vlog2.pop %v3600
        %v3602 = vmul.f32 %v3601, 0.6931472
        %v3603 = vmul.f32 -0.5, %v3179
        %v3604 = vadd.f32 %v3603, 1.0
        %v3605 = vmul.f32 %v3604, %v3179
        %v3606 = vand.u32 2147483647, %v3179
        %vm3607 = vcmp.lt.f32.partialorder %v3606, 0.0004427343
        %v3608 = vsel %vm3607, %v3605, %v3602
        %v3609 = vadd.f32 %v3181, 1.0
        %v3610 = vlog2.pop %v3609
        %v3611 = vmul.f32 %v3610, 0.6931472
        %v3612 = vmul.f32 -0.5, %v3181
        %v3613 = vadd.f32 %v3612, 1.0
        %v3614 = vmul.f32 %v3613, %v3181
        %v3615 = vand.u32 2147483647, %v3181
        %vm3616 = vcmp.lt.f32.partialorder %v3615, 0.0004427343
        %v3617 = vsel %vm3616, %v3614, %v3611
        %v3618 = vadd.f32 %v3183, 1.0
        %v3619 = vlog2.pop %v3618
        %v3620 = vmul.f32 %v3619, 0.6931472
        %v3621 = vmul.f32 -0.5, %v3183
        %v3622 = vadd.f32 %v3621, 1.0
        %v3623 = vmul.f32 %v3622, %v3183
        %v3624 = vand.u32 2147483647, %v3183
        %vm3625 = vcmp.lt.f32.partialorder %v3624, 0.0004427343
        %v3626 = vsel %vm3625, %v3623, %v3620
        %v3627 = vadd.f32 %v3185, 1.0
        %v3628 = vlog2.pop %v3627
        %v3629 = vmul.f32 %v3628, 0.6931472
        %v3630 = vmul.f32 -0.5, %v3185
        %v3631 = vadd.f32 %v3630, 1.0
        %v3632 = vmul.f32 %v3631, %v3185
        %v3633 = vand.u32 2147483647, %v3185
        %vm3634 = vcmp.lt.f32.partialorder %v3633, 0.0004427343
        %v3635 = vsel %vm3634, %v3632, %v3629
        %v3636 = vadd.f32 %v3187, 1.0
        %v3637 = vlog2.pop %v3636
        %v3638 = vmul.f32 %v3637, 0.6931472
        %v3639 = vmul.f32 -0.5, %v3187
        %v3640 = vadd.f32 %v3639, 1.0
        %v3641 = vmul.f32 %v3640, %v3187
        %v3642 = vand.u32 2147483647, %v3187
        %vm3643 = vcmp.lt.f32.partialorder %v3642, 0.0004427343
        %v3644 = vsel %vm3643, %v3641, %v3638
        %v3645 = vadd.f32 %v3189, 1.0
        %v3646 = vlog2.pop %v3645
        %v3647 = vmul.f32 %v3646, 0.6931472
        %v3648 = vmul.f32 -0.5, %v3189
        %v3649 = vadd.f32 %v3648, 1.0
        %v3650 = vmul.f32 %v3649, %v3189
        %v3651 = vand.u32 2147483647, %v3189
        %vm3652 = vcmp.lt.f32.partialorder %v3651, 0.0004427343
        %v3653 = vsel %vm3652, %v3650, %v3647
        %v3654 = vadd.f32 %v3191, 1.0
        %v3655 = vlog2.pop %v3654
        %v3656 = vmul.f32 %v3655, 0.6931472
        %v3657 = vmul.f32 -0.5, %v3191
        %v3658 = vadd.f32 %v3657, 1.0
        %v3659 = vmul.f32 %v3658, %v3191
        %v3660 = vand.u32 2147483647, %v3191
        %vm3661 = vcmp.lt.f32.partialorder %v3660, 0.0004427343
        %v3662 = vsel %vm3661, %v3659, %v3656
        %v3663 = vadd.f32 %v3193, 1.0
        %v3664 = vlog2.pop %v3663
        %v3665 = vmul.f32 %v3664, 0.6931472
        %v3666 = vmul.f32 -0.5, %v3193
        %v3667 = vadd.f32 %v3666, 1.0
        %v3668 = vmul.f32 %v3667, %v3193
        %v3669 = vand.u32 2147483647, %v3193
        %vm3670 = vcmp.lt.f32.partialorder %v3669, 0.0004427343
        %v3671 = vsel %vm3670, %v3668, %v3665
        %v3672 = vadd.f32 %v3195, 1.0
        %v3673 = vlog2.pop %v3672
        %v3674 = vmul.f32 %v3673, 0.6931472
        %v3675 = vmul.f32 -0.5, %v3195
        %v3676 = vadd.f32 %v3675, 1.0
        %v3677 = vmul.f32 %v3676, %v3195
        %v3678 = vand.u32 2147483647, %v3195
        %vm3679 = vcmp.lt.f32.partialorder %v3678, 0.0004427343
        %v3680 = vsel %vm3679, %v3677, %v3674
        %v3681 = vadd.f32 %v3197, 1.0
        %v3682 = vlog2.pop %v3681
        %v3683 = vmul.f32 %v3682, 0.6931472
        %v3684 = vmul.f32 -0.5, %v3197
        %v3685 = vadd.f32 %v3684, 1.0
        %v3686 = vmul.f32 %v3685, %v3197
        %v3687 = vand.u32 2147483647, %v3197
        %vm3688 = vcmp.lt.f32.partialorder %v3687, 0.0004427343
        %v3689 = vsel %vm3688, %v3686, %v3683
        %v3690 = vadd.f32 %v3199, 1.0
        %v3691 = vlog2.pop %v3690
        %v3692 = vmul.f32 %v3691, 0.6931472
        %v3693 = vmul.f32 -0.5, %v3199
        %v3694 = vadd.f32 %v3693, 1.0
        %v3695 = vmul.f32 %v3694, %v3199
        %v3696 = vand.u32 2147483647, %v3199
        %vm3697 = vcmp.lt.f32.partialorder %v3696, 0.0004427343
        %v3698 = vsel %vm3697, %v3695, %v3692
        %v3699 = vadd.f32 %v3201, 1.0
        %v3700 = vlog2.pop %v3699
        %v3701 = vmul.f32 %v3700, 0.6931472
        %v3702 = vmul.f32 -0.5, %v3201
        %v3703 = vadd.f32 %v3702, 1.0
        %v3704 = vmul.f32 %v3703, %v3201
        %v3705 = vand.u32 2147483647, %v3201
        %vm3706 = vcmp.lt.f32.partialorder %v3705, 0.0004427343
        %v3707 = vsel %vm3706, %v3704, %v3701
        %v3708 = vadd.f32 %v3203, 1.0
        %v3709 = vlog2.pop %v3708
        %v3710 = vmul.f32 %v3709, 0.6931472
        %v3711 = vmul.f32 -0.5, %v3203
        %v3712 = vadd.f32 %v3711, 1.0
        %v3713 = vmul.f32 %v3712, %v3203
        %v3714 = vand.u32 2147483647, %v3203
        %vm3715 = vcmp.lt.f32.partialorder %v3714, 0.0004427343
        %v3716 = vsel %vm3715, %v3713, %v3710
        %v3717 = vadd.f32 %v3205, 1.0
        %v3718 = vlog2.pop %v3717
        %v3719 = vmul.f32 %v3718, 0.6931472
        %v3720 = vmul.f32 -0.5, %v3205
        %v3721 = vadd.f32 %v3720, 1.0
        %v3722 = vmul.f32 %v3721, %v3205
        %v3723 = vand.u32 2147483647, %v3205
        %vm3724 = vcmp.lt.f32.partialorder %v3723, 0.0004427343
        %v3725 = vsel %vm3724, %v3722, %v3719
        %v3726 = vadd.f32 %v3207, 1.0
        %v3727 = vlog2.pop %v3726
        %v3728 = vmul.f32 %v3727, 0.6931472
        %v3729 = vmul.f32 -0.5, %v3207
        %v3730 = vadd.f32 %v3729, 1.0
        %v3731 = vmul.f32 %v3730, %v3207
        %v3732 = vand.u32 2147483647, %v3207
        %vm3733 = vcmp.lt.f32.partialorder %v3732, 0.0004427343
        %v3734 = vsel %vm3733, %v3731, %v3728
        %v3735 = vadd.f32 %v3209, 1.0
        %v3736 = vlog2.pop %v3735
        %v3737 = vmul.f32 %v3736, 0.6931472
        %v3738 = vmul.f32 -0.5, %v3209
        %v3739 = vadd.f32 %v3738, 1.0
        %v3740 = vmul.f32 %v3739, %v3209
        %v3741 = vand.u32 2147483647, %v3209
        %vm3742 = vcmp.lt.f32.partialorder %v3741, 0.0004427343
        %v3743 = vsel %vm3742, %v3740, %v3737
        %v3744 = vadd.f32 %v3211, 1.0
        %v3745 = vlog2.pop %v3744
        %v3746 = vmul.f32 %v3745, 0.6931472
        %v3747 = vmul.f32 -0.5, %v3211
        %v3748 = vadd.f32 %v3747, 1.0
        %v3749 = vmul.f32 %v3748, %v3211
        %v3750 = vand.u32 2147483647, %v3211
        %vm3751 = vcmp.lt.f32.partialorder %v3750, 0.0004427343
        %v3752 = vsel %vm3751, %v3749, %v3746
        %v3753 = vadd.f32 %v3213, 1.0
        %v3754 = vlog2.pop %v3753
        %v3755 = vmul.f32 %v3754, 0.6931472
        %v3756 = vmul.f32 -0.5, %v3213
        %v3757 = vadd.f32 %v3756, 1.0
        %v3758 = vmul.f32 %v3757, %v3213
        %v3759 = vand.u32 2147483647, %v3213
        %vm3760 = vcmp.lt.f32.partialorder %v3759, 0.0004427343
        %v3761 = vsel %vm3760, %v3758, %v3755
        %v3762 = vadd.f32 %v3215, 1.0
        %v3763 = vlog2.pop %v3762
        %v3764 = vmul.f32 %v3763, 0.6931472
        %v3765 = vmul.f32 -0.5, %v3215
        %v3766 = vadd.f32 %v3765, 1.0
        %v3767 = vmul.f32 %v3766, %v3215
        %v3768 = vand.u32 2147483647, %v3215
        %vm3769 = vcmp.lt.f32.partialorder %v3768, 0.0004427343
        %v3770 = vsel %vm3769, %v3767, %v3764
        %v3771 = vadd.f32 %v3217, 1.0
        %v3772 = vlog2.pop %v3771
        %v3773 = vmul.f32 %v3772, 0.6931472
        %v3774 = vmul.f32 -0.5, %v3217
        %v3775 = vadd.f32 %v3774, 1.0
        %v3776 = vmul.f32 %v3775, %v3217
        %v3777 = vand.u32 2147483647, %v3217
        %vm3778 = vcmp.lt.f32.partialorder %v3777, 0.0004427343
        %v3779 = vsel %vm3778, %v3776, %v3773
        %v3780 = vadd.f32 %v3219, 1.0
        %v3781 = vlog2.pop %v3780
        %v3782 = vmul.f32 %v3781, 0.6931472
        %v3783 = vmul.f32 -0.5, %v3219
        %v3784 = vadd.f32 %v3783, 1.0
        %v3785 = vmul.f32 %v3784, %v3219
        %v3786 = vand.u32 2147483647, %v3219
        %vm3787 = vcmp.lt.f32.partialorder %v3786, 0.0004427343
        %v3788 = vsel %vm3787, %v3785, %v3782
        %v3789 = vadd.f32 %v3221, 1.0
        %v3790 = vlog2.pop %v3789
        %v3791 = vmul.f32 %v3790, 0.6931472
        %v3792 = vmul.f32 -0.5, %v3221
        %v3793 = vadd.f32 %v3792, 1.0
        %v3794 = vmul.f32 %v3793, %v3221
        %v3795 = vand.u32 2147483647, %v3221
        %vm3796 = vcmp.lt.f32.partialorder %v3795, 0.0004427343
        %v3797 = vsel %vm3796, %v3794, %v3791
        %v3798 = vadd.f32 %v2902, %v3230
        %v3799 = vadd.f32 %v2903, %v3239
        %v3800 = vadd.f32 %v2904, %v3248
        %v3801 = vadd.f32 %v2905, %v3257
        %v3802 = vadd.f32 %v2906, %v3266
        %v3803 = vadd.f32 %v2907, %v3275
        %v3804 = vadd.f32 %v2908, %v3284
        %v3805 = vadd.f32 %v2909, %v3293
        %v3806 = vadd.f32 %v2910, %v3302
        %v3807 = vadd.f32 %v2911, %v3311
        %v3808 = vadd.f32 %v2912, %v3320
        %v3809 = vadd.f32 %v2913, %v3329
        %v3810 = vadd.f32 %v2914, %v3338
        %v3811 = vadd.f32 %v2915, %v3347
        %v3812 = vadd.f32 %v2916, %v3356
        %v3813 = vadd.f32 %v2917, %v3365
        %v3814 = vadd.f32 %v2918, %v3374
        %v3815 = vadd.f32 %v2919, %v3383
        %v3816 = vadd.f32 %v2920, %v3392
        %v3817 = vadd.f32 %v2921, %v3401
        %v3818 = vadd.f32 %v2922, %v3410
        %v3819 = vadd.f32 %v2923, %v3419
        %v3820 = vadd.f32 %v2924, %v3428
        %v3821 = vadd.f32 %v2925, %v3437
        %v3822 = vadd.f32 %v2926, %v3446
        %v3823 = vadd.f32 %v2927, %v3455
        %v3824 = vadd.f32 %v2928, %v3464
        %v3825 = vadd.f32 %v2929, %v3473
        %v3826 = vadd.f32 %v2930, %v3482
        %v3827 = vadd.f32 %v2931, %v3491
        %v3828 = vadd.f32 %v2932, %v3500
        %v3829 = vadd.f32 %v2933, %v3509
        %v3830 = vadd.f32 %v2934, %v3518
        %v3831 = vadd.f32 %v2935, %v3527
        %v3832 = vadd.f32 %v2936, %v3536
        %v3833 = vadd.f32 %v2937, %v3545
        %v3834 = vadd.f32 %v2938, %v3554
        %v3835 = vadd.f32 %v2939, %v3563
        %v3836 = vadd.f32 %v2940, %v3572
        %v3837 = vadd.f32 %v2941, %v3581
        %v3838 = vadd.f32 %v2942, %v3590
        %v3839 = vadd.f32 %v2943, %v3599
        %v3840 = vadd.f32 %v2944, %v3608
        %v3841 = vadd.f32 %v2945, %v3617
        %v3842 = vadd.f32 %v2946, %v3626
        %v3843 = vadd.f32 %v2947, %v3635
        %v3844 = vadd.f32 %v2948, %v3644
        %v3845 = vadd.f32 %v2949, %v3653
        %v3846 = vadd.f32 %v2950, %v3662
        %v3847 = vadd.f32 %v2951, %v3671
        %v3848 = vadd.f32 %v2952, %v3680
        %v3849 = vadd.f32 %v2953, %v3689
        %v3850 = vadd.f32 %v2954, %v3698
        %v3851 = vadd.f32 %v2955, %v3707
        %v3852 = vadd.f32 %v2956, %v3716
        %v3853 = vadd.f32 %v2957, %v3725
        %v3854 = vadd.f32 %v2958, %v3734
        %v3855 = vadd.f32 %v2959, %v3743
        %v3856 = vadd.f32 %v2960, %v3752
        %v3857 = vadd.f32 %v2961, %v3761
        %v3858 = vadd.f32 %v2962, %v3770
        %v3859 = vadd.f32 %v2963, %v3779
        %v3860 = vadd.f32 %v2964, %v3788
        %v3861 = vadd.f32 %v2965, %v3797
        %3926 = vset.pattern.permute.xlu0 0
        %3927 = vperm.xlu0 %3926, %v3798
        %v3928 = vpop.permute.xlu0 %3927
        %3929 = vset.pattern.permute.xlu0 0
        %3930 = vperm.xlu0 %3929, %v3799
        %v3931 = vpop.permute.xlu0 %3930
        %3932 = vset.pattern.permute.xlu0 0
        %3933 = vperm.xlu0 %3932, %v3800
        %v3934 = vpop.permute.xlu0 %3933
        %3935 = vset.pattern.permute.xlu0 0
        %3936 = vperm.xlu0 %3935, %v3801
        %v3937 = vpop.permute.xlu0 %3936
        %3938 = vset.pattern.permute.xlu0 0
        %3939 = vperm.xlu0 %3938, %v3802
        %v3940 = vpop.permute.xlu0 %3939
        %3941 = vset.pattern.permute.xlu0 0
        %3942 = vperm.xlu0 %3941, %v3803
        %v3943 = vpop.permute.xlu0 %3942
        %3944 = vset.pattern.permute.xlu0 0
        %3945 = vperm.xlu0 %3944, %v3804
        %v3946 = vpop.permute.xlu0 %3945
        %3947 = vset.pattern.permute.xlu0 0
        %3948 = vperm.xlu0 %3947, %v3805
        %v3949 = vpop.permute.xlu0 %3948
        %3950 = vset.pattern.permute.xlu0 0
        %3951 = vperm.xlu0 %3950, %v3806
        %v3952 = vpop.permute.xlu0 %3951
        %3953 = vset.pattern.permute.xlu0 0
        %3954 = vperm.xlu0 %3953, %v3807
        %v3955 = vpop.permute.xlu0 %3954
        %3956 = vset.pattern.permute.xlu0 0
        %3957 = vperm.xlu0 %3956, %v3808
        %v3958 = vpop.permute.xlu0 %3957
        %3959 = vset.pattern.permute.xlu0 0
        %3960 = vperm.xlu0 %3959, %v3809
        %v3961 = vpop.permute.xlu0 %3960
        %3962 = vset.pattern.permute.xlu0 0
        %3963 = vperm.xlu0 %3962, %v3810
        %v3964 = vpop.permute.xlu0 %3963
        %3965 = vset.pattern.permute.xlu0 0
        %3966 = vperm.xlu0 %3965, %v3811
        %v3967 = vpop.permute.xlu0 %3966
        %3968 = vset.pattern.permute.xlu0 0
        %3969 = vperm.xlu0 %3968, %v3812
        %v3970 = vpop.permute.xlu0 %3969
        %3971 = vset.pattern.permute.xlu0 0
        %3972 = vperm.xlu0 %3971, %v3813
        %v3973 = vpop.permute.xlu0 %3972
        %3974 = vset.pattern.permute.xlu0 0
        %3975 = vperm.xlu0 %3974, %v3814
        %v3976 = vpop.permute.xlu0 %3975
        %3977 = vset.pattern.permute.xlu0 0
        %3978 = vperm.xlu0 %3977, %v3815
        %v3979 = vpop.permute.xlu0 %3978
        %3980 = vset.pattern.permute.xlu0 0
        %3981 = vperm.xlu0 %3980, %v3816
        %v3982 = vpop.permute.xlu0 %3981
        %3983 = vset.pattern.permute.xlu0 0
        %3984 = vperm.xlu0 %3983, %v3817
        %v3985 = vpop.permute.xlu0 %3984
        %3986 = vset.pattern.permute.xlu0 0
        %3987 = vperm.xlu0 %3986, %v3818
        %v3988 = vpop.permute.xlu0 %3987
        %3989 = vset.pattern.permute.xlu0 0
        %3990 = vperm.xlu0 %3989, %v3819
        %v3991 = vpop.permute.xlu0 %3990
        %3992 = vset.pattern.permute.xlu0 0
        %3993 = vperm.xlu0 %3992, %v3820
        %v3994 = vpop.permute.xlu0 %3993
        %3995 = vset.pattern.permute.xlu0 0
        %3996 = vperm.xlu0 %3995, %v3821
        %v3997 = vpop.permute.xlu0 %3996
        %3998 = vset.pattern.permute.xlu0 0
        %3999 = vperm.xlu0 %3998, %v3822
        %v4000 = vpop.permute.xlu0 %3999
        %4001 = vset.pattern.permute.xlu0 0
        %4002 = vperm.xlu0 %4001, %v3823
        %v4003 = vpop.permute.xlu0 %4002
        %4004 = vset.pattern.permute.xlu0 0
        %4005 = vperm.xlu0 %4004, %v3824
        %v4006 = vpop.permute.xlu0 %4005
        %4007 = vset.pattern.permute.xlu0 0
        %4008 = vperm.xlu0 %4007, %v3825
        %v4009 = vpop.permute.xlu0 %4008
        %4010 = vset.pattern.permute.xlu0 0
        %4011 = vperm.xlu0 %4010, %v3826
        %v4012 = vpop.permute.xlu0 %4011
        %4013 = vset.pattern.permute.xlu0 0
        %4014 = vperm.xlu0 %4013, %v3827
        %v4015 = vpop.permute.xlu0 %4014
        %4016 = vset.pattern.permute.xlu0 0
        %4017 = vperm.xlu0 %4016, %v3828
        %v4018 = vpop.permute.xlu0 %4017
        %4019 = vset.pattern.permute.xlu0 0
        %4020 = vperm.xlu0 %4019, %v3829
        %v4021 = vpop.permute.xlu0 %4020
        %4022 = vset.pattern.permute.xlu0 0
        %4023 = vperm.xlu0 %4022, %v3830
        %v4024 = vpop.permute.xlu0 %4023
        %4025 = vset.pattern.permute.xlu0 0
        %4026 = vperm.xlu0 %4025, %v3831
        %v4027 = vpop.permute.xlu0 %4026
        %4028 = vset.pattern.permute.xlu0 0
        %4029 = vperm.xlu0 %4028, %v3832
        %v4030 = vpop.permute.xlu0 %4029
        %4031 = vset.pattern.permute.xlu0 0
        %4032 = vperm.xlu0 %4031, %v3833
        %v4033 = vpop.permute.xlu0 %4032
        %4034 = vset.pattern.permute.xlu0 0
        %4035 = vperm.xlu0 %4034, %v3834
        %v4036 = vpop.permute.xlu0 %4035
        %4037 = vset.pattern.permute.xlu0 0
        %4038 = vperm.xlu0 %4037, %v3835
        %v4039 = vpop.permute.xlu0 %4038
        %4040 = vset.pattern.permute.xlu0 0
        %4041 = vperm.xlu0 %4040, %v3836
        %v4042 = vpop.permute.xlu0 %4041
        %4043 = vset.pattern.permute.xlu0 0
        %4044 = vperm.xlu0 %4043, %v3837
        %v4045 = vpop.permute.xlu0 %4044
        %4046 = vset.pattern.permute.xlu0 0
        %4047 = vperm.xlu0 %4046, %v3838
        %v4048 = vpop.permute.xlu0 %4047
        %4049 = vset.pattern.permute.xlu0 0
        %4050 = vperm.xlu0 %4049, %v3839
        %v4051 = vpop.permute.xlu0 %4050
        %4052 = vset.pattern.permute.xlu0 0
        %4053 = vperm.xlu0 %4052, %v3840
        %v4054 = vpop.permute.xlu0 %4053
        %4055 = vset.pattern.permute.xlu0 0
        %4056 = vperm.xlu0 %4055, %v3841
        %v4057 = vpop.permute.xlu0 %4056
        %4058 = vset.pattern.permute.xlu0 0
        %4059 = vperm.xlu0 %4058, %v3842
        %v4060 = vpop.permute.xlu0 %4059
        %4061 = vset.pattern.permute.xlu0 0
        %4062 = vperm.xlu0 %4061, %v3843
        %v4063 = vpop.permute.xlu0 %4062
        %4064 = vset.pattern.permute.xlu0 0
        %4065 = vperm.xlu0 %4064, %v3844
        %v4066 = vpop.permute.xlu0 %4065
        %4067 = vset.pattern.permute.xlu0 0
        %4068 = vperm.xlu0 %4067, %v3845
        %v4069 = vpop.permute.xlu0 %4068
        %4070 = vset.pattern.permute.xlu0 0
        %4071 = vperm.xlu0 %4070, %v3846
        %v4072 = vpop.permute.xlu0 %4071
        %4073 = vset.pattern.permute.xlu0 0
        %4074 = vperm.xlu0 %4073, %v3847
        %v4075 = vpop.permute.xlu0 %4074
        %4076 = vset.pattern.permute.xlu0 0
        %4077 = vperm.xlu0 %4076, %v3848
        %v4078 = vpop.permute.xlu0 %4077
        %4079 = vset.pattern.permute.xlu0 0
        %4080 = vperm.xlu0 %4079, %v3849
        %v4081 = vpop.permute.xlu0 %4080
        %4082 = vset.pattern.permute.xlu0 0
        %4083 = vperm.xlu0 %4082, %v3850
        %v4084 = vpop.permute.xlu0 %4083
        %4085 = vset.pattern.permute.xlu0 0
        %4086 = vperm.xlu0 %4085, %v3851
        %v4087 = vpop.permute.xlu0 %4086
        %4088 = vset.pattern.permute.xlu0 0
        %4089 = vperm.xlu0 %4088, %v3852
        %v4090 = vpop.permute.xlu0 %4089
        %4091 = vset.pattern.permute.xlu0 0
        %4092 = vperm.xlu0 %4091, %v3853
        %v4093 = vpop.permute.xlu0 %4092
        %4094 = vset.pattern.permute.xlu0 0
        %4095 = vperm.xlu0 %4094, %v3854
        %v4096 = vpop.permute.xlu0 %4095
        %4097 = vset.pattern.permute.xlu0 0
        %4098 = vperm.xlu0 %4097, %v3855
        %v4099 = vpop.permute.xlu0 %4098
        %4100 = vset.pattern.permute.xlu0 0
        %4101 = vperm.xlu0 %4100, %v3856
        %v4102 = vpop.permute.xlu0 %4101
        %4103 = vset.pattern.permute.xlu0 0
        %4104 = vperm.xlu0 %4103, %v3857
        %v4105 = vpop.permute.xlu0 %4104
        %4106 = vset.pattern.permute.xlu0 0
        %4107 = vperm.xlu0 %4106, %v3858
        %v4108 = vpop.permute.xlu0 %4107
        %4109 = vset.pattern.permute.xlu0 0
        %4110 = vperm.xlu0 %4109, %v3859
        %v4111 = vpop.permute.xlu0 %4110
        %4112 = vset.pattern.permute.xlu0 0
        %4113 = vperm.xlu0 %4112, %v3860
        %v4114 = vpop.permute.xlu0 %4113
        %4115 = vset.pattern.permute.xlu0 0
        %4116 = vperm.xlu0 %4115, %v3861
        %v4117 = vpop.permute.xlu0 %4116
        %v4118 = vadd.s32 %v1203, 4294967232
        %v4119 = vperm.slane %v3928, %v4118
        %v4120 = vadd.s32 %v1203, 4294967224
        %v4121 = vperm.slane %v3931, %v4120
        %vm4122 = vcmask 654912
        %v4123 = vsel %vm4122, %v4121, %v4119
        %v4124 = vadd.s32 %v1203, 4294967216
        %v4125 = vperm.slane %v3934, %v4124
        %vm4126 = vcmask 720512
        %v4127 = vsel %vm4126, %v4125, %v4123
        %v4128 = vadd.s32 %v1203, 4294967208
        %v4129 = vperm.slane %v3937, %v4128
        %vm4130 = vcmask 786112
        %v4131 = vsel %vm4130, %v4129, %v4127
        %v4132 = vadd.s32 %v1203, 4294967200
        %v4133 = vperm.slane %v3940, %v4132
        %vm4134 = vcmask 851712
        %v4135 = vsel %vm4134, %v4133, %v4131
        %v4136 = vadd.s32 %v1203, 4294967192
        %v4137 = vperm.slane %v3943, %v4136
        %vm4138 = vcmask 917312
        %v4139 = vsel %vm4138, %v4137, %v4135
        %v4140 = vadd.s32 %v1203, 4294967184
        %v4141 = vperm.slane %v3946, %v4140
        %vm4142 = vcmask 982912
        %v4143 = vsel %vm4142, %v4141, %v4139
        %v4144 = vadd.s32 %v1203, 4294967176
        %v4145 = vperm.slane %v3949, %v4144
        %vm4146 = vcmask 1048512
        %v4147 = vsel %vm4146, %v4145, %v4143
        %v4148 = vperm.slane %v3952, %v4118
        %v4149 = vperm.slane %v3955, %v4120
        %v4150 = vsel %vm4122, %v4149, %v4148
        %v4151 = vperm.slane %v3958, %v4124
        %v4152 = vsel %vm4126, %v4151, %v4150
        %v4153 = vperm.slane %v3961, %v4128
        %v4154 = vsel %vm4130, %v4153, %v4152
        %v4155 = vperm.slane %v3964, %v4132
        %v4156 = vsel %vm4134, %v4155, %v4154
        %v4157 = vperm.slane %v3967, %v4136
        %v4158 = vsel %vm4138, %v4157, %v4156
        %v4159 = vperm.slane %v3970, %v4140
        %v4160 = vsel %vm4142, %v4159, %v4158
        %v4161 = vperm.slane %v3973, %v4144
        %v4162 = vsel %vm4146, %v4161, %v4160
        %v4163 = vperm.slane %v3976, %v4118
        %v4164 = vperm.slane %v3979, %v4120
        %v4165 = vsel %vm4122, %v4164, %v4163
        %v4166 = vperm.slane %v3982, %v4124
        %v4167 = vsel %vm4126, %v4166, %v4165
        %v4168 = vperm.slane %v3985, %v4128
        %v4169 = vsel %vm4130, %v4168, %v4167
        %v4170 = vperm.slane %v3988, %v4132
        %v4171 = vsel %vm4134, %v4170, %v4169
        %v4172 = vperm.slane %v3991, %v4136
        %v4173 = vsel %vm4138, %v4172, %v4171
        %v4174 = vperm.slane %v3994, %v4140
        %v4175 = vsel %vm4142, %v4174, %v4173
        %v4176 = vperm.slane %v3997, %v4144
        %v4177 = vsel %vm4146, %v4176, %v4175
        %v4178 = vperm.slane %v4000, %v4118
        %v4179 = vperm.slane %v4003, %v4120
        %v4180 = vsel %vm4122, %v4179, %v4178
        %v4181 = vperm.slane %v4006, %v4124
        %v4182 = vsel %vm4126, %v4181, %v4180
        %v4183 = vperm.slane %v4009, %v4128
        %v4184 = vsel %vm4130, %v4183, %v4182
        %v4185 = vperm.slane %v4012, %v4132
        %v4186 = vsel %vm4134, %v4185, %v4184
        %v4187 = vperm.slane %v4015, %v4136
        %v4188 = vsel %vm4138, %v4187, %v4186
        %v4189 = vperm.slane %v4018, %v4140
        %v4190 = vsel %vm4142, %v4189, %v4188
        %v4191 = vperm.slane %v4021, %v4144
        %v4192 = vsel %vm4146, %v4191, %v4190
        %v4193 = vperm.slane %v4024, %v4118
        %v4194 = vperm.slane %v4027, %v4120
        %v4195 = vsel %vm4122, %v4194, %v4193
        %v4196 = vperm.slane %v4030, %v4124
        %v4197 = vsel %vm4126, %v4196, %v4195
        %v4198 = vperm.slane %v4033, %v4128
        %v4199 = vsel %vm4130, %v4198, %v4197
        %v4200 = vperm.slane %v4036, %v4132
        %v4201 = vsel %vm4134, %v4200, %v4199
        %v4202 = vperm.slane %v4039, %v4136
        %v4203 = vsel %vm4138, %v4202, %v4201
        %v4204 = vperm.slane %v4042, %v4140
        %v4205 = vsel %vm4142, %v4204, %v4203
        %v4206 = vperm.slane %v4045, %v4144
        %v4207 = vsel %vm4146, %v4206, %v4205
        %v4208 = vperm.slane %v4048, %v4118
        %v4209 = vperm.slane %v4051, %v4120
        %v4210 = vsel %vm4122, %v4209, %v4208
        %v4211 = vperm.slane %v4054, %v4124
        %v4212 = vsel %vm4126, %v4211, %v4210
        %v4213 = vperm.slane %v4057, %v4128
        %v4214 = vsel %vm4130, %v4213, %v4212
        %v4215 = vperm.slane %v4060, %v4132
        %v4216 = vsel %vm4134, %v4215, %v4214
        %v4217 = vperm.slane %v4063, %v4136
        %v4218 = vsel %vm4138, %v4217, %v4216
        %v4219 = vperm.slane %v4066, %v4140
        %v4220 = vsel %vm4142, %v4219, %v4218
        %v4221 = vperm.slane %v4069, %v4144
        %v4222 = vsel %vm4146, %v4221, %v4220
        %v4223 = vperm.slane %v4072, %v4118
        %v4224 = vperm.slane %v4075, %v4120
        %v4225 = vsel %vm4122, %v4224, %v4223
        %v4226 = vperm.slane %v4078, %v4124
        %v4227 = vsel %vm4126, %v4226, %v4225
        %v4228 = vperm.slane %v4081, %v4128
        %v4229 = vsel %vm4130, %v4228, %v4227
        %v4230 = vperm.slane %v4084, %v4132
        %v4231 = vsel %vm4134, %v4230, %v4229
        %v4232 = vperm.slane %v4087, %v4136
        %v4233 = vsel %vm4138, %v4232, %v4231
        %v4234 = vperm.slane %v4090, %v4140
        %v4235 = vsel %vm4142, %v4234, %v4233
        %v4236 = vperm.slane %v4093, %v4144
        %v4237 = vsel %vm4146, %v4236, %v4235
        %v4238 = vperm.slane %v4096, %v4118
        %v4239 = vperm.slane %v4099, %v4120
        %v4240 = vsel %vm4122, %v4239, %v4238
        %v4241 = vperm.slane %v4102, %v4124
        %v4242 = vsel %vm4126, %v4241, %v4240
        %v4243 = vperm.slane %v4105, %v4128
        %v4244 = vsel %vm4130, %v4243, %v4242
        %v4245 = vperm.slane %v4108, %v4132
        %v4246 = vsel %vm4134, %v4245, %v4244
        %v4247 = vperm.slane %v4111, %v4136
        %v4248 = vsel %vm4138, %v4247, %v4246
        %v4249 = vperm.slane %v4114, %v4140
        %v4250 = vsel %vm4142, %v4249, %v4248
        %v4251 = vperm.slane %v4117, %v4144
        %v4252 = vsel %vm4146, %v4251, %v4250
        %v4253 = vsel %vm1250, %v4162, %v4147
        %v4254 = vsel %vm1252, %v4177, %v4253
        %v4255 = vsel %vm1254, %v4192, %v4254
        %v4256 = vsel %vm1256, %v4207, %v4255
        %v4257 = vsel %vm1258, %v4222, %v4256
        %v4258 = vsel %vm1260, %v4237, %v4257
        %v4259 = vsel %vm1262, %v4252, %v4258
        %v4261 = vsel %vm2315, %v4259, 0.0
        %4263 = vrot.lane.b32.xlu0 %v4261, 64
        %v4264 = vpop.permute.xlu0 %4263
        %v4266 = vsel %vm2294, %v4264, 0.0
        %4267 = vadd.xlane.f32.xlu0 %v4266
        %v4268 = vpop.xlane.xlu0 %4267
        %v4269 = vsel %vm2315, 1, 0
        %v4270 = vcvt.s32.f32 %v4269
        %4272 = vrot.lane.b32.xlu0 %v4270, 64
        %v4273 = vpop.permute.xlu0 %4272
        %v4275 = vsel %vm2294, %v4273, 0.0
        %4276 = vadd.xlane.f32.xlu0 %v4275
        %v4277 = vpop.xlane.xlu0 %4276
        %v4278 = vld [vmem:[%s331] sm:$0xff]
        %v4279 = vld [vmem:[%s331 + $0x8] sm:$0xff]
        %v4280 = vld [vmem:[%s331 + $0x10] sm:$0xff]
        %v4281 = vld [vmem:[%s331 + $0x18] sm:$0xff]
        %v4282 = vld [vmem:[%s331 + $0x20] sm:$0xff]
        %v4283 = vld [vmem:[%s331 + $0x28] sm:$0xff]
        %v4284 = vld [vmem:[%s331 + $0x30] sm:$0xff]
        %v4285 = vld [vmem:[%s331 + $0x38] sm:$0xff]
        %v4286 = vadd.s32 %v1203, 128
        %v4287 = vadd.s32 %v1203, 256
        %v4288 = vadd.s32 %v1203, 384
        %v4289 = vadd.s32 %v1203, 512
        %v4290 = vadd.s32 %v1203, 640
        %v4291 = vadd.s32 %v1203, 768
        %v4292 = vadd.s32 %v1203, 896
        %4293 = vset.pattern.permute.xlu0 3
        %4294 = vperm.xlu0 %4293, %v337
        %v4295 = vpop.permute.xlu0 %4294
        %vm4296 = vcmp.eq.s32.totalorder %v1203, %v4295
        %vm4297 = vcmp.eq.s32.totalorder %v4286, %v4295
        %vm4298 = vcmp.eq.s32.totalorder %v4287, %v4295
        %vm4299 = vcmp.eq.s32.totalorder %v4288, %v4295
        %vm4300 = vcmp.eq.s32.totalorder %v4289, %v4295
        %vm4301 = vcmp.eq.s32.totalorder %v4290, %v4295
        %vm4302 = vcmp.eq.s32.totalorder %v4291, %v4295
        %vm4303 = vcmp.eq.s32.totalorder %v4292, %v4295
        %v4304 = vsel %vm4296, 1, 0
        %v4305 = vsel %vm4297, 1, 0
        %v4306 = vsel %vm4298, 1, 0
        %v4307 = vsel %vm4299, 1, 0
        %v4308 = vsel %vm4300, 1, 0
        %v4309 = vsel %vm4301, 1, 0
        %v4310 = vsel %vm4302, 1, 0
        %v4311 = vsel %vm4303, 1, 0
        %v4312 = vcvt.s32.f32 %v4304
        %v4313 = vcvt.s32.f32 %v4305
        %v4314 = vcvt.s32.f32 %v4306
        %v4315 = vcvt.s32.f32 %v4307
        %v4316 = vcvt.s32.f32 %v4308
        %v4317 = vcvt.s32.f32 %v4309
        %v4318 = vcvt.s32.f32 %v4310
        %v4319 = vcvt.s32.f32 %v4311
        %v4320 = vmul.f32 %v4312, %v4278
        %v4321 = vmul.f32 %v4313, %v4279
        %v4322 = vmul.f32 %v4314, %v4280
        %v4323 = vmul.f32 %v4315, %v4281
        %v4324 = vmul.f32 %v4316, %v4282
        %v4325 = vmul.f32 %v4317, %v4283
        %v4326 = vmul.f32 %v4318, %v4284
        %v4327 = vmul.f32 %v4319, %v4285
        %v4328 = vadd.f32 %v4320, %v4321
        %v4329 = vadd.f32 %v4328, %v4322
        %v4330 = vadd.f32 %v4329, %v4323
        %v4331 = vadd.f32 %v4330, %v4324
        %v4332 = vadd.f32 %v4331, %v4325
        %v4333 = vadd.f32 %v4332, %v4326
        %v4334 = vadd.f32 %v4333, %v4327
        %4335 = vadd.xlane.f32.xlu0 %v4334
        %v4336 = vpop.xlane.xlu0 %4335
        %v4337 = vmax.f32 %v4278, %v4282
        %v4338 = vmax.f32 %v4279, %v4283
        %v4339 = vmax.f32 %v4280, %v4284
        %v4340 = vmax.f32 %v4281, %v4285
        %v4341 = vmax.f32 %v4337, %v4338
        %v4342 = vmax.f32 %v4339, %v4340
        %v4343 = vmax.f32 %v4341, %v4342
        %4344 = vmax.xlane.f32.xlu0 %v4343
        %v4345 = vpop.xlane.xlu0 %4344
        %v4346 = vsub.f32 %v4278, %v4345
        %v4347 = vsub.f32 %v4279, %v4345
        %v4348 = vsub.f32 %v4280, %v4345
        %v4349 = vsub.f32 %v4281, %v4345
        %v4350 = vsub.f32 %v4282, %v4345
        %v4351 = vsub.f32 %v4283, %v4345
        %v4352 = vsub.f32 %v4284, %v4345
        %v4353 = vsub.f32 %v4285, %v4345
        %v4354 = vmul.f32 %v4346, 1.442695
        %v4355 = vpow.pop %v4354
        %v4356 = vmul.f32 %v4347, 1.442695
        %v4357 = vpow.pop %v4356
        %v4358 = vmul.f32 %v4348, 1.442695
        %v4359 = vpow.pop %v4358
        %v4360 = vmul.f32 %v4349, 1.442695
        %v4361 = vpow.pop %v4360
        %v4362 = vmul.f32 %v4350, 1.442695
        %v4363 = vpow.pop %v4362
        %v4364 = vmul.f32 %v4351, 1.442695
        %v4365 = vpow.pop %v4364
        %v4366 = vmul.f32 %v4352, 1.442695
        %v4367 = vpow.pop %v4366
        %v4368 = vmul.f32 %v4353, 1.442695
        %v4369 = vpow.pop %v4368
        %v4370 = vadd.f32 %v4355, %v4357
        %v4371 = vadd.f32 %v4370, %v4359
        %v4372 = vadd.f32 %v4371, %v4361
        %v4373 = vadd.f32 %v4372, %v4363
        %v4374 = vadd.f32 %v4373, %v4365
        %v4375 = vadd.f32 %v4374, %v4367
        %v4376 = vadd.f32 %v4375, %v4369
        %4377 = vadd.xlane.f32.xlu0 %v4376
        %v4378 = vpop.xlane.xlu0 %4377
        %v4379 = vlog2.pop %v4378
        %v4380 = vmul.f32 %v4379, 0.6931472
        %v4381 = vadd.f32 %v4345, %v4380
        %v4382 = vsub.f32 %v4381, %v4336
        %4384 = vrot.lane.b32.xlu0 %v2314, 8
        %v4385 = vpop.permute.xlu0 %4384
        %v4387 = vsel %vm1265, %v1263, %v1368
        %vm4388 = vcmask 72704
        %v4389 = vsel %vm4388, %v4387, %v4385
        %vm4390 = vcmask 80896
        %v4391 = vsel %vm4390, %v4389, %v4268
        %vm4392 = vcmask 89088
        %v4393 = vsel %vm4392, %v4391, %v4277
        %vm4394 = vcmask 97280
        %v4395 = vsel %vm4394, %v4393, %v4382
        %vm4396 = vcmask 105472
        %v4397 = vsel %vm4396, %v4395, 0.0
        %4398 = vst [vmem:[%s315] sm:$0xff] %v4397
        %s4399 = sand.u32 %s196, 1
        %s4400 = scalar_lea.sflag [#allocation3], %s4399
        %s4401 = sand.u32 %s196, 1
        %s4402 = smul.addr %s4401, 8
        %s4403 = scalar_lea.vmem [#allocation2], %s4402
        // Predicated region
        $region49: #{tpu_custom_call.1} parent=47 // pred_check
          %p4404 = pneg %p206
        $region50: #{tpu_custom_call.1} parent=47 // pred_check_branch
          %4406 = sbr.rel (%p4404) target = $region52
        $region51: #{tpu_custom_call.1} parent=47 // pred_region
          %4408 = vsyncadd %s4400, 0
          %s4409 = smul.addr %s21, 8
          %s4410 = scalar_lea.hbm %s7, %s4409
          %s4412 = sshll.u32 %s4403, 4
          %s4413 = int_to_ptr.vmem [resolvable:$true] %s4412
          %s4414 = sshll.u32 %s4410, 4
          %s4415 = int_to_ptr.hbm [resolvable:$true] %s4414
          %4417 = dma.vmem_to_hbm [thread:$0]  %s4413, 128, %s4415, %s4400
        $region52: #{tpu_custom_call.1} parent=47 // pred_fallthru
          _
      $region48: #{tpu_custom_call.1} parent=5 // pred_fallthru
        _
      %p4418 = scmp.le.s32.totalorder 2, %s16
      // Predicated region
      $region53: #{tpu_custom_call.1} parent=5 // pred_check
        %p4419 = pneg %p4418
      $region54: #{tpu_custom_call.1} parent=5 // pred_check_branch
        %4421 = sbr.rel (%p4419) target = $region56
      $region55: #{tpu_custom_call.1} parent=5 // pred_region
        %s4422 = ssub.s32 %s16, 2
        // Predicated region
        $region57: #{tpu_custom_call.1} parent=55 // pred_check
          %p4423 = pneg %p212
        $region58: #{tpu_custom_call.1} parent=55 // pred_check_branch
          %4425 = sbr.rel (%p4423) target = $region60
        $region59: #{tpu_custom_call.1} parent=55 // pred_region
          %s4426 = sand.u32 %s197, 1
          %s4427 = scalar_lea.sflag [#allocation3], %s4426
          %s4428 = sand.u32 %s197, 1
          %s4429 = smul.addr %s4428, 8
          %s4430 = scalar_lea.vmem [#allocation2], %s4429
          %4432 = dma.done %s4427, 128
        $region60: #{tpu_custom_call.1} parent=55 // pred_fallthru
          _
      $region56: #{tpu_custom_call.1} parent=5 // pred_fallthru
        _
    $region6: #{tpu_custom_call.1} parent=1 // loop_footer
      %s20 = sadd.s32 1, %s16
    $region7: #{tpu_custom_call.1} parent=1 // loop_footer_branch
      %15 = sbr.rel target = $region3
    $region8: #{tpu_custom_call.1} parent=1 // loop_exit
      _
    %4433 = vsyncpa [#allocation3], 1
    %s4434 = scalar_lea.sflag [#allocation3], 1
    %4435 = vsyncpa %s4434, 1

</llo_original>
